<compile_context>
chip_gen: v7x
topology: tpu7x:2x2x1
jax: 0.10.0
libtpu: 0.0.40
codegen_flags: <defaults>
</compile_context>

<pallas_src>
import functools

import jax
import jax.numpy as jnp
from jax import lax
from jax.experimental import pallas as pl
from jax.experimental.pallas import tpu as pltpu

_LANE = 128


def _leaky_relu(v):
    # nn.LeakyReLU(negative_slope=0.1)
    return jnp.where(v >= 0.0, v, 0.1 * v)


def _round_up(n, m):
    return ((n + m - 1) // m) * m


def _pad_last(a, new_last):
    pad = new_last - a.shape[-1]
    if pad == 0:
        return a
    return jnp.pad(a, [(0, 0)] * (a.ndim - 1) + [(0, pad)])


# --------------------------------------------------------------------------------------
# Kernel
# --------------------------------------------------------------------------------------
def _fused_biaffine_kernel(
    x_ref, mask_ref,
    arc_h1_ref, rel_h1_ref, arc_h2_ref, rel_h2_ref,
    w_deps_ref, b_deps_ref,
    wa1_ref, ab1_ref, w00_1_ref, w10_1_ref, w01t_1_ref, w11_1_ref,
    wa2_ref, ab2_ref, w00_2_ref, w10_2_ref, w01t_2_ref, w11_2_ref,
    s_arc1_ref, s_arc2_ref, s_rel1_ref, s_rel2_ref,
    *, n_arc_pad, n_rel_pad, compute_dtype):
    Ap, Rp = n_arc_pad, n_rel_pad
    cdt = compute_dtype
    dn = (((1,), (1,)), ((), ()))          # contract last dims of both operands, no batch

    # ---- fused dependent-side MLPs (both decoders, arc + rel) in one MXU matmul -------
    xq = x_ref[0]                                                      # [tq, H], cdt
    d = jnp.dot(xq, w_deps_ref[...], preferred_element_type=jnp.float32)
    d = _leaky_relu(d + b_deps_ref[...])                               # [tq, 2Ap+2Rp] f32
    # lane-aligned slices (Ap, Rp are multiples of 128)
    arc_d1 = d[:, :Ap].astype(cdt)
    rel_d1 = d[:, Ap:Ap + Rp].astype(cdt)
    arc_d2 = d[:, Ap + Rp:2 * Ap + Rp].astype(cdt)
    rel_d2 = d[:, 2 * Ap + Rp:].astype(cdt)

    mask_row = mask_ref[0]                                             # [1, T], 1.0 = keep

    def one_decoder(arc_d, rel_d, arc_h_ref, rel_h_ref,
                    wa_ref, ab_ref, w00_ref, w10_ref, w01t_ref, w11_ref,
                    s_arc_ref, s_rel_ref):
        tq = arc_d.shape[0]
        n_rels = s_rel_ref.shape[2]
        T = arc_h_ref.shape[1]

        # --- arc biaffine (bias_x=True): core + bias_x row, pre-split host-side --------
        tmp = jnp.dot(arc_d, wa_ref[...], preferred_element_type=jnp.float32)
        tmp = (tmp + ab_ref[...]).astype(cdt)                          # [tq, Ap]
        s_arc = lax.dot_general(tmp, arc_h_ref[0], dn,
                                preferred_element_type=jnp.float32)    # [tq, T]
        # masked_fill_(~mask.unsqueeze(1), -inf): mask padded head columns.
        s_arc_ref[0] = jnp.where(mask_row > 0.0, s_arc,
                                 -jnp.inf).astype(s_arc_ref.dtype)

        # --- rel biaffine (bias_x=True, bias_y=True), ALL labels in two wide matmuls ---
        #   left[x, o*Rp+j] = sum_i rel_d[x,i] * W00[o,i,j]  + w10[o,j]
        #   s[x, o, y]      = sum_j left[x,o*Rp+j] * rel_h[y,j]
        #                   + rel_d[x].w01[o] + w11[o]        (y-broadcast term)
        left = jnp.dot(rel_d, w00_ref[...], preferred_element_type=jnp.float32)
        left = (left + w10_ref[...]).astype(cdt)                       # [tq, n_rels*Rp]
        left2 = left.reshape(tq * n_rels, Rp)                          # row-major (x, o)
        s2 = lax.dot_general(left2, rel_h_ref[0], dn,
                             preferred_element_type=jnp.float32)       # [tq*n_rels, T]
        right = jnp.dot(rel_d, w01t_ref[...],
                        preferred_element_type=jnp.float32) + w11_ref[...]   # [tq, n_rels]
        s_rel_ref[0] = (s2.reshape(tq, n_rels, T)
                        + right[:, :, None]).astype(s_rel_ref.dtype)

    one_decoder(arc_d1, rel_d1, arc_h1_ref, rel_h1_ref,
                wa1_ref, ab1_ref, w00_1_ref, w10_1_ref, w01t_1_ref, w11_1_ref,
                s_arc1_ref, s_rel1_ref)
    one_decoder(arc_d2, rel_d2, arc_h2_ref, rel_h2_ref,
                wa2_ref, ab2_ref, w00_2_ref, w10_2_ref, w01t_2_ref, w11_2_ref,
                s_arc2_ref, s_rel2_ref)


# --------------------------------------------------------------------------------------
# Host-side weight packing (free at trace time)
# --------------------------------------------------------------------------------------
def _pack_params(params_1st, params_2nd, compute_dtype):
    A = params_1st["w_arc_attn"].shape[2]
    R = params_1st["w_rel_attn"].shape[1] - 1
    Ap, Rp = _round_up(A, _LANE), _round_up(R, _LANE)
    cdt = compute_dtype

    def fuse(suffix):
        ws, bs = [], []
        for p in (params_1st, params_2nd):
            ws += [_pad_last(p["w_arc_" + suffix], Ap), _pad_last(p["w_rel_" + suffix], Rp)]
            bs += [_pad_last(p["b_arc_" + suffix], Ap), _pad_last(p["b_rel_" + suffix], Rp)]
        return jnp.concatenate(ws, axis=1), jnp.concatenate(bs, axis=1)

    w_heads, b_heads = fuse("h")            # [H, 2Ap+2Rp], [1, 2Ap+2Rp]
    w_deps, b_deps = fuse("d")

    def split_biaffine(p):
        n_rels = p["w_rel_attn"].shape[0]
        wa_full = p["w_arc_attn"][0]                                     # [A+1, A]
        wa = jnp.pad(wa_full[:A, :], ((0, Ap - A), (0, Ap - A))).astype(cdt)   # core [Ap,Ap]
        ab = _pad_last(wa_full[A:, :], Ap).astype(jnp.float32)                 # bias_x [1,Ap]
        wr = p["w_rel_attn"]                                             # [n_rels, R+1, R+1]
        w00 = jnp.pad(wr[:, :R, :R], ((0, 0), (0, Rp - R), (0, Rp - R)))        # [nr,Rp,Rp]
        # w00p[i, o*Rp + j] = W00[o, i, j]   -> one wide matmul for all labels
        w00p = jnp.transpose(w00, (1, 0, 2)).reshape(Rp, n_rels * Rp).astype(cdt)
        # w10row[0, o*Rp + j] = W[o, R, j]   (bias_x row, added to `left`)
        w10 = _pad_last(wr[:, R, :R], Rp).reshape(1, n_rels * Rp).astype(jnp.float32)
        # w01t[i, o] = W[o, i, R]            (bias_y column, y-broadcast term)
        w01t = jnp.transpose(_pad_last(wr[:, :R, R], Rp)).astype(cdt)    # [Rp, n_rels]
        w11 = wr[:, R, R].reshape(1, n_rels).astype(jnp.float32)         # corner [1, n_rels]
        return dict(wa=wa, ab=ab, w00p=w00p, w10=w10, w01t=w01t, w11=w11)

    return dict(A=A, R=R, Ap=Ap, Rp=Rp,
                w_heads=w_heads.astype(cdt), b_heads=b_heads.astype(jnp.float32),
                w_deps=w_deps.astype(cdt), b_deps=b_deps.astype(jnp.float32),
                dec1=split_biaffine(params_1st), dec2=split_biaffine(params_2nd))


# --------------------------------------------------------------------------------------
# VMEM budgeting + q-tile selection
# --------------------------------------------------------------------------------------
def _vmem_budget_bytes():
    try:
        cap = int(pltpu.get_tpu_info().vmem_capacity_bytes)   # 128 MiB v5e/v6e, 64 MiB v7x
        return int(cap * 0.8)
    except Exception:
        return 64 * 1024 * 1024                               # conservative, works everywhere


def _vmem_bytes_estimate(tq, *, T, H, Ap, Rp, nr1, nr2, cbytes, obytes):
    wc = 2 * Ap + 2 * Rp
    weights = H * wc * cbytes + wc * 4
    for nr in (nr1, nr2):
        weights += (Ap * Ap + Rp * nr * Rp + Rp * nr) * cbytes + (Ap + nr * Rp + nr) * 4
    heads = T * wc * cbytes                                   # per-batch head activations
    per_step_in = tq * H * cbytes + T * 4
    per_step_out = (2 * tq * T + tq * (nr1 + nr2) * T) * obytes
    buffered = 2 * (weights + heads + per_step_in + per_step_out)   # double-buffered
    nr_max = max(nr1, nr2)
    interm = tq * wc * 4 + tq * nr_max * Rp * 4 + tq * nr_max * T * 4 + tq * T * 4
    return buffered + interm


def _pick_q_tile(T, target, est_fn, budget):
    """Largest multiple of 8 dividing T whose per-step VMEM estimate fits the budget."""
    cands = []
    t = min(target, T)
    t -= t % 8
    while t >= 8:
        if T % t == 0:
            cands.append(t)
        t -= 8
    if not cands:
        cands = [T]           # TODO(synk): pad T to a multiple of 128 (and mask the tail)
    for t in cands:
        if est_fn(t) <= budget:
            return t
    return cands[-1]


# --------------------------------------------------------------------------------------
# Wrapper
# --------------------------------------------------------------------------------------
def biaffine_separate_decoder_forward(x, mask, params_1st, params_2nd, *,
                                      q_tile=256,
                                      compute_dtype=jnp.bfloat16,
                                      out_dtype=jnp.float32,
                                      channels_last=True,
                                      vmem_limit_bytes=None):
    """Returns ((s_arc_1st, s_arc_2nd), (s_rel_1st, s_rel_2nd)) like the PyTorch module."""
    B, T, H = x.shape
    cdt = compute_dtype
    packed = _pack_params(params_1st, params_2nd, cdt)
    Ap, Rp = packed["Ap"], packed["Rp"]
    nr1 = params_1st["w_rel_attn"].shape[0]
    nr2 = params_2nd["w_rel_attn"].shape[0]

    budget = int(vmem_limit_bytes) if vmem_limit_bytes is not None else _vmem_budget_bytes()
    est = functools.partial(_vmem_bytes_estimate, T=T, H=H, Ap=Ap, Rp=Rp, nr1=nr1, nr2=nr2,
                            cbytes=jnp.dtype(cdt).itemsize,
                            obytes=jnp.dtype(out_dtype).itemsize)
    tq = _pick_q_tile(T, q_tile, est, budget)
    n_q = T // tq
    vmem_limit = int(max(budget, est(tq)))

    # Host-side cast (halves x DMA + VMEM); mask stays f32 (tiny).
    x_c = x.astype(cdt)
    mask_f = mask.astype(jnp.float32).reshape(B, 1, T)

    # Head-side MLPs hoisted to a tiny XLA matmul so the q axis has no cross-step state
    # (both grid axes can be "parallel"; on v7x both TensorCores can split q).
    h = jnp.einsum('bth,hc->btc', x_c, packed["w_heads"],
                   preferred_element_type=jnp.float32) + packed["b_heads"]
    h = _leaky_relu(h).astype(cdt)                                     # [B, T, 2Ap+2Rp]
    arc_h1 = h[:, :, :Ap]
    rel_h1 = h[:, :, Ap:Ap + Rp]
    arc_h2 = h[:, :, Ap + Rp:2 * Ap + Rp]
    rel_h2 = h[:, :, 2 * Ap + Rp:]

    d1, d2 = packed["dec1"], packed["dec2"]
    const_inputs = [packed["w_deps"], packed["b_deps"],
                    d1["wa"], d1["ab"], d1["w00p"], d1["w10"], d1["w01t"], d1["w11"],
                    d2["wa"], d2["ab"], d2["w00p"], d2["w10"], d2["w01t"], d2["w11"]]

    def head_spec(a):
        return pl.BlockSpec((1,) + a.shape[1:], lambda b, q: (b, 0, 0))

    def const_spec(a):
        nd = a.ndim
        # TODO(synk): single-buffer these constant-index weight blocks with
        # pipeline_mode=pl.Buffered(buffer_count=1) once universally supported.
        return pl.BlockSpec(a.shape, lambda b, q, _nd=nd: (0,) * _nd)

    in_specs = ([pl.BlockSpec((1, tq, H), lambda b, q: (b, q, 0)),     # x, q-tile rows
                 pl.BlockSpec((1, 1, T), lambda b, q: (b, 0, 0))]      # mask
                + [head_spec(a) for a in (arc_h1, rel_h1, arc_h2, rel_h2)]
                + [const_spec(a) for a in const_inputs])

    out_specs = [
        pl.BlockSpec((1, tq, T), lambda b, q: (b, q, 0)),              # s_arc 1st
        pl.BlockSpec((1, tq, T), lambda b, q: (b, q, 0)),              # s_arc 2nd
        pl.BlockSpec((1, tq, nr1, T), lambda b, q: (b, q, 0, 0)),      # s_rel 1st (native)
        pl.BlockSpec((1, tq, nr2, T), lambda b, q: (b, q, 0, 0)),      # s_rel 2nd (native)
    ]
    out_shape = [
        jax.ShapeDtypeStruct((B, T, T), out_dtype),
        jax.ShapeDtypeStruct((B, T, T), out_dtype),
        jax.ShapeDtypeStruct((B, T, nr1, T), out_dtype),
        jax.ShapeDtypeStruct((B, T, nr2, T), out_dtype),
    ]

    kernel = functools.partial(_fused_biaffine_kernel,
                               n_arc_pad=Ap, n_rel_pad=Rp, compute_dtype=cdt)

    s_arc1, s_arc2, s_rel1, s_rel2 = pl.pallas_call(
        kernel,
        out_shape=out_shape,
        grid_spec=pltpu.PrefetchScalarGridSpec(
            num_scalar_prefetch=0,
            grid=(B, n_q),
            in_specs=in_specs,
            out_specs=out_specs),
        compiler_params=pltpu.CompilerParams(
            dimension_semantics=("parallel", "parallel"),
            vmem_limit_bytes=vmem_limit),
    )(x_c, mask_f, arc_h1, rel_h1, arc_h2, rel_h2, *const_inputs)

    if channels_last:
        # Strict PyTorch parity: s_rel[b, x, y, o].  Native layout is [B, T, n_rels, T];
        # perf-critical callers can pass channels_last=False and skip this HBM round trip.
        s_rel1 = jnp.transpose(s_rel1, (0, 1, 3, 2))
        s_rel2 = jnp.transpose(s_rel2, (0, 1, 3, 2))

    # PyTorch: tuple(zip(dec1(x, mask), dec2(x, mask)))
    return tuple(zip((s_arc1, s_rel1), (s_arc2, s_rel2)))


# --------------------------------------------------------------------------------------
# Parameter init + pure-JAX reference (for the self-test)
# --------------------------------------------------------------------------------------
def init_biaffine_decoder_params(key, hidden_size, n_mlp_arc, n_mlp_rel, n_rels):
    ks = jax.random.split(key, 10)

    def lin(k, n_in, n_out):   # stored as [in, out] so y = x @ W + b
        return 0.1 * jax.random.normal(k, (n_in, n_out), jnp.float32)

    def bias(k, n_out):
        return 0.1 * jax.random.normal(k, (1, n_out), jnp.float32)

    return {
        "w_arc_h": lin(ks[0], hidden_size, n_mlp_arc), "b_arc_h": bias(ks[1], n_mlp_arc),
        "w_arc_d": lin(ks[2], hidden_size, n_mlp_arc), "b_arc_d": bias(ks[3], n_mlp_arc),
        "w_rel_h": lin(ks[4], hidden_size, n_mlp_rel), "b_rel_h": bias(ks[5], n_mlp_rel),
        "w_rel_d": lin(ks[6], hidden_size, n_mlp_rel), "b_rel_d": bias(ks[7], n_mlp_rel),
        # Biaffine(n_in=n_mlp_arc, n_out=1, bias_x=True, bias_y=False)
        "w_arc_attn": 0.1 * jax.random.normal(ks[8], (1, n_mlp_arc + 1, n_mlp_arc), jnp.float32),
        # Biaffine(n_in=n_mlp_rel, n_out=n_rels, bias_x=True, bias_y=True)
        "w_rel_attn": 0.1 * jax.random.normal(ks[9], (n_rels, n_mlp_rel + 1, n_mlp_rel + 1), jnp.float32),
    }


def _reference_decoder_forward(x, mask, p):
    """Pure-JAX f32 reference for one BiaffineDecoder."""
    A = p["w_arc_attn"].shape[2]

    def mlp(w, b):
        y = jnp.einsum('bth,ha->bta', x, w) + b
        return jnp.where(y >= 0.0, y, 0.1 * y)

    arc_h = mlp(p["w_arc_h"], p["b_arc_h"])
    arc_d = mlp(p["w_arc_d"], p["b_arc_d"])
    rel_h = mlp(p["w_rel_h"], p["b_rel_h"])
    rel_d = mlp(p["w_rel_d"], p["b_rel_d"])

    w_arc = p["w_arc_attn"][0]
    tmp = jnp.einsum('bxi,ij->bxj', arc_d, w_arc[:A]) + w_arc[A:A + 1]
    s_arc = jnp.einsum('bxj,byj->bxy', tmp, arc_h)
    s_arc = jnp.where(mask[:, None, :], s_arc, -jnp.inf)

    ones = jnp.ones(rel_d.shape[:-1] + (1,), rel_d.dtype)
    rel_d1 = jnp.concatenate([rel_d, ones], axis=-1)
    rel_h1 = jnp.concatenate([rel_h, ones], axis=-1)
    s_rel = jnp.einsum('bxi,oij,byj->bxyo', rel_d1, p["w_rel_attn"], rel_h1)
    return s_arc, s_rel


def _assert_close(got, want, tol):
    finite = jnp.isfinite(want)
    assert bool(jnp.array_equal(finite, jnp.isfinite(got))), "inf/mask pattern mismatch"
    diff = jnp.where(finite, jnp.abs(got - want), 0.0)
    assert float(jnp.max(diff)) <= tol, f"max abs diff {float(jnp.max(diff))} > {tol}"


if __name__ == "__main__":
    # Small config consistent with the module.
    B, T, H = 2, 8, 32
    n_mlp_arc, n_mlp_rel = 16, 16
    n_rels, n_rels_2nd = 4, 3

    key = jax.random.PRNGKey(0)
    kx, k1, k2 = jax.random.split(key, 3)

    x = jax.random.normal(kx, (B, T, H), jnp.float32)
    lengths = jnp.array([T, T - 2], jnp.int32)
    mask = jnp.arange(T)[None, :] < lengths[:, None]   # [B, T] bool

    params_1st = init_biaffine_decoder_params(k1, H, n_mlp_arc, n_mlp_rel, n_rels)
    params_2nd = init_biaffine_decoder_params(k2, H, n_mlp_arc, n_mlp_rel, n_rels_2nd)

    # TODO(synk): mlp_dropout (SharedDropout) is training-only; inference path is identity.

    # --- correctness check: f32 compute path vs. pure-JAX reference ---
    out_f32 = biaffine_separate_decoder_forward(x, mask, params_1st, params_2nd,
                                                compute_dtype=jnp.float32)
    out_f32 = jax.block_until_ready(out_f32)
    ref1 = _reference_decoder_forward(x, mask, params_1st)
    ref2 = _reference_decoder_forward(x, mask, params_2nd)
    (s_arc_1, s_arc_2), (s_rel_1, s_rel_2) = out_f32
    assert s_arc_1.shape == (B, T, T) and s_arc_2.shape == (B, T, T)
    assert s_rel_1.shape == (B, T, T, n_rels) and s_rel_2.shape == (B, T, T, n_rels_2nd)
    _assert_close(s_arc_1, ref1[0], 5e-3)
    _assert_close(s_rel_1, ref1[1], 5e-3)
    _assert_close(s_arc_2, ref2[0], 5e-3)
    _assert_close(s_rel_2, ref2[1], 5e-3)

    # --- default (performance) path: bf16 MXU matmuls, f32 accumulation / outputs ---
    out = biaffine_separate_decoder_forward(x, mask, params_1st, params_2nd)
    out = jax.block_until_ready(out)
    (a1, a2), (r1, r2) = out
    assert a1.shape == (B, T, T) and a2.shape == (B, T, T)
    assert r1.shape == (B, T, T, n_rels) and r2.shape == (B, T, T, n_rels_2nd)
    assert bool(jnp.all(jnp.isfinite(r1))) and bool(jnp.all(jnp.isfinite(r2)))

    print("KERNEL_OK")
</pallas_src>

<mosaic_0001>
module attributes {stable_mosaic.version = 11 : i64} {
  func.func @_fused_biaffine_kernel(%arg0: i32, %arg1: i32, %arg2: memref<1x8x32xf32, #tpu.memory_space<vmem>>, %arg3: memref<1x1x8xf32, #tpu.memory_space<vmem>>, %arg4: memref<1x8x128xf32, #tpu.memory_space<vmem>>, %arg5: memref<1x8x128xf32, #tpu.memory_space<vmem>>, %arg6: memref<1x8x128xf32, #tpu.memory_space<vmem>>, %arg7: memref<1x8x128xf32, #tpu.memory_space<vmem>>, %arg8: memref<32x512xf32, #tpu.memory_space<vmem>>, %arg9: memref<1x512xf32, #tpu.memory_space<vmem>>, %arg10: memref<128x128xf32, #tpu.memory_space<vmem>>, %arg11: memref<1x128xf32, #tpu.memory_space<vmem>>, %arg12: memref<128x512xf32, #tpu.memory_space<vmem>>, %arg13: memref<1x512xf32, #tpu.memory_space<vmem>>, %arg14: memref<128x4xf32, #tpu.memory_space<vmem>>, %arg15: memref<1x4xf32, #tpu.memory_space<vmem>>, %arg16: memref<128x128xf32, #tpu.memory_space<vmem>>, %arg17: memref<1x128xf32, #tpu.memory_space<vmem>>, %arg18: memref<128x384xf32, #tpu.memory_space<vmem>>, %arg19: memref<1x384xf32, #tpu.memory_space<vmem>>, %arg20: memref<128x3xf32, #tpu.memory_space<vmem>>, %arg21: memref<1x3xf32, #tpu.memory_space<vmem>>, %arg22: memref<1x8x8xf32, #tpu.memory_space<vmem>>, %arg23: memref<1x8x8xf32, #tpu.memory_space<vmem>>, %arg24: memref<1x8x4x8xf32, #tpu.memory_space<vmem>>, %arg25: memref<1x8x3x8xf32, #tpu.memory_space<vmem>>) attributes {dimension_semantics = [#tpu.dimension_semantics<parallel>, #tpu.dimension_semantics<parallel>], iteration_bounds = array<i64: 2, 1>, scalar_prefetch = 0 : i64, scratch_operands = 0 : i64, tpu.core_type = #tpu.core_type<tc>, window_params = [{transform_indices = @transform_0, window_bounds = array<i64: 1, 8, 32>}, {transform_indices = @transform_1, window_bounds = array<i64: 1, 1, 8>}, {transform_indices = @transform_2, window_bounds = array<i64: 1, 8, 128>}, {transform_indices = @transform_3, window_bounds = array<i64: 1, 8, 128>}, {transform_indices = @transform_4, window_bounds = array<i64: 1, 8, 128>}, {transform_indices = @transform_5, window_bounds = array<i64: 1, 8, 128>}, {pipeline_mode = #tpu.pipeline_mode<synchronous>, transform_indices = @transform_6, window_bounds = array<i64: 32, 512>}, {pipeline_mode = #tpu.pipeline_mode<synchronous>, transform_indices = @transform_7, window_bounds = array<i64: 1, 512>}, {pipeline_mode = #tpu.pipeline_mode<synchronous>, transform_indices = @transform_8, window_bounds = array<i64: 128, 128>}, {pipeline_mode = #tpu.pipeline_mode<synchronous>, transform_indices = @transform_9, window_bounds = array<i64: 1, 128>}, {pipeline_mode = #tpu.pipeline_mode<synchronous>, transform_indices = @transform_10, window_bounds = array<i64: 128, 512>}, {pipeline_mode = #tpu.pipeline_mode<synchronous>, transform_indices = @transform_11, window_bounds = array<i64: 1, 512>}, {pipeline_mode = #tpu.pipeline_mode<synchronous>, transform_indices = @transform_12, window_bounds = array<i64: 128, 4>}, {pipeline_mode = #tpu.pipeline_mode<synchronous>, transform_indices = @transform_13, window_bounds = array<i64: 1, 4>}, {pipeline_mode = #tpu.pipeline_mode<synchronous>, transform_indices = @transform_14, window_bounds = array<i64: 128, 128>}, {pipeline_mode = #tpu.pipeline_mode<synchronous>, transform_indices = @transform_15, window_bounds = array<i64: 1, 128>}, {pipeline_mode = #tpu.pipeline_mode<synchronous>, transform_indices = @transform_16, window_bounds = array<i64: 128, 384>}, {pipeline_mode = #tpu.pipeline_mode<synchronous>, transform_indices = @transform_17, window_bounds = array<i64: 1, 384>}, {pipeline_mode = #tpu.pipeline_mode<synchronous>, transform_indices = @transform_18, window_bounds = array<i64: 128, 3>}, {pipeline_mode = #tpu.pipeline_mode<synchronous>, transform_indices = @transform_19, window_bounds = array<i64: 1, 3>}, {transform_indices = @transform_20, window_bounds = array<i64: 1, 8, 8>}, {transform_indices = @transform_21, window_bounds = array<i64: 1, 8, 8>}, {transform_indices = @transform_22, window_bounds = array<i64: 1, 8, 4, 8>}, {transform_indices = @transform_23, window_bounds = array<i64: 1, 8, 3, 8>}]} {
    %c0 = arith.constant 0 : index
    %c0_0 = arith.constant 0 : index
    %c0_1 = arith.constant 0 : index
    %0 = vector.load %arg2[%c0, %c0_0, %c0_1] : memref<1x8x32xf32, #tpu.memory_space<vmem>>, vector<1x8x32xf32>
    %1 = vector.shape_cast %0 : vector<1x8x32xf32> to vector<8x32xf32>
    %c0_2 = arith.constant 0 : index
    %c0_3 = arith.constant 0 : index
    %2 = vector.load %arg8[%c0_2, %c0_3] : memref<32x512xf32, #tpu.memory_space<vmem>>, vector<32x512xf32>
    %cst = arith.constant dense<0.000000e+00> : vector<8x512xf32>
    %3 = tpu.matmul %1, %2, %cst {dimension_numbers = #tpu.dot_dimension_numbers<[1], [0], [0], [1], [0, 0, 1, 1], [], []>} : vector<8x32xf32>, vector<32x512xf32>, vector<8x512xf32> -> vector<8x512xf32>
    %c0_4 = arith.constant 0 : index
    %c0_5 = arith.constant 0 : index
    %4 = vector.load %arg9[%c0_4, %c0_5] : memref<1x512xf32, #tpu.memory_space<vmem>>, vector<1x512xf32>
    %5 = vector.broadcast %4 : vector<1x512xf32> to vector<8x512xf32>
    %6 = arith.addf %3, %5 : vector<8x512xf32>
    %cst_6 = arith.constant 0.000000e+00 : f32
    %7 = vector.broadcast %cst_6 : f32 to vector<8x512xf32>
    %8 = arith.cmpf oge, %6, %7 : vector<8x512xf32>
    %cst_7 = arith.constant 1.000000e-01 : f32
    %9 = vector.broadcast %cst_7 : f32 to vector<8x512xf32>
    %10 = arith.mulf %9, %6 : vector<8x512xf32>
    %11 = arith.select %8, %6, %10 : vector<8x512xi1>, vector<8x512xf32>
    %12 = vector.extract_strided_slice %11 {offsets = [0, 0], sizes = [8, 128], strides = [1, 1]} : vector<8x512xf32> to vector<8x128xf32>
    %13 = vector.extract_strided_slice %11 {offsets = [0, 128], sizes = [8, 128], strides = [1, 1]} : vector<8x512xf32> to vector<8x128xf32>
    %14 = vector.extract_strided_slice %11 {offsets = [0, 256], sizes = [8, 128], strides = [1, 1]} : vector<8x512xf32> to vector<8x128xf32>
    %15 = vector.extract_strided_slice %11 {offsets = [0, 384], sizes = [8, 128], strides = [1, 1]} : vector<8x512xf32> to vector<8x128xf32>
    %c0_8 = arith.constant 0 : index
    %c0_9 = arith.constant 0 : index
    %c0_10 = arith.constant 0 : index
    %16 = vector.load %arg3[%c0_8, %c0_9, %c0_10] : memref<1x1x8xf32, #tpu.memory_space<vmem>>, vector<1x1x8xf32>
    %17 = vector.shape_cast %16 : vector<1x1x8xf32> to vector<1x8xf32>
    %c0_11 = arith.constant 0 : index
    %c0_12 = arith.constant 0 : index
    %18 = vector.load %arg10[%c0_11, %c0_12] : memref<128x128xf32, #tpu.memory_space<vmem>>, vector<128x128xf32>
    %cst_13 = arith.constant dense<0.000000e+00> : vector<8x128xf32>
    %19 = tpu.matmul %12, %18, %cst_13 {dimension_numbers = #tpu.dot_dimension_numbers<[1], [0], [0], [1], [0, 0, 1, 1], [], []>} : vector<8x128xf32>, vector<128x128xf32>, vector<8x128xf32> -> vector<8x128xf32>
    %c0_14 = arith.constant 0 : index
    %c0_15 = arith.constant 0 : index
    %20 = vector.load %arg11[%c0_14, %c0_15] : memref<1x128xf32, #tpu.memory_space<vmem>>, vector<1x128xf32>
    %21 = vector.broadcast %20 : vector<1x128xf32> to vector<8x128xf32>
    %22 = arith.addf %19, %21 : vector<8x128xf32>
    %c0_16 = arith.constant 0 : index
    %c0_17 = arith.constant 0 : index
    %c0_18 = arith.constant 0 : index
    %23 = vector.load %arg4[%c0_16, %c0_17, %c0_18] : memref<1x8x128xf32, #tpu.memory_space<vmem>>, vector<1x8x128xf32>
    %24 = vector.shape_cast %23 : vector<1x8x128xf32> to vector<8x128xf32>
    %cst_19 = arith.constant dense<0.000000e+00> : vector<8x8xf32>
    %25 = tpu.matmul %22, %24, %cst_19 {dimension_numbers = #tpu.dot_dimension_numbers<[1], [1], [0], [0], [0, 0, 1, 0], [], []>} : vector<8x128xf32>, vector<8x128xf32>, vector<8x8xf32> -> vector<8x8xf32>
    %cst_20 = arith.constant 0.000000e+00 : f32
    %26 = vector.broadcast %cst_20 : f32 to vector<1x8xf32>
    %27 = arith.cmpf ogt, %17, %26 : vector<1x8xf32>
    %cst_21 = arith.constant 0xFF800000 : f32
    %28 = vector.shape_cast %27 : vector<1x8xi1> to vector<1x8xi1>
    %29 = vector.broadcast %28 : vector<1x8xi1> to vector<8x8xi1>
    %30 = vector.broadcast %cst_21 : f32 to vector<8x8xf32>
    %31 = arith.select %29, %25, %30 : vector<8x8xi1>, vector<8x8xf32>
    %c0_22 = arith.constant 0 : index
    %c0_23 = arith.constant 0 : index
    %c0_24 = arith.constant 0 : index
    %32 = vector.load %arg22[%c0_22, %c0_23, %c0_24] : memref<1x8x8xf32, #tpu.memory_space<vmem>>, vector<1x8x8xf32>
    %33 = vector.shape_cast %32 : vector<1x8x8xf32> to vector<8x8xf32>
    %34 = vector.shape_cast %31 : vector<8x8xf32> to vector<1x8x8xf32>
    tpu.vector_store %arg22[%c0_22, %c0_23, %c0_24], %34 {strides = array<i32>} : memref<1x8x8xf32, #tpu.memory_space<vmem>>, vector<1x8x8xf32>,
    %c0_25 = arith.constant 0 : index
    %c0_26 = arith.constant 0 : index
    %35 = vector.load %arg12[%c0_25, %c0_26] : memref<128x512xf32, #tpu.memory_space<vmem>>, vector<128x512xf32>
    %cst_27 = arith.constant dense<0.000000e+00> : vector<8x512xf32>
    %36 = tpu.matmul %13, %35, %cst_27 {dimension_numbers = #tpu.dot_dimension_numbers<[1], [0], [0], [1], [0, 0, 1, 1], [], []>} : vector<8x128xf32>, vector<128x512xf32>, vector<8x512xf32> -> vector<8x512xf32>
    %c0_28 = arith.constant 0 : index
    %c0_29 = arith.constant 0 : index
    %37 = vector.load %arg13[%c0_28, %c0_29] : memref<1x512xf32, #tpu.memory_space<vmem>>, vector<1x512xf32>
    %38 = vector.broadcast %37 : vector<1x512xf32> to vector<8x512xf32>
    %39 = arith.addf %36, %38 : vector<8x512xf32>
    %40 = vector.shape_cast %39 : vector<8x512xf32> to vector<32x128xf32>
    %c0_30 = arith.constant 0 : index
    %c0_31 = arith.constant 0 : index
    %c0_32 = arith.constant 0 : index
    %41 = vector.load %arg5[%c0_30, %c0_31, %c0_32] : memref<1x8x128xf32, #tpu.memory_space<vmem>>, vector<1x8x128xf32>
    %42 = vector.shape_cast %41 : vector<1x8x128xf32> to vector<8x128xf32>
    %cst_33 = arith.constant dense<0.000000e+00> : vector<32x8xf32>
    %43 = tpu.matmul %40, %42, %cst_33 {dimension_numbers = #tpu.dot_dimension_numbers<[1], [1], [0], [0], [0, 0, 1, 0], [], []>} : vector<32x128xf32>, vector<8x128xf32>, vector<32x8xf32> -> vector<32x8xf32>
    %c0_34 = arith.constant 0 : index
    %c0_35 = arith.constant 0 : index
    %44 = vector.load %arg14[%c0_34, %c0_35] : memref<128x4xf32, #tpu.memory_space<vmem>>, vector<128x4xf32>
    %cst_36 = arith.constant dense<0.000000e+00> : vector<8x4xf32>
    %45 = tpu.matmul %13, %44, %cst_36 {dimension_numbers = #tpu.dot_dimension_numbers<[1], [0], [0], [1], [0, 0, 1, 1], [], []>} : vector<8x128xf32>, vector<128x4xf32>, vector<8x4xf32> -> vector<8x4xf32>
    %c0_37 = arith.constant 0 : index
    %c0_38 = arith.constant 0 : index
    %46 = vector.load %arg15[%c0_37, %c0_38] : memref<1x4xf32, #tpu.memory_space<vmem>>, vector<1x4xf32>
    %47 = vector.broadcast %46 : vector<1x4xf32> to vector<8x4xf32>
    %48 = arith.addf %45, %47 : vector<8x4xf32>
    %49 = vector.shape_cast %43 : vector<32x8xf32> to vector<8x4x8xf32>
    %50 = vector.shape_cast %48 : vector<8x4xf32> to vector<8x4x1xf32>
    %51 = vector.broadcast %50 : vector<8x4x1xf32> to vector<8x4x8xf32>
    %52 = arith.addf %49, %51 : vector<8x4x8xf32>
    %c0_39 = arith.constant 0 : index
    %c0_40 = arith.constant 0 : index
    %c0_41 = arith.constant 0 : index
    %c0_42 = arith.constant 0 : index
    %53 = vector.load %arg24[%c0_39, %c0_40, %c0_41, %c0_42] : memref<1x8x4x8xf32, #tpu.memory_space<vmem>>, vector<1x8x4x8xf32>
    %54 = vector.shape_cast %53 : vector<1x8x4x8xf32> to vector<8x4x8xf32>
    %55 = vector.shape_cast %52 : vector<8x4x8xf32> to vector<1x8x4x8xf32>
    tpu.vector_store %arg24[%c0_39, %c0_40, %c0_41, %c0_42], %55 {strides = array<i32>} : memref<1x8x4x8xf32, #tpu.memory_space<vmem>>, vector<1x8x4x8xf32>,
    %c0_43 = arith.constant 0 : index
    %c0_44 = arith.constant 0 : index
    %56 = vector.load %arg16[%c0_43, %c0_44] : memref<128x128xf32, #tpu.memory_space<vmem>>, vector<128x128xf32>
    %cst_45 = arith.constant dense<0.000000e+00> : vector<8x128xf32>
    %57 = tpu.matmul %14, %56, %cst_45 {dimension_numbers = #tpu.dot_dimension_numbers<[1], [0], [0], [1], [0, 0, 1, 1], [], []>} : vector<8x128xf32>, vector<128x128xf32>, vector<8x128xf32> -> vector<8x128xf32>
    %c0_46 = arith.constant 0 : index
    %c0_47 = arith.constant 0 : index
    %58 = vector.load %arg17[%c0_46, %c0_47] : memref<1x128xf32, #tpu.memory_space<vmem>>, vector<1x128xf32>
    %59 = vector.broadcast %58 : vector<1x128xf32> to vector<8x128xf32>
    %60 = arith.addf %57, %59 : vector<8x128xf32>
    %c0_48 = arith.constant 0 : index
    %c0_49 = arith.constant 0 : index
    %c0_50 = arith.constant 0 : index
    %61 = vector.load %arg6[%c0_48, %c0_49, %c0_50] : memref<1x8x128xf32, #tpu.memory_space<vmem>>, vector<1x8x128xf32>
    %62 = vector.shape_cast %61 : vector<1x8x128xf32> to vector<8x128xf32>
    %cst_51 = arith.constant dense<0.000000e+00> : vector<8x8xf32>
    %63 = tpu.matmul %60, %62, %cst_51 {dimension_numbers = #tpu.dot_dimension_numbers<[1], [1], [0], [0], [0, 0, 1, 0], [], []>} : vector<8x128xf32>, vector<8x128xf32>, vector<8x8xf32> -> vector<8x8xf32>
    %cst_52 = arith.constant 0.000000e+00 : f32
    %64 = vector.broadcast %cst_52 : f32 to vector<1x8xf32>
    %65 = arith.cmpf ogt, %17, %64 : vector<1x8xf32>
    %cst_53 = arith.constant 0xFF800000 : f32
    %66 = vector.shape_cast %65 : vector<1x8xi1> to vector<1x8xi1>
    %67 = vector.broadcast %66 : vector<1x8xi1> to vector<8x8xi1>
    %68 = vector.broadcast %cst_53 : f32 to vector<8x8xf32>
    %69 = arith.select %67, %63, %68 : vector<8x8xi1>, vector<8x8xf32>
    %c0_54 = arith.constant 0 : index
    %c0_55 = arith.constant 0 : index
    %c0_56 = arith.constant 0 : index
    %70 = vector.load %arg23[%c0_54, %c0_55, %c0_56] : memref<1x8x8xf32, #tpu.memory_space<vmem>>, vector<1x8x8xf32>
    %71 = vector.shape_cast %70 : vector<1x8x8xf32> to vector<8x8xf32>
    %72 = vector.shape_cast %69 : vector<8x8xf32> to vector<1x8x8xf32>
    tpu.vector_store %arg23[%c0_54, %c0_55, %c0_56], %72 {strides = array<i32>} : memref<1x8x8xf32, #tpu.memory_space<vmem>>, vector<1x8x8xf32>,
    %c0_57 = arith.constant 0 : index
    %c0_58 = arith.constant 0 : index
    %73 = vector.load %arg18[%c0_57, %c0_58] : memref<128x384xf32, #tpu.memory_space<vmem>>, vector<128x384xf32>
    %cst_59 = arith.constant dense<0.000000e+00> : vector<8x384xf32>
    %74 = tpu.matmul %15, %73, %cst_59 {dimension_numbers = #tpu.dot_dimension_numbers<[1], [0], [0], [1], [0, 0, 1, 1], [], []>} : vector<8x128xf32>, vector<128x384xf32>, vector<8x384xf32> -> vector<8x384xf32>
    %c0_60 = arith.constant 0 : index
    %c0_61 = arith.constant 0 : index
    %75 = vector.load %arg19[%c0_60, %c0_61] : memref<1x384xf32, #tpu.memory_space<vmem>>, vector<1x384xf32>
    %76 = vector.broadcast %75 : vector<1x384xf32> to vector<8x384xf32>
    %77 = arith.addf %74, %76 : vector<8x384xf32>
    %78 = vector.shape_cast %77 : vector<8x384xf32> to vector<24x128xf32>
    %c0_62 = arith.constant 0 : index
    %c0_63 = arith.constant 0 : index
    %c0_64 = arith.constant 0 : index
    %79 = vector.load %arg7[%c0_62, %c0_63, %c0_64] : memref<1x8x128xf32, #tpu.memory_space<vmem>>, vector<1x8x128xf32>
    %80 = vector.shape_cast %79 : vector<1x8x128xf32> to vector<8x128xf32>
    %cst_65 = arith.constant dense<0.000000e+00> : vector<24x8xf32>
    %81 = tpu.matmul %78, %80, %cst_65 {dimension_numbers = #tpu.dot_dimension_numbers<[1], [1], [0], [0], [0, 0, 1, 0], [], []>} : vector<24x128xf32>, vector<8x128xf32>, vector<24x8xf32> -> vector<24x8xf32>
    %c0_66 = arith.constant 0 : index
    %c0_67 = arith.constant 0 : index
    %82 = vector.load %arg20[%c0_66, %c0_67] : memref<128x3xf32, #tpu.memory_space<vmem>>, vector<128x3xf32>
    %cst_68 = arith.constant dense<0.000000e+00> : vector<8x3xf32>
    %83 = tpu.matmul %15, %82, %cst_68 {dimension_numbers = #tpu.dot_dimension_numbers<[1], [0], [0], [1], [0, 0, 1, 1], [], []>} : vector<8x128xf32>, vector<128x3xf32>, vector<8x3xf32> -> vector<8x3xf32>
    %c0_69 = arith.constant 0 : index
    %c0_70 = arith.constant 0 : index
    %84 = vector.load %arg21[%c0_69, %c0_70] : memref<1x3xf32, #tpu.memory_space<vmem>>, vector<1x3xf32>
    %85 = vector.broadcast %84 : vector<1x3xf32> to vector<8x3xf32>
    %86 = arith.addf %83, %85 : vector<8x3xf32>
    %87 = vector.shape_cast %81 : vector<24x8xf32> to vector<8x3x8xf32>
    %88 = vector.shape_cast %86 : vector<8x3xf32> to vector<8x3x1xf32>
    %89 = vector.broadcast %88 : vector<8x3x1xf32> to vector<8x3x8xf32>
    %90 = arith.addf %87, %89 : vector<8x3x8xf32>
    %c0_71 = arith.constant 0 : index
    %c0_72 = arith.constant 0 : index
    %c0_73 = arith.constant 0 : index
    %c0_74 = arith.constant 0 : index
    %91 = vector.load %arg25[%c0_71, %c0_72, %c0_73, %c0_74] : memref<1x8x3x8xf32, #tpu.memory_space<vmem>>, vector<1x8x3x8xf32>
    %92 = vector.shape_cast %91 : vector<1x8x3x8xf32> to vector<8x3x8xf32>
    %93 = vector.shape_cast %90 : vector<8x3x8xf32> to vector<1x8x3x8xf32>
    tpu.vector_store %arg25[%c0_71, %c0_72, %c0_73, %c0_74], %93 {strides = array<i32>} : memref<1x8x3x8xf32, #tpu.memory_space<vmem>>, vector<1x8x3x8xf32>,
    return
  }
  func.func @transform_0(%arg0: i32, %arg1: i32) -> (i32, i32, i32) {
    %c0_i32 = arith.constant 0 : i32
    %c0_i32_0 = arith.constant 0 : i32
    return %arg0, %arg1, %c0_i32 : i32, i32, i32
  }
  func.func @transform_1(%arg0: i32, %arg1: i32) -> (i32, i32, i32) {
    %c0_i32 = arith.constant 0 : i32
    %c0_i32_0 = arith.constant 0 : i32
    %c0_i32_1 = arith.constant 0 : i32
    return %arg0, %c0_i32, %c0_i32_0 : i32, i32, i32
  }
  func.func @transform_2(%arg0: i32, %arg1: i32) -> (i32, i32, i32) {
    %c0_i32 = arith.constant 0 : i32
    %c0_i32_0 = arith.constant 0 : i32
    %c0_i32_1 = arith.constant 0 : i32
    return %arg0, %c0_i32, %c0_i32_0 : i32, i32, i32
  }
  func.func @transform_3(%arg0: i32, %arg1: i32) -> (i32, i32, i32) {
    %c0_i32 = arith.constant 0 : i32
    %c0_i32_0 = arith.constant 0 : i32
    %c0_i32_1 = arith.constant 0 : i32
    return %arg0, %c0_i32, %c0_i32_0 : i32, i32, i32
  }
  func.func @transform_4(%arg0: i32, %arg1: i32) -> (i32, i32, i32) {
    %c0_i32 = arith.constant 0 : i32
    %c0_i32_0 = arith.constant 0 : i32
    %c0_i32_1 = arith.constant 0 : i32
    return %arg0, %c0_i32, %c0_i32_0 : i32, i32, i32
  }
  func.func @transform_5(%arg0: i32, %arg1: i32) -> (i32, i32, i32) {
    %c0_i32 = arith.constant 0 : i32
    %c0_i32_0 = arith.constant 0 : i32
    %c0_i32_1 = arith.constant 0 : i32
    return %arg0, %c0_i32, %c0_i32_0 : i32, i32, i32
  }
  func.func @transform_6(%arg0: i32, %arg1: i32) -> (i32, i32) {
    %c0_i32 = arith.constant 0 : i32
    %c0_i32_0 = arith.constant 0 : i32
    %c0_i32_1 = arith.constant 0 : i32
    return %c0_i32, %c0_i32_0 : i32, i32
  }
  func.func @transform_7(%arg0: i32, %arg1: i32) -> (i32, i32) {
    %c0_i32 = arith.constant 0 : i32
    %c0_i32_0 = arith.constant 0 : i32
    %c0_i32_1 = arith.constant 0 : i32
    return %c0_i32, %c0_i32_0 : i32, i32
  }
  func.func @transform_8(%arg0: i32, %arg1: i32) -> (i32, i32) {
    %c0_i32 = arith.constant 0 : i32
    %c0_i32_0 = arith.constant 0 : i32
    %c0_i32_1 = arith.constant 0 : i32
    return %c0_i32, %c0_i32_0 : i32, i32
  }
  func.func @transform_9(%arg0: i32, %arg1: i32) -> (i32, i32) {
    %c0_i32 = arith.constant 0 : i32
    %c0_i32_0 = arith.constant 0 : i32
    %c0_i32_1 = arith.constant 0 : i32
    return %c0_i32, %c0_i32_0 : i32, i32
  }
  func.func @transform_10(%arg0: i32, %arg1: i32) -> (i32, i32) {
    %c0_i32 = arith.constant 0 : i32
    %c0_i32_0 = arith.constant 0 : i32
    %c0_i32_1 = arith.constant 0 : i32
    return %c0_i32, %c0_i32_0 : i32, i32
  }
  func.func @transform_11(%arg0: i32, %arg1: i32) -> (i32, i32) {
    %c0_i32 = arith.constant 0 : i32
    %c0_i32_0 = arith.constant 0 : i32
    %c0_i32_1 = arith.constant 0 : i32
    return %c0_i32, %c0_i32_0 : i32, i32
  }
  func.func @transform_12(%arg0: i32, %arg1: i32) -> (i32, i32) {
    %c0_i32 = arith.constant 0 : i32
    %c0_i32_0 = arith.constant 0 : i32
    %c0_i32_1 = arith.constant 0 : i32
    return %c0_i32, %c0_i32_0 : i32, i32
  }
  func.func @transform_13(%arg0: i32, %arg1: i32) -> (i32, i32) {
    %c0_i32 = arith.constant 0 : i32
    %c0_i32_0 = arith.constant 0 : i32
    %c0_i32_1 = arith.constant 0 : i32
    return %c0_i32, %c0_i32_0 : i32, i32
  }
  func.func @transform_14(%arg0: i32, %arg1: i32) -> (i32, i32) {
    %c0_i32 = arith.constant 0 : i32
    %c0_i32_0 = arith.constant 0 : i32
    %c0_i32_1 = arith.constant 0 : i32
    return %c0_i32, %c0_i32_0 : i32, i32
  }
  func.func @transform_15(%arg0: i32, %arg1: i32) -> (i32, i32) {
    %c0_i32 = arith.constant 0 : i32
    %c0_i32_0 = arith.constant 0 : i32
    %c0_i32_1 = arith.constant 0 : i32
    return %c0_i32, %c0_i32_0 : i32, i32
  }
  func.func @transform_16(%arg0: i32, %arg1: i32) -> (i32, i32) {
    %c0_i32 = arith.constant 0 : i32
    %c0_i32_0 = arith.constant 0 : i32
    %c0_i32_1 = arith.constant 0 : i32
    return %c0_i32, %c0_i32_0 : i32, i32
  }
  func.func @transform_17(%arg0: i32, %arg1: i32) -> (i32, i32) {
    %c0_i32 = arith.constant 0 : i32
    %c0_i32_0 = arith.constant 0 : i32
    %c0_i32_1 = arith.constant 0 : i32
    return %c0_i32, %c0_i32_0 : i32, i32
  }
  func.func @transform_18(%arg0: i32, %arg1: i32) -> (i32, i32) {
    %c0_i32 = arith.constant 0 : i32
    %c0_i32_0 = arith.constant 0 : i32
    %c0_i32_1 = arith.constant 0 : i32
    return %c0_i32, %c0_i32_0 : i32, i32
  }
  func.func @transform_19(%arg0: i32, %arg1: i32) -> (i32, i32) {
    %c0_i32 = arith.constant 0 : i32
    %c0_i32_0 = arith.constant 0 : i32
    %c0_i32_1 = arith.constant 0 : i32
    return %c0_i32, %c0_i32_0 : i32, i32
  }
  func.func @transform_20(%arg0: i32, %arg1: i32) -> (i32, i32, i32) {
    %c0_i32 = arith.constant 0 : i32
    %c0_i32_0 = arith.constant 0 : i32
    return %arg0, %arg1, %c0_i32 : i32, i32, i32
  }
  func.func @transform_21(%arg0: i32, %arg1: i32) -> (i32, i32, i32) {
    %c0_i32 = arith.constant 0 : i32
    %c0_i32_0 = arith.constant 0 : i32
    return %arg0, %arg1, %c0_i32 : i32, i32, i32
  }
  func.func @transform_22(%arg0: i32, %arg1: i32) -> (i32, i32, i32, i32) {
    %c0_i32 = arith.constant 0 : i32
    %c0_i32_0 = arith.constant 0 : i32
    %c0_i32_1 = arith.constant 0 : i32
    return %arg0, %arg1, %c0_i32, %c0_i32_0 : i32, i32, i32, i32
  }
  func.func @transform_23(%arg0: i32, %arg1: i32) -> (i32, i32, i32, i32) {
    %c0_i32 = arith.constant 0 : i32
    %c0_i32_0 = arith.constant 0 : i32
    %c0_i32_1 = arith.constant 0 : i32
    return %arg0, %arg1, %c0_i32, %c0_i32_0 : i32, i32, i32, i32
  }
}

</mosaic_0001>

<llo_original>
// kernel: tpu_custom_call.1
$region0: #{tpu_custom_call.1}
  #allocation0 [shape = 'u32[]', space=smem, size = 0x4, offset = 0x4, fixed_abs, tag = 'smem constant byte address 0x4 - core index']
  #allocation1 [shape = 'u32[144,128]{1,0:T(1,128)}', space=vmem, size = 0x12000, scoped, tag = 'internal scratch']
  %s0 = inlined_call_operand.hbm [shape: f32[2,8,32], index: 0, kind: input, shape index: {}]
  %s1 = inlined_call_operand.hbm [shape: f32[2,1,8], index: 1, kind: input, shape index: {}]
  %s2 = inlined_call_operand.hbm [shape: f32[2,8,128], index: 2, kind: input, shape index: {}]
  %s3 = inlined_call_operand.hbm [shape: f32[2,8,128], index: 3, kind: input, shape index: {}]
  %s4 = inlined_call_operand.hbm [shape: f32[2,8,128], index: 4, kind: input, shape index: {}]
  %s5 = inlined_call_operand.hbm [shape: f32[2,8,128], index: 5, kind: input, shape index: {}]
  %s6 = inlined_call_operand.hbm [shape: f32[32,512], index: 6, kind: input, shape index: {}]
  %s7 = inlined_call_operand.hbm [shape: f32[1,512], index: 7, kind: input, shape index: {}]
  %s8 = inlined_call_operand.hbm [shape: f32[128,128], index: 8, kind: input, shape index: {}]
  %s9 = inlined_call_operand.hbm [shape: f32[1,128], index: 9, kind: input, shape index: {}]
  %s10 = inlined_call_operand.hbm [shape: f32[128,512], index: 10, kind: input, shape index: {}]
  %s11 = inlined_call_operand.hbm [shape: f32[1,512], index: 11, kind: input, shape index: {}]
  %s12 = inlined_call_operand.hbm [shape: f32[128,4], index: 12, kind: input, shape index: {}]
  %s13 = inlined_call_operand.hbm [shape: f32[1,4], index: 13, kind: input, shape index: {}]
  %s14 = inlined_call_operand.hbm [shape: f32[128,128], index: 14, kind: input, shape index: {}]
  %s15 = inlined_call_operand.hbm [shape: f32[1,128], index: 15, kind: input, shape index: {}]
  %s16 = inlined_call_operand.hbm [shape: f32[128,384], index: 16, kind: input, shape index: {}]
  %s17 = inlined_call_operand.hbm [shape: f32[1,384], index: 17, kind: input, shape index: {}]
  %s18 = inlined_call_operand.hbm [shape: f32[128,3], index: 18, kind: input, shape index: {}]
  %s19 = inlined_call_operand.hbm [shape: f32[1,3], index: 19, kind: input, shape index: {}]
  %s20 = inlined_call_operand.hbm [shape: f32[2,8,8], index: 20, kind: output, shape index: {0}]
  %s21 = inlined_call_operand.hbm [shape: f32[2,8,8], index: 21, kind: output, shape index: {1}]
  %s22 = inlined_call_operand.hbm [shape: f32[2,8,4,8], index: 22, kind: output, shape index: {2}]
  %s23 = inlined_call_operand.hbm [shape: f32[2,8,3,8], index: 23, kind: output, shape index: {3}]
  %24 = xla_tuple %s20, %s21, %s22, %s23
  %s25 = sld [smem:[#allocation0]]
  $region217: #{tpu_custom_call.1} parent=0
    _
  %s27 = ssub.s32 1, %s25
  %s28 = scalar_select 0, %s27, %s25
  $region1: #{tpu_custom_call.1} parent=0
    #allocation2 [shape = 'u8[8192]{0}', space=vmem, size = 0x2000, scoped, tag = 'input window, operand 0']
    #allocation3 [shape = 's32[2]{0}', space=sflag, size = 0x8, scoped, tag = 'scoped memory for tpu_custom_call.1']
    #allocation4 [shape = 's32[2]{0}', space=sflag, size = 0x8, scoped, tag = 'scoped memory for tpu_custom_call.1']
    #allocation5 [shape = 'u8[1024]{0}', space=vmem, size = 0x400, scoped, tag = 'input window, operand 1']
    #allocation6 [shape = 's32[2]{0}', space=sflag, size = 0x8, scoped, tag = 'scoped memory for tpu_custom_call.1']
    #allocation7 [shape = 'u8[8192]{0}', space=vmem, size = 0x2000, scoped, tag = 'input window, operand 2']
    #allocation8 [shape = 'u8[8192]{0}', space=vmem, size = 0x2000, scoped, tag = 'input window, operand 3']
    #allocation9 [shape = 's32[2]{0}', space=sflag, size = 0x8, scoped, tag = 'scoped memory for tpu_custom_call.1']
    #allocation10 [shape = 'u8[8192]{0}', space=vmem, size = 0x2000, scoped, tag = 'input window, operand 4']
    #allocation11 [shape = 'u8[8192]{0}', space=vmem, size = 0x2000, scoped, tag = 'input window, operand 5']
    #allocation12 [shape = 's32[2]{0}', space=sflag, size = 0x8, scoped, tag = 'scoped memory for tpu_custom_call.1']
    #allocation13 [shape = 'u8[65536]{0}', space=vmem, size = 0x10000, scoped, tag = 'input window, operand 6, single buffered']
    #allocation14 [shape = 'u8[2048]{0}', space=vmem, size = 0x800, scoped, tag = 'input window, operand 7, single buffered']
    #allocation15 [shape = 's32[1]{0}', space=sflag, size = 0x4, scoped, tag = 'scoped memory for tpu_custom_call.1']
    #allocation16 [shape = 'u8[65536]{0}', space=vmem, size = 0x10000, scoped, tag = 'input window, operand 8, single buffered']
    #allocation17 [shape = 'u8[512]{0}', space=vmem, size = 0x400, scoped, tag = 'input window, operand 9, single buffered']
    #allocation18 [shape = 's32[1]{0}', space=sflag, size = 0x4, scoped, tag = 'scoped memory for tpu_custom_call.1']
    #allocation19 [shape = 'u8[262144]{0}', space=vmem, size = 0x40000, scoped, tag = 'input window, operand 10, single buffered']
    #allocation20 [shape = 'u8[2048]{0}', space=vmem, size = 0x800, scoped, tag = 'input window, operand 11, single buffered']
    #allocation21 [shape = 's32[1]{0}', space=sflag, size = 0x4, scoped, tag = 'scoped memory for tpu_custom_call.1']
    #allocation22 [shape = 'u8[65536]{0}', space=vmem, size = 0x10000, scoped, tag = 'input window, operand 12, single buffered']
    #allocation23 [shape = 'u8[512]{0}', space=vmem, size = 0x400, scoped, tag = 'input window, operand 13, single buffered']
    #allocation24 [shape = 's32[1]{0}', space=sflag, size = 0x4, scoped, tag = 'scoped memory for tpu_custom_call.1']
    #allocation25 [shape = 'u8[65536]{0}', space=vmem, size = 0x10000, scoped, tag = 'input window, operand 14, single buffered']
    #allocation26 [shape = 'u8[512]{0}', space=vmem, size = 0x400, scoped, tag = 'input window, operand 15, single buffered']
    #allocation27 [shape = 's32[1]{0}', space=sflag, size = 0x4, scoped, tag = 'scoped memory for tpu_custom_call.1']
    #allocation28 [shape = 'u8[196608]{0}', space=vmem, size = 0x30000, scoped, tag = 'input window, operand 16, single buffered']
    #allocation29 [shape = 'u8[1536]{0}', space=vmem, size = 0x800, scoped, tag = 'input window, operand 17, single buffered']
    #allocation30 [shape = 's32[1]{0}', space=sflag, size = 0x4, scoped, tag = 'scoped memory for tpu_custom_call.1']
    #allocation31 [shape = 'u8[65536]{0}', space=vmem, size = 0x10000, scoped, tag = 'input window, operand 18, single buffered']
    #allocation32 [shape = 'u8[512]{0}', space=vmem, size = 0x400, scoped, tag = 'input window, operand 19, single buffered']
    #allocation33 [shape = 's32[1]{0}', space=sflag, size = 0x4, scoped, tag = 'scoped memory for tpu_custom_call.1']
    #allocation34 [shape = 'u8[8192]{0}', space=vmem, size = 0x2000, scoped, tag = 'output window, operand 0']
    #allocation35 [shape = 'u8[8192]{0}', space=vmem, size = 0x2000, scoped, tag = 'output window, operand 1']
    #allocation36 [shape = 's32[2]{0}', space=sflag, size = 0x8, scoped, tag = 'scoped memory for tpu_custom_call.1']
    #allocation37 [shape = 'u8[32768]{0}', space=vmem, size = 0x8000, scoped, tag = 'output window, operand 2']
    #allocation38 [shape = 'u8[32768]{0}', space=vmem, size = 0x8000, scoped, tag = 'output window, operand 3']
    #allocation39 [shape = 's32[2]{0}', space=sflag, size = 0x8, scoped, tag = 'scoped memory for tpu_custom_call.1']
    %29 = vsyncpa [#allocation3], 0
    %s30 = scalar_lea.sflag [#allocation3], 1
    %31 = vsyncpa %s30, 0
    %32 = vsyncpa [#allocation6], 0
    %s33 = scalar_lea.sflag [#allocation6], 1
    %34 = vsyncpa %s33, 0
    %35 = vsyncpa [#allocation9], 0
    %s36 = scalar_lea.sflag [#allocation9], 1
    %37 = vsyncpa %s36, 0
    %38 = vsyncpa [#allocation12], 0
    %s39 = scalar_lea.sflag [#allocation12], 1
    %40 = vsyncpa %s39, 0
    %41 = vsyncpa [#allocation15], 0
    %42 = vsyncpa [#allocation18], 0
    %43 = vsyncpa [#allocation21], 0
    %44 = vsyncpa [#allocation24], 0
    %45 = vsyncpa [#allocation27], 0
    %46 = vsyncpa [#allocation30], 0
    %47 = vsyncpa [#allocation33], 0
    %48 = vsyncpa [#allocation4], 0
    %s49 = scalar_lea.sflag [#allocation4], 1
    %50 = vsyncpa %s49, 0
    %51 = vsyncpa [#allocation36], 0
    %s52 = scalar_lea.sflag [#allocation36], 1
    %53 = vsyncpa %s52, 0
    %54 = vsyncpa [#allocation39], 0
    %s55 = scalar_lea.sflag [#allocation39], 1
    %56 = vsyncpa %s55, 0
    loop: start=0, step=1, limit=4
    $region2: #{tpu_custom_call.1} parent=1 // loop_pre_header
      _
    $region3: #{tpu_custom_call.1} parent=1 // loop_header
      %s58 = sphi 0, %s62
      %p59 = scmp.ge.s32.totalorder %s58, 4
      %s65 = sphi 0, %s77
      %s66 = sphi 0, %s73
      %s67 = sphi 0, %s65
      %s68 = sphi 0, %s66
      %s69 = sphi 0, %s67
      %s70 = sphi 0, %s68
      %s82 = sphi 0, %s84
      %s85 = sphi 0, %s82
      %s86 = sphi 0, %s85
      %s102 = sphi 0, %s86
      %s108 = sphi 0, %s110
      %s111 = sphi 0, %s108
      %s112 = sphi 0, %s111
      %s128 = sphi 0, %s112
      %s134 = sphi 0, %s136
      %s137 = sphi 0, %s134
      %s138 = sphi 0, %s137
      %s154 = sphi 0, %s138
      %s160 = sphi 0, %s162
      %s163 = sphi 0, %s160
      %s164 = sphi 0, %s163
      %s180 = sphi 0, %s164
      %s186 = sphi 0, %s188
      %s189 = sphi 0, %s186
      %s190 = sphi 0, %s189
      %s206 = sphi 0, %s190
      %s212 = sphi 0, %s214
      %s215 = sphi 0, %s212
      %s216 = sphi 0, %s215
      %s232 = sphi 0, %s216
      %s236 = sphi 0, %s236
      %s238 = sphi 0, %s236
      %s239 = sphi 0, %s238
      %s253 = sphi 0, %s239
      %s257 = sphi 0, %s257
      %s259 = sphi 0, %s257
      %s260 = sphi 0, %s259
      %s274 = sphi 0, %s260
      %s278 = sphi 0, %s278
      %s280 = sphi 0, %s278
      %s281 = sphi 0, %s280
      %s295 = sphi 0, %s281
      %s299 = sphi 0, %s299
      %s301 = sphi 0, %s299
      %s302 = sphi 0, %s301
      %s316 = sphi 0, %s302
      %s320 = sphi 0, %s320
      %s322 = sphi 0, %s320
      %s323 = sphi 0, %s322
      %s337 = sphi 0, %s323
      %s341 = sphi 0, %s341
      %s343 = sphi 0, %s341
      %s344 = sphi 0, %s343
      %s358 = sphi 0, %s344
      %s362 = sphi 0, %s362
      %s364 = sphi 0, %s362
      %s365 = sphi 0, %s364
      %s379 = sphi 0, %s365
      %s383 = sphi 0, %s383
      %s385 = sphi 0, %s383
      %s386 = sphi 0, %s385
      %s400 = sphi 0, %s386
      %s404 = sphi 0, %s404
      %s406 = sphi 0, %s404
      %s407 = sphi 0, %s406
      %s421 = sphi 0, %s407
      %s425 = sphi 0, %s425
      %s427 = sphi 0, %s425
      %s428 = sphi 0, %s427
      %s442 = sphi 0, %s428
      %s446 = sphi 0, %s446
      %s448 = sphi 0, %s446
      %s449 = sphi 0, %s448
      %s463 = sphi 0, %s449
      %s467 = sphi 0, %s467
      %s469 = sphi 0, %s467
      %s470 = sphi 0, %s469
      %s484 = sphi 0, %s470
      %s488 = sphi 0, %s488
      %s490 = sphi 0, %s488
      %s491 = sphi 0, %s490
      %s505 = sphi 0, %s491
      %s509 = sphi 0, %s509
      %s511 = sphi 0, %s509
      %s512 = sphi 0, %s511
      %s526 = sphi 0, %s512
      %s534 = sphi 0, %s536
      %s537 = sphi 0, %s534
      %s538 = sphi 0, %s537
      %s554 = sphi 0, %s538
      %s562 = sphi 0, %s564
      %s565 = sphi 0, %s562
      %s566 = sphi 0, %s565
      %s582 = sphi 0, %s566
      %s590 = sphi 0, %s592
      %s593 = sphi 0, %s590
      %s594 = sphi 0, %s593
      %s610 = sphi 0, %s594
      %s618 = sphi 0, %s620
      %s621 = sphi 0, %s618
      %s622 = sphi 0, %s621
      %s638 = sphi 0, %s622
    $region4: #{tpu_custom_call.1} parent=1 // loop_header_branch
      %61 = sbr.rel (%p59) target = $region8
    $region5: #{tpu_custom_call.1} parent=1 // loop_body
      %s63 = ssub.s32 %s58, 1
      %s64 = ssub.s32 %s58, 2
      %s71 = sadd.s32 1, %s66
      %p72 = scmp.ge.s32.totalorder %s71, 1
      %s73 = scalar_select %p72, 0, %s71
      %s74 = sadd.s32 1, %s65
      %s75 = scalar_select %p72, %s74, %s65
      %p76 = scmp.ge.s32.totalorder %s75, 2
      %s77 = scalar_select %p76, 0, %s75
      %s78 = ssub.s32 %s65, %s77
      %s79 = ssub.s32 %s66, %s73
      %s80 = sor.u32 %s78, %s79
      %p81 = scmp.eq.s32.totalorder %s80, 0
      %s83 = sadd.s32 %s82, 1
      %s84 = scalar_select %p81, %s82, %s83
      %p87 = pneg %p81
      %p88 = scmp.eq.s32.totalorder %s58, 1
      %p89 = por %p87, %p88
      %p90 = scmp.ne.s32.totalorder %s82, %s85
      %p91 = scmp.eq.s32.totalorder %s58, 0
      %p92 = por %p90, %p91
      %p93 = scmp.ne.s32.totalorder %s82, %s85
      %p94 = scmp.eq.s32.totalorder %s63, 1
      %p95 = por %p93, %p94
      %p96 = scmp.ne.s32.totalorder %s85, %s86
      %p97 = scmp.eq.s32.totalorder %s63, 0
      %p98 = por %p96, %p97
      %p99 = scmp.ne.s32.totalorder %s85, %s86
      %p100 = scmp.eq.s32.totalorder %s64, 1
      %p101 = por %p99, %p100
      %p103 = scmp.ne.s32.totalorder %s86, %s102
      %p104 = scmp.eq.s32.totalorder %s64, 0
      %p105 = por %p103, %p104
      %s106 = ssub.s32 %s65, %s77
      %p107 = scmp.eq.s32.totalorder %s106, 0
      %s109 = sadd.s32 %s108, 1
      %s110 = scalar_select %p107, %s108, %s109
      %p113 = pneg %p107
      %p114 = scmp.eq.s32.totalorder %s58, 1
      %p115 = por %p113, %p114
      %p116 = scmp.ne.s32.totalorder %s108, %s111
      %p117 = scmp.eq.s32.totalorder %s58, 0
      %p118 = por %p116, %p117
      %p119 = scmp.ne.s32.totalorder %s108, %s111
      %p120 = scmp.eq.s32.totalorder %s63, 1
      %p121 = por %p119, %p120
      %p122 = scmp.ne.s32.totalorder %s111, %s112
      %p123 = scmp.eq.s32.totalorder %s63, 0
      %p124 = por %p122, %p123
      %p125 = scmp.ne.s32.totalorder %s111, %s112
      %p126 = scmp.eq.s32.totalorder %s64, 1
      %p127 = por %p125, %p126
      %p129 = scmp.ne.s32.totalorder %s112, %s128
      %p130 = scmp.eq.s32.totalorder %s64, 0
      %p131 = por %p129, %p130
      %s132 = ssub.s32 %s65, %s77
      %p133 = scmp.eq.s32.totalorder %s132, 0
      %s135 = sadd.s32 %s134, 1
      %s136 = scalar_select %p133, %s134, %s135
      %p139 = pneg %p133
      %p140 = scmp.eq.s32.totalorder %s58, 1
      %p141 = por %p139, %p140
      %p142 = scmp.ne.s32.totalorder %s134, %s137
      %p143 = scmp.eq.s32.totalorder %s58, 0
      %p144 = por %p142, %p143
      %p145 = scmp.ne.s32.totalorder %s134, %s137
      %p146 = scmp.eq.s32.totalorder %s63, 1
      %p147 = por %p145, %p146
      %p148 = scmp.ne.s32.totalorder %s137, %s138
      %p149 = scmp.eq.s32.totalorder %s63, 0
      %p150 = por %p148, %p149
      %p151 = scmp.ne.s32.totalorder %s137, %s138
      %p152 = scmp.eq.s32.totalorder %s64, 1
      %p153 = por %p151, %p152
      %p155 = scmp.ne.s32.totalorder %s138, %s154
      %p156 = scmp.eq.s32.totalorder %s64, 0
      %p157 = por %p155, %p156
      %s158 = ssub.s32 %s65, %s77
      %p159 = scmp.eq.s32.totalorder %s158, 0
      %s161 = sadd.s32 %s160, 1
      %s162 = scalar_select %p159, %s160, %s161
      %p165 = pneg %p159
      %p166 = scmp.eq.s32.totalorder %s58, 1
      %p167 = por %p165, %p166
      %p168 = scmp.ne.s32.totalorder %s160, %s163
      %p169 = scmp.eq.s32.totalorder %s58, 0
      %p170 = por %p168, %p169
      %p171 = scmp.ne.s32.totalorder %s160, %s163
      %p172 = scmp.eq.s32.totalorder %s63, 1
      %p173 = por %p171, %p172
      %p174 = scmp.ne.s32.totalorder %s163, %s164
      %p175 = scmp.eq.s32.totalorder %s63, 0
      %p176 = por %p174, %p175
      %p177 = scmp.ne.s32.totalorder %s163, %s164
      %p178 = scmp.eq.s32.totalorder %s64, 1
      %p179 = por %p177, %p178
      %p181 = scmp.ne.s32.totalorder %s164, %s180
      %p182 = scmp.eq.s32.totalorder %s64, 0
      %p183 = por %p181, %p182
      %s184 = ssub.s32 %s65, %s77
      %p185 = scmp.eq.s32.totalorder %s184, 0
      %s187 = sadd.s32 %s186, 1
      %s188 = scalar_select %p185, %s186, %s187
      %p191 = pneg %p185
      %p192 = scmp.eq.s32.totalorder %s58, 1
      %p193 = por %p191, %p192
      %p194 = scmp.ne.s32.totalorder %s186, %s189
      %p195 = scmp.eq.s32.totalorder %s58, 0
      %p196 = por %p194, %p195
      %p197 = scmp.ne.s32.totalorder %s186, %s189
      %p198 = scmp.eq.s32.totalorder %s63, 1
      %p199 = por %p197, %p198
      %p200 = scmp.ne.s32.totalorder %s189, %s190
      %p201 = scmp.eq.s32.totalorder %s63, 0
      %p202 = por %p200, %p201
      %p203 = scmp.ne.s32.totalorder %s189, %s190
      %p204 = scmp.eq.s32.totalorder %s64, 1
      %p205 = por %p203, %p204
      %p207 = scmp.ne.s32.totalorder %s190, %s206
      %p208 = scmp.eq.s32.totalorder %s64, 0
      %p209 = por %p207, %p208
      %s210 = ssub.s32 %s65, %s77
      %p211 = scmp.eq.s32.totalorder %s210, 0
      %s213 = sadd.s32 %s212, 1
      %s214 = scalar_select %p211, %s212, %s213
      %p217 = pneg %p211
      %p218 = scmp.eq.s32.totalorder %s58, 1
      %p219 = por %p217, %p218
      %p220 = scmp.ne.s32.totalorder %s212, %s215
      %p221 = scmp.eq.s32.totalorder %s58, 0
      %p222 = por %p220, %p221
      %p223 = scmp.ne.s32.totalorder %s212, %s215
      %p224 = scmp.eq.s32.totalorder %s63, 1
      %p225 = por %p223, %p224
      %p226 = scmp.ne.s32.totalorder %s215, %s216
      %p227 = scmp.eq.s32.totalorder %s63, 0
      %p228 = por %p226, %p227
      %p229 = scmp.ne.s32.totalorder %s215, %s216
      %p230 = scmp.eq.s32.totalorder %s64, 1
      %p231 = por %p229, %p230
      %p233 = scmp.ne.s32.totalorder %s216, %s232
      %p234 = scmp.eq.s32.totalorder %s64, 0
      %p235 = por %p233, %p234
      %s237 = sadd.s32 %s236, 1
      %p240 = scmp.eq.s32.totalorder %s58, 1
      %p241 = scmp.ne.s32.totalorder %s236, %s238
      %p242 = scmp.eq.s32.totalorder %s58, 0
      %p243 = por %p241, %p242
      %p244 = scmp.ne.s32.totalorder %s236, %s238
      %p245 = scmp.eq.s32.totalorder %s63, 1
      %p246 = por %p244, %p245
      %p247 = scmp.ne.s32.totalorder %s238, %s239
      %p248 = scmp.eq.s32.totalorder %s63, 0
      %p249 = por %p247, %p248
      %p250 = scmp.ne.s32.totalorder %s238, %s239
      %p251 = scmp.eq.s32.totalorder %s64, 1
      %p252 = por %p250, %p251
      %p254 = scmp.ne.s32.totalorder %s239, %s253
      %p255 = scmp.eq.s32.totalorder %s64, 0
      %p256 = por %p254, %p255
      %s258 = sadd.s32 %s257, 1
      %p261 = scmp.eq.s32.totalorder %s58, 1
      %p262 = scmp.ne.s32.totalorder %s257, %s259
      %p263 = scmp.eq.s32.totalorder %s58, 0
      %p264 = por %p262, %p263
      %p265 = scmp.ne.s32.totalorder %s257, %s259
      %p266 = scmp.eq.s32.totalorder %s63, 1
      %p267 = por %p265, %p266
      %p268 = scmp.ne.s32.totalorder %s259, %s260
      %p269 = scmp.eq.s32.totalorder %s63, 0
      %p270 = por %p268, %p269
      %p271 = scmp.ne.s32.totalorder %s259, %s260
      %p272 = scmp.eq.s32.totalorder %s64, 1
      %p273 = por %p271, %p272
      %p275 = scmp.ne.s32.totalorder %s260, %s274
      %p276 = scmp.eq.s32.totalorder %s64, 0
      %p277 = por %p275, %p276
      %s279 = sadd.s32 %s278, 1
      %p282 = scmp.eq.s32.totalorder %s58, 1
      %p283 = scmp.ne.s32.totalorder %s278, %s280
      %p284 = scmp.eq.s32.totalorder %s58, 0
      %p285 = por %p283, %p284
      %p286 = scmp.ne.s32.totalorder %s278, %s280
      %p287 = scmp.eq.s32.totalorder %s63, 1
      %p288 = por %p286, %p287
      %p289 = scmp.ne.s32.totalorder %s280, %s281
      %p290 = scmp.eq.s32.totalorder %s63, 0
      %p291 = por %p289, %p290
      %p292 = scmp.ne.s32.totalorder %s280, %s281
      %p293 = scmp.eq.s32.totalorder %s64, 1
      %p294 = por %p292, %p293
      %p296 = scmp.ne.s32.totalorder %s281, %s295
      %p297 = scmp.eq.s32.totalorder %s64, 0
      %p298 = por %p296, %p297
      %s300 = sadd.s32 %s299, 1
      %p303 = scmp.eq.s32.totalorder %s58, 1
      %p304 = scmp.ne.s32.totalorder %s299, %s301
      %p305 = scmp.eq.s32.totalorder %s58, 0
      %p306 = por %p304, %p305
      %p307 = scmp.ne.s32.totalorder %s299, %s301
      %p308 = scmp.eq.s32.totalorder %s63, 1
      %p309 = por %p307, %p308
      %p310 = scmp.ne.s32.totalorder %s301, %s302
      %p311 = scmp.eq.s32.totalorder %s63, 0
      %p312 = por %p310, %p311
      %p313 = scmp.ne.s32.totalorder %s301, %s302
      %p314 = scmp.eq.s32.totalorder %s64, 1
      %p315 = por %p313, %p314
      %p317 = scmp.ne.s32.totalorder %s302, %s316
      %p318 = scmp.eq.s32.totalorder %s64, 0
      %p319 = por %p317, %p318
      %s321 = sadd.s32 %s320, 1
      %p324 = scmp.eq.s32.totalorder %s58, 1
      %p325 = scmp.ne.s32.totalorder %s320, %s322
      %p326 = scmp.eq.s32.totalorder %s58, 0
      %p327 = por %p325, %p326
      %p328 = scmp.ne.s32.totalorder %s320, %s322
      %p329 = scmp.eq.s32.totalorder %s63, 1
      %p330 = por %p328, %p329
      %p331 = scmp.ne.s32.totalorder %s322, %s323
      %p332 = scmp.eq.s32.totalorder %s63, 0
      %p333 = por %p331, %p332
      %p334 = scmp.ne.s32.totalorder %s322, %s323
      %p335 = scmp.eq.s32.totalorder %s64, 1
      %p336 = por %p334, %p335
      %p338 = scmp.ne.s32.totalorder %s323, %s337
      %p339 = scmp.eq.s32.totalorder %s64, 0
      %p340 = por %p338, %p339
      %s342 = sadd.s32 %s341, 1
      %p345 = scmp.eq.s32.totalorder %s58, 1
      %p346 = scmp.ne.s32.totalorder %s341, %s343
      %p347 = scmp.eq.s32.totalorder %s58, 0
      %p348 = por %p346, %p347
      %p349 = scmp.ne.s32.totalorder %s341, %s343
      %p350 = scmp.eq.s32.totalorder %s63, 1
      %p351 = por %p349, %p350
      %p352 = scmp.ne.s32.totalorder %s343, %s344
      %p353 = scmp.eq.s32.totalorder %s63, 0
      %p354 = por %p352, %p353
      %p355 = scmp.ne.s32.totalorder %s343, %s344
      %p356 = scmp.eq.s32.totalorder %s64, 1
      %p357 = por %p355, %p356
      %p359 = scmp.ne.s32.totalorder %s344, %s358
      %p360 = scmp.eq.s32.totalorder %s64, 0
      %p361 = por %p359, %p360
      %s363 = sadd.s32 %s362, 1
      %p366 = scmp.eq.s32.totalorder %s58, 1
      %p367 = scmp.ne.s32.totalorder %s362, %s364
      %p368 = scmp.eq.s32.totalorder %s58, 0
      %p369 = por %p367, %p368
      %p370 = scmp.ne.s32.totalorder %s362, %s364
      %p371 = scmp.eq.s32.totalorder %s63, 1
      %p372 = por %p370, %p371
      %p373 = scmp.ne.s32.totalorder %s364, %s365
      %p374 = scmp.eq.s32.totalorder %s63, 0
      %p375 = por %p373, %p374
      %p376 = scmp.ne.s32.totalorder %s364, %s365
      %p377 = scmp.eq.s32.totalorder %s64, 1
      %p378 = por %p376, %p377
      %p380 = scmp.ne.s32.totalorder %s365, %s379
      %p381 = scmp.eq.s32.totalorder %s64, 0
      %p382 = por %p380, %p381
      %s384 = sadd.s32 %s383, 1
      %p387 = scmp.eq.s32.totalorder %s58, 1
      %p388 = scmp.ne.s32.totalorder %s383, %s385
      %p389 = scmp.eq.s32.totalorder %s58, 0
      %p390 = por %p388, %p389
      %p391 = scmp.ne.s32.totalorder %s383, %s385
      %p392 = scmp.eq.s32.totalorder %s63, 1
      %p393 = por %p391, %p392
      %p394 = scmp.ne.s32.totalorder %s385, %s386
      %p395 = scmp.eq.s32.totalorder %s63, 0
      %p396 = por %p394, %p395
      %p397 = scmp.ne.s32.totalorder %s385, %s386
      %p398 = scmp.eq.s32.totalorder %s64, 1
      %p399 = por %p397, %p398
      %p401 = scmp.ne.s32.totalorder %s386, %s400
      %p402 = scmp.eq.s32.totalorder %s64, 0
      %p403 = por %p401, %p402
      %s405 = sadd.s32 %s404, 1
      %p408 = scmp.eq.s32.totalorder %s58, 1
      %p409 = scmp.ne.s32.totalorder %s404, %s406
      %p410 = scmp.eq.s32.totalorder %s58, 0
      %p411 = por %p409, %p410
      %p412 = scmp.ne.s32.totalorder %s404, %s406
      %p413 = scmp.eq.s32.totalorder %s63, 1
      %p414 = por %p412, %p413
      %p415 = scmp.ne.s32.totalorder %s406, %s407
      %p416 = scmp.eq.s32.totalorder %s63, 0
      %p417 = por %p415, %p416
      %p418 = scmp.ne.s32.totalorder %s406, %s407
      %p419 = scmp.eq.s32.totalorder %s64, 1
      %p420 = por %p418, %p419
      %p422 = scmp.ne.s32.totalorder %s407, %s421
      %p423 = scmp.eq.s32.totalorder %s64, 0
      %p424 = por %p422, %p423
      %s426 = sadd.s32 %s425, 1
      %p429 = scmp.eq.s32.totalorder %s58, 1
      %p430 = scmp.ne.s32.totalorder %s425, %s427
      %p431 = scmp.eq.s32.totalorder %s58, 0
      %p432 = por %p430, %p431
      %p433 = scmp.ne.s32.totalorder %s425, %s427
      %p434 = scmp.eq.s32.totalorder %s63, 1
      %p435 = por %p433, %p434
      %p436 = scmp.ne.s32.totalorder %s427, %s428
      %p437 = scmp.eq.s32.totalorder %s63, 0
      %p438 = por %p436, %p437
      %p439 = scmp.ne.s32.totalorder %s427, %s428
      %p440 = scmp.eq.s32.totalorder %s64, 1
      %p441 = por %p439, %p440
      %p443 = scmp.ne.s32.totalorder %s428, %s442
      %p444 = scmp.eq.s32.totalorder %s64, 0
      %p445 = por %p443, %p444
      %s447 = sadd.s32 %s446, 1
      %p450 = scmp.eq.s32.totalorder %s58, 1
      %p451 = scmp.ne.s32.totalorder %s446, %s448
      %p452 = scmp.eq.s32.totalorder %s58, 0
      %p453 = por %p451, %p452
      %p454 = scmp.ne.s32.totalorder %s446, %s448
      %p455 = scmp.eq.s32.totalorder %s63, 1
      %p456 = por %p454, %p455
      %p457 = scmp.ne.s32.totalorder %s448, %s449
      %p458 = scmp.eq.s32.totalorder %s63, 0
      %p459 = por %p457, %p458
      %p460 = scmp.ne.s32.totalorder %s448, %s449
      %p461 = scmp.eq.s32.totalorder %s64, 1
      %p462 = por %p460, %p461
      %p464 = scmp.ne.s32.totalorder %s449, %s463
      %p465 = scmp.eq.s32.totalorder %s64, 0
      %p466 = por %p464, %p465
      %s468 = sadd.s32 %s467, 1
      %p471 = scmp.eq.s32.totalorder %s58, 1
      %p472 = scmp.ne.s32.totalorder %s467, %s469
      %p473 = scmp.eq.s32.totalorder %s58, 0
      %p474 = por %p472, %p473
      %p475 = scmp.ne.s32.totalorder %s467, %s469
      %p476 = scmp.eq.s32.totalorder %s63, 1
      %p477 = por %p475, %p476
      %p478 = scmp.ne.s32.totalorder %s469, %s470
      %p479 = scmp.eq.s32.totalorder %s63, 0
      %p480 = por %p478, %p479
      %p481 = scmp.ne.s32.totalorder %s469, %s470
      %p482 = scmp.eq.s32.totalorder %s64, 1
      %p483 = por %p481, %p482
      %p485 = scmp.ne.s32.totalorder %s470, %s484
      %p486 = scmp.eq.s32.totalorder %s64, 0
      %p487 = por %p485, %p486
      %s489 = sadd.s32 %s488, 1
      %p492 = scmp.eq.s32.totalorder %s58, 1
      %p493 = scmp.ne.s32.totalorder %s488, %s490
      %p494 = scmp.eq.s32.totalorder %s58, 0
      %p495 = por %p493, %p494
      %p496 = scmp.ne.s32.totalorder %s488, %s490
      %p497 = scmp.eq.s32.totalorder %s63, 1
      %p498 = por %p496, %p497
      %p499 = scmp.ne.s32.totalorder %s490, %s491
      %p500 = scmp.eq.s32.totalorder %s63, 0
      %p501 = por %p499, %p500
      %p502 = scmp.ne.s32.totalorder %s490, %s491
      %p503 = scmp.eq.s32.totalorder %s64, 1
      %p504 = por %p502, %p503
      %p506 = scmp.ne.s32.totalorder %s491, %s505
      %p507 = scmp.eq.s32.totalorder %s64, 0
      %p508 = por %p506, %p507
      %s510 = sadd.s32 %s509, 1
      %p513 = scmp.eq.s32.totalorder %s58, 1
      %p514 = scmp.ne.s32.totalorder %s509, %s511
      %p515 = scmp.eq.s32.totalorder %s58, 0
      %p516 = por %p514, %p515
      %p517 = scmp.ne.s32.totalorder %s509, %s511
      %p518 = scmp.eq.s32.totalorder %s63, 1
      %p519 = por %p517, %p518
      %p520 = scmp.ne.s32.totalorder %s511, %s512
      %p521 = scmp.eq.s32.totalorder %s63, 0
      %p522 = por %p520, %p521
      %p523 = scmp.ne.s32.totalorder %s511, %s512
      %p524 = scmp.eq.s32.totalorder %s64, 1
      %p525 = por %p523, %p524
      %p527 = scmp.ne.s32.totalorder %s512, %s526
      %p528 = scmp.eq.s32.totalorder %s64, 0
      %p529 = por %p527, %p528
      %s530 = ssub.s32 %s65, %s77
      %s531 = ssub.s32 %s66, %s73
      %s532 = sor.u32 %s530, %s531
      %p533 = scmp.eq.s32.totalorder %s532, 0
      %s535 = sadd.s32 %s534, 1
      %s536 = scalar_select %p533, %s534, %s535
      %p539 = pneg %p533
      %p540 = scmp.eq.s32.totalorder %s58, 1
      %p541 = por %p539, %p540
      %p542 = scmp.ne.s32.totalorder %s534, %s537
      %p543 = scmp.eq.s32.totalorder %s58, 0
      %p544 = por %p542, %p543
      %p545 = scmp.ne.s32.totalorder %s534, %s537
      %p546 = scmp.eq.s32.totalorder %s63, 1
      %p547 = por %p545, %p546
      %p548 = scmp.ne.s32.totalorder %s537, %s538
      %p549 = scmp.eq.s32.totalorder %s63, 0
      %p550 = por %p548, %p549
      %p551 = scmp.ne.s32.totalorder %s537, %s538
      %p552 = scmp.eq.s32.totalorder %s64, 1
      %p553 = por %p551, %p552
      %p555 = scmp.ne.s32.totalorder %s538, %s554
      %p556 = scmp.eq.s32.totalorder %s64, 0
      %p557 = por %p555, %p556
      %s558 = ssub.s32 %s65, %s77
      %s559 = ssub.s32 %s66, %s73
      %s560 = sor.u32 %s558, %s559
      %p561 = scmp.eq.s32.totalorder %s560, 0
      %s563 = sadd.s32 %s562, 1
      %s564 = scalar_select %p561, %s562, %s563
      %p567 = pneg %p561
      %p568 = scmp.eq.s32.totalorder %s58, 1
      %p569 = por %p567, %p568
      %p570 = scmp.ne.s32.totalorder %s562, %s565
      %p571 = scmp.eq.s32.totalorder %s58, 0
      %p572 = por %p570, %p571
      %p573 = scmp.ne.s32.totalorder %s562, %s565
      %p574 = scmp.eq.s32.totalorder %s63, 1
      %p575 = por %p573, %p574
      %p576 = scmp.ne.s32.totalorder %s565, %s566
      %p577 = scmp.eq.s32.totalorder %s63, 0
      %p578 = por %p576, %p577
      %p579 = scmp.ne.s32.totalorder %s565, %s566
      %p580 = scmp.eq.s32.totalorder %s64, 1
      %p581 = por %p579, %p580
      %p583 = scmp.ne.s32.totalorder %s566, %s582
      %p584 = scmp.eq.s32.totalorder %s64, 0
      %p585 = por %p583, %p584
      %s586 = ssub.s32 %s65, %s77
      %s587 = ssub.s32 %s66, %s73
      %s588 = sor.u32 %s586, %s587
      %p589 = scmp.eq.s32.totalorder %s588, 0
      %s591 = sadd.s32 %s590, 1
      %s592 = scalar_select %p589, %s590, %s591
      %p595 = pneg %p589
      %p596 = scmp.eq.s32.totalorder %s58, 1
      %p597 = por %p595, %p596
      %p598 = scmp.ne.s32.totalorder %s590, %s593
      %p599 = scmp.eq.s32.totalorder %s58, 0
      %p600 = por %p598, %p599
      %p601 = scmp.ne.s32.totalorder %s590, %s593
      %p602 = scmp.eq.s32.totalorder %s63, 1
      %p603 = por %p601, %p602
      %p604 = scmp.ne.s32.totalorder %s593, %s594
      %p605 = scmp.eq.s32.totalorder %s63, 0
      %p606 = por %p604, %p605
      %p607 = scmp.ne.s32.totalorder %s593, %s594
      %p608 = scmp.eq.s32.totalorder %s64, 1
      %p609 = por %p607, %p608
      %p611 = scmp.ne.s32.totalorder %s594, %s610
      %p612 = scmp.eq.s32.totalorder %s64, 0
      %p613 = por %p611, %p612
      %s614 = ssub.s32 %s65, %s77
      %s615 = ssub.s32 %s66, %s73
      %s616 = sor.u32 %s614, %s615
      %p617 = scmp.eq.s32.totalorder %s616, 0
      %s619 = sadd.s32 %s618, 1
      %s620 = scalar_select %p617, %s618, %s619
      %p623 = pneg %p617
      %p624 = scmp.eq.s32.totalorder %s58, 1
      %p625 = por %p623, %p624
      %p626 = scmp.ne.s32.totalorder %s618, %s621
      %p627 = scmp.eq.s32.totalorder %s58, 0
      %p628 = por %p626, %p627
      %p629 = scmp.ne.s32.totalorder %s618, %s621
      %p630 = scmp.eq.s32.totalorder %s63, 1
      %p631 = por %p629, %p630
      %p632 = scmp.ne.s32.totalorder %s621, %s622
      %p633 = scmp.eq.s32.totalorder %s63, 0
      %p634 = por %p632, %p633
      %p635 = scmp.ne.s32.totalorder %s621, %s622
      %p636 = scmp.eq.s32.totalorder %s64, 1
      %p637 = por %p635, %p636
      %p639 = scmp.ne.s32.totalorder %s622, %s638
      %p640 = scmp.eq.s32.totalorder %s64, 0
      %p641 = por %p639, %p640
      %p642 = scmp.le.s32.totalorder 1, %s58
      %p643 = scmp.lt.s32.totalorder %s58, 3
      %p644 = pnand %p642, %p643
      %p645 = pneg %p644
      // Predicated region
      $region9: #{tpu_custom_call.1} parent=5 // pred_check
        _
      $region10: #{tpu_custom_call.1} parent=5 // pred_check_branch
        %647 = sbr.rel (%p644) target = $region12
      $region11: #{tpu_custom_call.1} parent=5 // pred_region
        %s648 = ssub.s32 %s58, 1
        // Predicated region
        $region13: #{tpu_custom_call.1} parent=11 // pred_check
          %p649 = pneg %p249
        $region14: #{tpu_custom_call.1} parent=11 // pred_check_branch
          %651 = sbr.rel (%p649) target = $region16
        $region15: #{tpu_custom_call.1} parent=11 // pred_region
          %s653 = ssub.s32 2048, 2048
          %654 = vsyncadd [#allocation12], %s653
          %s655 = sshll.u32 [#allocation13], 4
          %s656 = int_to_ptr.vmem [resolvable:$true] %s655
          %661 = dma.hbm_to_vmem [thread:$0]  %s6, 2048, %s656, [#allocation12], 512, 512, 32
        $region16: #{tpu_custom_call.1} parent=11 // pred_fallthru
          _
        // Predicated region
        $region17: #{tpu_custom_call.1} parent=11 // pred_check
          %p662 = pneg %p270
        $region18: #{tpu_custom_call.1} parent=11 // pred_check_branch
          %664 = sbr.rel (%p662) target = $region20
        $region19: #{tpu_custom_call.1} parent=11 // pred_region
          %s666 = ssub.s32 64, 64
          %667 = vsyncadd [#allocation15], %s666
          %s669 = sshll.u32 [#allocation14], 4
          %s670 = int_to_ptr.vmem [resolvable:$true] %s669
          %672 = dma.hbm_to_vmem [thread:$0]  %s7, 64, %s670, [#allocation15]
        $region20: #{tpu_custom_call.1} parent=11 // pred_fallthru
          _
        // Predicated region
        $region21: #{tpu_custom_call.1} parent=11 // pred_check
          %p673 = pneg %p291
        $region22: #{tpu_custom_call.1} parent=11 // pred_check_branch
          %675 = sbr.rel (%p673) target = $region24
        $region23: #{tpu_custom_call.1} parent=11 // pred_region
          %s677 = ssub.s32 2048, 2048
          %678 = vsyncadd [#allocation15], %s677
          %s679 = sshll.u32 [#allocation16], 4
          %s680 = int_to_ptr.vmem [resolvable:$true] %s679
          %685 = dma.hbm_to_vmem [thread:$0]  %s8, 2048, %s680, [#allocation15], 128, 128, 8
        $region24: #{tpu_custom_call.1} parent=11 // pred_fallthru
          _
        // Predicated region
        $region25: #{tpu_custom_call.1} parent=11 // pred_check
          %p686 = pneg %p312
        $region26: #{tpu_custom_call.1} parent=11 // pred_check_branch
          %688 = sbr.rel (%p686) target = $region28
        $region27: #{tpu_custom_call.1} parent=11 // pred_region
          %s690 = ssub.s32 16, 16
          %691 = vsyncadd [#allocation18], %s690
          %s693 = sshll.u32 [#allocation17], 4
          %s694 = int_to_ptr.vmem [resolvable:$true] %s693
          %696 = dma.hbm_to_vmem [thread:$0]  %s9, 16, %s694, [#allocation18]
        $region28: #{tpu_custom_call.1} parent=11 // pred_fallthru
          _
        // Predicated region
        $region29: #{tpu_custom_call.1} parent=11 // pred_check
          %p697 = pneg %p333
        $region30: #{tpu_custom_call.1} parent=11 // pred_check_branch
          %699 = sbr.rel (%p697) target = $region32
        $region31: #{tpu_custom_call.1} parent=11 // pred_region
          %s701 = ssub.s32 8192, 8192
          %702 = vsyncadd [#allocation18], %s701
          %s703 = sshll.u32 [#allocation19], 4
          %s704 = int_to_ptr.vmem [resolvable:$true] %s703
          %709 = dma.hbm_to_vmem [thread:$0]  %s10, 8192, %s704, [#allocation18], 512, 512, 32
        $region32: #{tpu_custom_call.1} parent=11 // pred_fallthru
          _
        // Predicated region
        $region33: #{tpu_custom_call.1} parent=11 // pred_check
          %p710 = pneg %p354
        $region34: #{tpu_custom_call.1} parent=11 // pred_check_branch
          %712 = sbr.rel (%p710) target = $region36
        $region35: #{tpu_custom_call.1} parent=11 // pred_region
          %s714 = ssub.s32 64, 64
          %715 = vsyncadd [#allocation21], %s714
          %s717 = sshll.u32 [#allocation20], 4
          %s718 = int_to_ptr.vmem [resolvable:$true] %s717
          %720 = dma.hbm_to_vmem [thread:$0]  %s11, 64, %s718, [#allocation21]
        $region36: #{tpu_custom_call.1} parent=11 // pred_fallthru
          _
        // Predicated region
        $region37: #{tpu_custom_call.1} parent=11 // pred_check
          %p721 = pneg %p375
        $region38: #{tpu_custom_call.1} parent=11 // pred_check_branch
          %723 = sbr.rel (%p721) target = $region40
        $region39: #{tpu_custom_call.1} parent=11 // pred_region
          %s725 = ssub.s32 2048, 2048
          %726 = vsyncadd [#allocation21], %s725
          %s727 = sshll.u32 [#allocation22], 4
          %s728 = int_to_ptr.vmem [resolvable:$true] %s727
          %733 = dma.hbm_to_vmem [thread:$0]  %s12, 2048, %s728, [#allocation21], 128, 128, 8
        $region40: #{tpu_custom_call.1} parent=11 // pred_fallthru
          _
        // Predicated region
        $region41: #{tpu_custom_call.1} parent=11 // pred_check
          %p734 = pneg %p396
        $region42: #{tpu_custom_call.1} parent=11 // pred_check_branch
          %736 = sbr.rel (%p734) target = $region44
        $region43: #{tpu_custom_call.1} parent=11 // pred_region
          %s738 = ssub.s32 16, 16
          %739 = vsyncadd [#allocation24], %s738
          %s741 = sshll.u32 [#allocation23], 4
          %s742 = int_to_ptr.vmem [resolvable:$true] %s741
          %744 = dma.hbm_to_vmem [thread:$0]  %s13, 16, %s742, [#allocation24]
        $region44: #{tpu_custom_call.1} parent=11 // pred_fallthru
          _
        // Predicated region
        $region45: #{tpu_custom_call.1} parent=11 // pred_check
          %p745 = pneg %p417
        $region46: #{tpu_custom_call.1} parent=11 // pred_check_branch
          %747 = sbr.rel (%p745) target = $region48
        $region47: #{tpu_custom_call.1} parent=11 // pred_region
          %s749 = ssub.s32 2048, 2048
          %750 = vsyncadd [#allocation24], %s749
          %s751 = sshll.u32 [#allocation25], 4
          %s752 = int_to_ptr.vmem [resolvable:$true] %s751
          %757 = dma.hbm_to_vmem [thread:$0]  %s14, 2048, %s752, [#allocation24], 128, 128, 8
        $region48: #{tpu_custom_call.1} parent=11 // pred_fallthru
          _
        // Predicated region
        $region49: #{tpu_custom_call.1} parent=11 // pred_check
          %p758 = pneg %p438
        $region50: #{tpu_custom_call.1} parent=11 // pred_check_branch
          %760 = sbr.rel (%p758) target = $region52
        $region51: #{tpu_custom_call.1} parent=11 // pred_region
          %s762 = ssub.s32 16, 16
          %763 = vsyncadd [#allocation27], %s762
          %s765 = sshll.u32 [#allocation26], 4
          %s766 = int_to_ptr.vmem [resolvable:$true] %s765
          %768 = dma.hbm_to_vmem [thread:$0]  %s15, 16, %s766, [#allocation27]
        $region52: #{tpu_custom_call.1} parent=11 // pred_fallthru
          _
        // Predicated region
        $region53: #{tpu_custom_call.1} parent=11 // pred_check
          %p769 = pneg %p459
        $region54: #{tpu_custom_call.1} parent=11 // pred_check_branch
          %771 = sbr.rel (%p769) target = $region56
        $region55: #{tpu_custom_call.1} parent=11 // pred_region
          %s773 = ssub.s32 6144, 6144
          %774 = vsyncadd [#allocation27], %s773
          %s775 = sshll.u32 [#allocation28], 4
          %s776 = int_to_ptr.vmem [resolvable:$true] %s775
          %781 = dma.hbm_to_vmem [thread:$0]  %s16, 6144, %s776, [#allocation27], 384, 384, 24
        $region56: #{tpu_custom_call.1} parent=11 // pred_fallthru
          _
        // Predicated region
        $region57: #{tpu_custom_call.1} parent=11 // pred_check
          %p782 = pneg %p480
        $region58: #{tpu_custom_call.1} parent=11 // pred_check_branch
          %784 = sbr.rel (%p782) target = $region60
        $region59: #{tpu_custom_call.1} parent=11 // pred_region
          %s786 = ssub.s32 48, 48
          %787 = vsyncadd [#allocation30], %s786
          %s789 = sshll.u32 [#allocation29], 4
          %s790 = int_to_ptr.vmem [resolvable:$true] %s789
          %792 = dma.hbm_to_vmem [thread:$0]  %s17, 48, %s790, [#allocation30]
        $region60: #{tpu_custom_call.1} parent=11 // pred_fallthru
          _
        // Predicated region
        $region61: #{tpu_custom_call.1} parent=11 // pred_check
          %p793 = pneg %p501
        $region62: #{tpu_custom_call.1} parent=11 // pred_check_branch
          %795 = sbr.rel (%p793) target = $region64
        $region63: #{tpu_custom_call.1} parent=11 // pred_region
          %s797 = ssub.s32 2048, 2048
          %798 = vsyncadd [#allocation30], %s797
          %s799 = sshll.u32 [#allocation31], 4
          %s800 = int_to_ptr.vmem [resolvable:$true] %s799
          %805 = dma.hbm_to_vmem [thread:$0]  %s18, 2048, %s800, [#allocation30], 128, 128, 8
        $region64: #{tpu_custom_call.1} parent=11 // pred_fallthru
          _
        // Predicated region
        $region65: #{tpu_custom_call.1} parent=11 // pred_check
          %p806 = pneg %p522
        $region66: #{tpu_custom_call.1} parent=11 // pred_check_branch
          %808 = sbr.rel (%p806) target = $region68
        $region67: #{tpu_custom_call.1} parent=11 // pred_region
          %s810 = ssub.s32 16, 16
          %811 = vsyncadd [#allocation33], %s810
          %s813 = sshll.u32 [#allocation32], 4
          %s814 = int_to_ptr.vmem [resolvable:$true] %s813
          %816 = dma.hbm_to_vmem [thread:$0]  %s19, 16, %s814, [#allocation33]
        $region68: #{tpu_custom_call.1} parent=11 // pred_fallthru
          _
      $region12: #{tpu_custom_call.1} parent=5 // pred_fallthru
        _
      %p817 = scmp.lt.s32.totalorder %s58, 2
      // Predicated region
      $region69: #{tpu_custom_call.1} parent=5 // pred_check
        %p818 = pneg %p817
      $region70: #{tpu_custom_call.1} parent=5 // pred_check_branch
        %820 = sbr.rel (%p818) target = $region72
      $region71: #{tpu_custom_call.1} parent=5 // pred_region
        // Predicated region
        $region73: #{tpu_custom_call.1} parent=71 // pred_check
          %p821 = pneg %p92
        $region74: #{tpu_custom_call.1} parent=71 // pred_check_branch
          %823 = sbr.rel (%p821) target = $region76
        $region75: #{tpu_custom_call.1} parent=71 // pred_region
          %s824 = sand.u32 %s82, 1
          %s825 = scalar_lea.sflag [#allocation3], %s824
          %s826 = sand.u32 %s82, 1
          %s827 = smul.addr %s826, 8
          %s828 = scalar_lea.vmem [#allocation2], %s827
          %s830 = ssub.s32 128, 128
          %831 = vsyncadd %s825, %s830
          %s832 = sadd.s32 %s66, %s65
          %s833 = smul.addr %s832, 128
          %s834 = scalar_lea.hbm %s0, %s833
          %s836 = sshll.u32 %s828, 4
          %s837 = int_to_ptr.vmem [resolvable:$true] %s836
          %839 = dma.hbm_to_vmem [thread:$0]  %s834, 128, %s837, %s825
        $region76: #{tpu_custom_call.1} parent=71 // pred_fallthru
          _
        // Predicated region
        $region77: #{tpu_custom_call.1} parent=71 // pred_check
          %p840 = pneg %p118
        $region78: #{tpu_custom_call.1} parent=71 // pred_check_branch
          %842 = sbr.rel (%p840) target = $region80
        $region79: #{tpu_custom_call.1} parent=71 // pred_region
          %s843 = sand.u32 %s58, 1
          %s844 = scalar_lea.sflag [#allocation6], %s843
          %s845 = sand.u32 %s108, 1
          %s846 = scalar_lea.vmem [#allocation5], %s845
          %s848 = ssub.s32 16, 16
          %849 = vsyncadd %s844, %s848
          %s850 = smul.addr %s65, 16
          %s851 = scalar_lea.hbm %s1, %s850
          %s853 = sshll.u32 %s846, 4
          %s854 = int_to_ptr.vmem [resolvable:$true] %s853
          %856 = dma.hbm_to_vmem [thread:$0]  %s851, 16, %s854, %s844
        $region80: #{tpu_custom_call.1} parent=71 // pred_fallthru
          _
        // Predicated region
        $region81: #{tpu_custom_call.1} parent=71 // pred_check
          %p857 = pneg %p144
        $region82: #{tpu_custom_call.1} parent=71 // pred_check_branch
          %859 = sbr.rel (%p857) target = $region84
        $region83: #{tpu_custom_call.1} parent=71 // pred_region
          %s860 = sand.u32 %s58, 1
          %s861 = scalar_lea.sflag [#allocation6], %s860
          %s862 = sand.u32 %s134, 1
          %s863 = smul.addr %s862, 8
          %s864 = scalar_lea.vmem [#allocation7], %s863
          %s866 = ssub.s32 128, 128
          %867 = vsyncadd %s861, %s866
          %s868 = smul.addr %s65, 128
          %s869 = scalar_lea.hbm %s2, %s868
          %s871 = sshll.u32 %s864, 4
          %s872 = int_to_ptr.vmem [resolvable:$true] %s871
          %874 = dma.hbm_to_vmem [thread:$0]  %s869, 128, %s872, %s861
        $region84: #{tpu_custom_call.1} parent=71 // pred_fallthru
          _
        // Predicated region
        $region85: #{tpu_custom_call.1} parent=71 // pred_check
          %p875 = pneg %p170
        $region86: #{tpu_custom_call.1} parent=71 // pred_check_branch
          %877 = sbr.rel (%p875) target = $region88
        $region87: #{tpu_custom_call.1} parent=71 // pred_region
          %s878 = sand.u32 %s58, 1
          %s879 = scalar_lea.sflag [#allocation9], %s878
          %s880 = sand.u32 %s160, 1
          %s881 = smul.addr %s880, 8
          %s882 = scalar_lea.vmem [#allocation8], %s881
          %s884 = ssub.s32 128, 128
          %885 = vsyncadd %s879, %s884
          %s886 = smul.addr %s65, 128
          %s887 = scalar_lea.hbm %s3, %s886
          %s889 = sshll.u32 %s882, 4
          %s890 = int_to_ptr.vmem [resolvable:$true] %s889
          %892 = dma.hbm_to_vmem [thread:$0]  %s887, 128, %s890, %s879
        $region88: #{tpu_custom_call.1} parent=71 // pred_fallthru
          _
        // Predicated region
        $region89: #{tpu_custom_call.1} parent=71 // pred_check
          %p893 = pneg %p196
        $region90: #{tpu_custom_call.1} parent=71 // pred_check_branch
          %895 = sbr.rel (%p893) target = $region92
        $region91: #{tpu_custom_call.1} parent=71 // pred_region
          %s896 = sand.u32 %s58, 1
          %s897 = scalar_lea.sflag [#allocation9], %s896
          %s898 = sand.u32 %s186, 1
          %s899 = smul.addr %s898, 8
          %s900 = scalar_lea.vmem [#allocation10], %s899
          %s902 = ssub.s32 128, 128
          %903 = vsyncadd %s897, %s902
          %s904 = smul.addr %s65, 128
          %s905 = scalar_lea.hbm %s4, %s904
          %s907 = sshll.u32 %s900, 4
          %s908 = int_to_ptr.vmem [resolvable:$true] %s907
          %910 = dma.hbm_to_vmem [thread:$0]  %s905, 128, %s908, %s897
        $region92: #{tpu_custom_call.1} parent=71 // pred_fallthru
          _
        // Predicated region
        $region93: #{tpu_custom_call.1} parent=71 // pred_check
          %p911 = pneg %p222
        $region94: #{tpu_custom_call.1} parent=71 // pred_check_branch
          %913 = sbr.rel (%p911) target = $region96
        $region95: #{tpu_custom_call.1} parent=71 // pred_region
          %s914 = sand.u32 %s58, 1
          %s915 = scalar_lea.sflag [#allocation12], %s914
          %s916 = sand.u32 %s212, 1
          %s917 = smul.addr %s916, 8
          %s918 = scalar_lea.vmem [#allocation11], %s917
          %s920 = ssub.s32 128, 128
          %921 = vsyncadd %s915, %s920
          %s922 = smul.addr %s65, 128
          %s923 = scalar_lea.hbm %s5, %s922
          %s925 = sshll.u32 %s918, 4
          %s926 = int_to_ptr.vmem [resolvable:$true] %s925
          %928 = dma.hbm_to_vmem [thread:$0]  %s923, 128, %s926, %s915
        $region96: #{tpu_custom_call.1} parent=71 // pred_fallthru
          _
      $region72: #{tpu_custom_call.1} parent=5 // pred_fallthru
        _
      %p929 = scmp.le.s32.totalorder 1, %s58
      %p930 = scmp.lt.s32.totalorder %s58, 3
      %p931 = pnand %p929, %p930
      %p932 = pneg %p931
      // Predicated region
      $region97: #{tpu_custom_call.1} parent=5 // pred_check
        _
      $region98: #{tpu_custom_call.1} parent=5 // pred_check_branch
        %934 = sbr.rel (%p931) target = $region100
      $region99: #{tpu_custom_call.1} parent=5 // pred_region
        %s935 = ssub.s32 %s58, 1
        %s936 = sand.u32 %s85, 1
        %s937 = scalar_lea.sflag [#allocation3], %s936
        %s938 = sand.u32 %s85, 1
        %s939 = smul.addr %s938, 8
        %s940 = scalar_lea.vmem [#allocation2], %s939
        // Predicated region
        $region101: #{tpu_custom_call.1} parent=99 // pred_check
          %p941 = pneg %p98
        $region102: #{tpu_custom_call.1} parent=99 // pred_check_branch
          %943 = sbr.rel (%p941) target = $region104
        $region103: #{tpu_custom_call.1} parent=99 // pred_region
          %944 = dma.done %s937, 128
        $region104: #{tpu_custom_call.1} parent=99 // pred_fallthru
          _
        %s945 = sand.u32 %s63, 1
        %s946 = scalar_lea.sflag [#allocation6], %s945
        %s947 = sand.u32 %s111, 1
        %s948 = scalar_lea.vmem [#allocation5], %s947
        // Predicated region
        $region105: #{tpu_custom_call.1} parent=99 // pred_check
          %p949 = pneg %p124
        $region106: #{tpu_custom_call.1} parent=99 // pred_check_branch
          %951 = sbr.rel (%p949) target = $region108
        $region107: #{tpu_custom_call.1} parent=99 // pred_region
          %952 = dma.done %s946, 16
        $region108: #{tpu_custom_call.1} parent=99 // pred_fallthru
          _
        %s953 = sand.u32 %s63, 1
        %s954 = scalar_lea.sflag [#allocation6], %s953
        %s955 = sand.u32 %s137, 1
        %s956 = smul.addr %s955, 8
        %s957 = scalar_lea.vmem [#allocation7], %s956
        // Predicated region
        $region109: #{tpu_custom_call.1} parent=99 // pred_check
          %p958 = pneg %p150
        $region110: #{tpu_custom_call.1} parent=99 // pred_check_branch
          %960 = sbr.rel (%p958) target = $region112
        $region111: #{tpu_custom_call.1} parent=99 // pred_region
          %961 = dma.done %s954, 128
        $region112: #{tpu_custom_call.1} parent=99 // pred_fallthru
          _
        %s962 = sand.u32 %s63, 1
        %s963 = scalar_lea.sflag [#allocation9], %s962
        %s964 = sand.u32 %s163, 1
        %s965 = smul.addr %s964, 8
        %s966 = scalar_lea.vmem [#allocation8], %s965
        // Predicated region
        $region113: #{tpu_custom_call.1} parent=99 // pred_check
          %p967 = pneg %p176
        $region114: #{tpu_custom_call.1} parent=99 // pred_check_branch
          %969 = sbr.rel (%p967) target = $region116
        $region115: #{tpu_custom_call.1} parent=99 // pred_region
          %970 = dma.done %s963, 128
        $region116: #{tpu_custom_call.1} parent=99 // pred_fallthru
          _
        %s971 = sand.u32 %s63, 1
        %s972 = scalar_lea.sflag [#allocation9], %s971
        %s973 = sand.u32 %s189, 1
        %s974 = smul.addr %s973, 8
        %s975 = scalar_lea.vmem [#allocation10], %s974
        // Predicated region
        $region117: #{tpu_custom_call.1} parent=99 // pred_check
          %p976 = pneg %p202
        $region118: #{tpu_custom_call.1} parent=99 // pred_check_branch
          %978 = sbr.rel (%p976) target = $region120
        $region119: #{tpu_custom_call.1} parent=99 // pred_region
          %979 = dma.done %s972, 128
        $region120: #{tpu_custom_call.1} parent=99 // pred_fallthru
          _
        %s980 = sand.u32 %s63, 1
        %s981 = scalar_lea.sflag [#allocation12], %s980
        %s982 = sand.u32 %s215, 1
        %s983 = smul.addr %s982, 8
        %s984 = scalar_lea.vmem [#allocation11], %s983
        // Predicated region
        $region121: #{tpu_custom_call.1} parent=99 // pred_check
          %p985 = pneg %p228
        $region122: #{tpu_custom_call.1} parent=99 // pred_check_branch
          %987 = sbr.rel (%p985) target = $region124
        $region123: #{tpu_custom_call.1} parent=99 // pred_region
          %988 = dma.done %s981, 128
        $region124: #{tpu_custom_call.1} parent=99 // pred_fallthru
          _
        // Predicated region
        $region125: #{tpu_custom_call.1} parent=99 // pred_check
          %p989 = pneg %p249
        $region126: #{tpu_custom_call.1} parent=99 // pred_check_branch
          %991 = sbr.rel (%p989) target = $region128
        $region127: #{tpu_custom_call.1} parent=99 // pred_region
          %992 = dma.done [#allocation12], 2048
        $region128: #{tpu_custom_call.1} parent=99 // pred_fallthru
          _
        // Predicated region
        $region129: #{tpu_custom_call.1} parent=99 // pred_check
          %p993 = pneg %p270
        $region130: #{tpu_custom_call.1} parent=99 // pred_check_branch
          %995 = sbr.rel (%p993) target = $region132
        $region131: #{tpu_custom_call.1} parent=99 // pred_region
          %996 = dma.done [#allocation15], 64
        $region132: #{tpu_custom_call.1} parent=99 // pred_fallthru
          _
        // Predicated region
        $region133: #{tpu_custom_call.1} parent=99 // pred_check
          %p997 = pneg %p291
        $region134: #{tpu_custom_call.1} parent=99 // pred_check_branch
          %999 = sbr.rel (%p997) target = $region136
        $region135: #{tpu_custom_call.1} parent=99 // pred_region
          %1000 = dma.done [#allocation15], 2048
        $region136: #{tpu_custom_call.1} parent=99 // pred_fallthru
          _
        // Predicated region
        $region137: #{tpu_custom_call.1} parent=99 // pred_check
          %p1001 = pneg %p312
        $region138: #{tpu_custom_call.1} parent=99 // pred_check_branch
          %1003 = sbr.rel (%p1001) target = $region140
        $region139: #{tpu_custom_call.1} parent=99 // pred_region
          %1004 = dma.done [#allocation18], 16
        $region140: #{tpu_custom_call.1} parent=99 // pred_fallthru
          _
        // Predicated region
        $region141: #{tpu_custom_call.1} parent=99 // pred_check
          %p1005 = pneg %p333
        $region142: #{tpu_custom_call.1} parent=99 // pred_check_branch
          %1007 = sbr.rel (%p1005) target = $region144
        $region143: #{tpu_custom_call.1} parent=99 // pred_region
          %1008 = dma.done [#allocation18], 8192
        $region144: #{tpu_custom_call.1} parent=99 // pred_fallthru
          _
        // Predicated region
        $region145: #{tpu_custom_call.1} parent=99 // pred_check
          %p1009 = pneg %p354
        $region146: #{tpu_custom_call.1} parent=99 // pred_check_branch
          %1011 = sbr.rel (%p1009) target = $region148
        $region147: #{tpu_custom_call.1} parent=99 // pred_region
          %1012 = dma.done [#allocation21], 64
        $region148: #{tpu_custom_call.1} parent=99 // pred_fallthru
          _
        // Predicated region
        $region149: #{tpu_custom_call.1} parent=99 // pred_check
          %p1013 = pneg %p375
        $region150: #{tpu_custom_call.1} parent=99 // pred_check_branch
          %1015 = sbr.rel (%p1013) target = $region152
        $region151: #{tpu_custom_call.1} parent=99 // pred_region
          %1016 = dma.done [#allocation21], 2048
        $region152: #{tpu_custom_call.1} parent=99 // pred_fallthru
          _
        // Predicated region
        $region153: #{tpu_custom_call.1} parent=99 // pred_check
          %p1017 = pneg %p396
        $region154: #{tpu_custom_call.1} parent=99 // pred_check_branch
          %1019 = sbr.rel (%p1017) target = $region156
        $region155: #{tpu_custom_call.1} parent=99 // pred_region
          %1020 = dma.done [#allocation24], 16
        $region156: #{tpu_custom_call.1} parent=99 // pred_fallthru
          _
        // Predicated region
        $region157: #{tpu_custom_call.1} parent=99 // pred_check
          %p1021 = pneg %p417
        $region158: #{tpu_custom_call.1} parent=99 // pred_check_branch
          %1023 = sbr.rel (%p1021) target = $region160
        $region159: #{tpu_custom_call.1} parent=99 // pred_region
          %1024 = dma.done [#allocation24], 2048
        $region160: #{tpu_custom_call.1} parent=99 // pred_fallthru
          _
        // Predicated region
        $region161: #{tpu_custom_call.1} parent=99 // pred_check
          %p1025 = pneg %p438
        $region162: #{tpu_custom_call.1} parent=99 // pred_check_branch
          %1027 = sbr.rel (%p1025) target = $region164
        $region163: #{tpu_custom_call.1} parent=99 // pred_region
          %1028 = dma.done [#allocation27], 16
        $region164: #{tpu_custom_call.1} parent=99 // pred_fallthru
          _
        // Predicated region
        $region165: #{tpu_custom_call.1} parent=99 // pred_check
          %p1029 = pneg %p459
        $region166: #{tpu_custom_call.1} parent=99 // pred_check_branch
          %1031 = sbr.rel (%p1029) target = $region168
        $region167: #{tpu_custom_call.1} parent=99 // pred_region
          %1032 = dma.done [#allocation27], 6144
        $region168: #{tpu_custom_call.1} parent=99 // pred_fallthru
          _
        // Predicated region
        $region169: #{tpu_custom_call.1} parent=99 // pred_check
          %p1033 = pneg %p480
        $region170: #{tpu_custom_call.1} parent=99 // pred_check_branch
          %1035 = sbr.rel (%p1033) target = $region172
        $region171: #{tpu_custom_call.1} parent=99 // pred_region
          %1036 = dma.done [#allocation30], 48
        $region172: #{tpu_custom_call.1} parent=99 // pred_fallthru
          _
        // Predicated region
        $region173: #{tpu_custom_call.1} parent=99 // pred_check
          %p1037 = pneg %p501
        $region174: #{tpu_custom_call.1} parent=99 // pred_check_branch
          %1039 = sbr.rel (%p1037) target = $region176
        $region175: #{tpu_custom_call.1} parent=99 // pred_region
          %1040 = dma.done [#allocation30], 2048
        $region176: #{tpu_custom_call.1} parent=99 // pred_fallthru
          _
        // Predicated region
        $region177: #{tpu_custom_call.1} parent=99 // pred_check
          %p1041 = pneg %p522
        $region178: #{tpu_custom_call.1} parent=99 // pred_check_branch
          %1043 = sbr.rel (%p1041) target = $region180
        $region179: #{tpu_custom_call.1} parent=99 // pred_region
          %1044 = dma.done [#allocation33], 16
        $region180: #{tpu_custom_call.1} parent=99 // pred_fallthru
          _
        %s1045 = sand.u32 %s85, 1
        %s1046 = scalar_lea.sflag [#allocation3], %s1045
        %s1047 = sand.u32 %s85, 1
        %s1048 = smul.addr %s1047, 8
        %s1049 = scalar_lea.vmem [#allocation2], %s1048
        %p1050 = pneg %p98
        %p1051 = pneg %p95
        %s1052 = sand.u32 %s63, 1
        %s1053 = scalar_lea.sflag [#allocation6], %s1052
        %s1054 = sand.u32 %s111, 1
        %s1055 = scalar_lea.vmem [#allocation5], %s1054
        %p1056 = pneg %p124
        %p1057 = pneg %p121
        %s1058 = sand.u32 %s63, 1
        %s1059 = scalar_lea.sflag [#allocation6], %s1058
        %s1060 = sand.u32 %s137, 1
        %s1061 = smul.addr %s1060, 8
        %s1062 = scalar_lea.vmem [#allocation7], %s1061
        %p1063 = pneg %p150
        %p1064 = pneg %p147
        %s1065 = sand.u32 %s63, 1
        %s1066 = scalar_lea.sflag [#allocation9], %s1065
        %s1067 = sand.u32 %s163, 1
        %s1068 = smul.addr %s1067, 8
        %s1069 = scalar_lea.vmem [#allocation8], %s1068
        %p1070 = pneg %p176
        %p1071 = pneg %p173
        %s1072 = sand.u32 %s63, 1
        %s1073 = scalar_lea.sflag [#allocation9], %s1072
        %s1074 = sand.u32 %s189, 1
        %s1075 = smul.addr %s1074, 8
        %s1076 = scalar_lea.vmem [#allocation10], %s1075
        %p1077 = pneg %p202
        %p1078 = pneg %p199
        %s1079 = sand.u32 %s63, 1
        %s1080 = scalar_lea.sflag [#allocation12], %s1079
        %s1081 = sand.u32 %s215, 1
        %s1082 = smul.addr %s1081, 8
        %s1083 = scalar_lea.vmem [#allocation11], %s1082
        %p1084 = pneg %p228
        %p1085 = pneg %p225
        %p1086 = pneg %p249
        %p1087 = pneg %p246
        %p1088 = pneg %p270
        %p1089 = pneg %p267
        %p1090 = pneg %p291
        %p1091 = pneg %p288
        %p1092 = pneg %p312
        %p1093 = pneg %p309
        %p1094 = pneg %p333
        %p1095 = pneg %p330
        %p1096 = pneg %p354
        %p1097 = pneg %p351
        %p1098 = pneg %p375
        %p1099 = pneg %p372
        %p1100 = pneg %p396
        %p1101 = pneg %p393
        %p1102 = pneg %p417
        %p1103 = pneg %p414
        %p1104 = pneg %p438
        %p1105 = pneg %p435
        %p1106 = pneg %p459
        %p1107 = pneg %p456
        %p1108 = pneg %p480
        %p1109 = pneg %p477
        %p1110 = pneg %p501
        %p1111 = pneg %p498
        %p1112 = pneg %p522
        %p1113 = pneg %p519
        %p1114 = pneg %p550
        %p1115 = pneg %p547
        %s1116 = sand.u32 %s537, 1
        %s1117 = scalar_lea.sflag [#allocation4], %s1116
        %s1118 = sand.u32 %s537, 1
        %s1119 = smul.addr %s1118, 8
        %s1120 = scalar_lea.vmem [#allocation34], %s1119
        %p1121 = pneg %p578
        %p1122 = pneg %p575
        %s1123 = sand.u32 %s63, 1
        %s1124 = scalar_lea.sflag [#allocation36], %s1123
        %s1125 = sand.u32 %s565, 1
        %s1126 = smul.addr %s1125, 8
        %s1127 = scalar_lea.vmem [#allocation35], %s1126
        %p1128 = pneg %p606
        %p1129 = pneg %p603
        %s1130 = sand.u32 %s63, 1
        %s1131 = scalar_lea.sflag [#allocation36], %s1130
        %s1132 = sand.u32 %s593, 1
        %s1133 = smul.addr %s1132, 32
        %s1134 = scalar_lea.vmem [#allocation37], %s1133
        %p1135 = pneg %p634
        %p1136 = pneg %p631
        %s1137 = sand.u32 %s621, 1
        %s1138 = scalar_lea.sflag [#allocation39], %s1137
        %s1139 = sand.u32 %s621, 1
        %s1140 = smul.addr %s1139, 32
        %s1141 = scalar_lea.vmem [#allocation38], %s1140
        %s1142 = smul.u32 8, %s68
        %s1143 = smul.u32 8, %s68
        %v1144 = vld [vmem:[%s940] sm:$0xff]
        %v1145 = vld [vmem:[#allocation13] sm:$0xff]
        %v1146 = vld [vmem:[#allocation13 + $0x8] sm:$0xff]
        %v1147 = vld [vmem:[#allocation13 + $0x10] sm:$0xff]
        %v1148 = vld [vmem:[#allocation13 + $0x18] sm:$0xff]
        %v1149 = vld [vmem:[#allocation13 + $0x20] sm:$0xff]
        %v1150 = vld [vmem:[#allocation13 + $0x28] sm:$0xff]
        %v1151 = vld [vmem:[#allocation13 + $0x30] sm:$0xff]
        %v1152 = vld [vmem:[#allocation13 + $0x38] sm:$0xff]
        %v1153 = vld [vmem:[#allocation13 + $0x40] sm:$0xff]
        %v1154 = vld [vmem:[#allocation13 + $0x48] sm:$0xff]
        %v1155 = vld [vmem:[#allocation13 + $0x50] sm:$0xff]
        %v1156 = vld [vmem:[#allocation13 + $0x58] sm:$0xff]
        %v1157 = vld [vmem:[#allocation13 + $0x60] sm:$0xff]
        %v1158 = vld [vmem:[#allocation13 + $0x68] sm:$0xff]
        %v1159 = vld [vmem:[#allocation13 + $0x70] sm:$0xff]
        %v1160 = vld [vmem:[#allocation13 + $0x78] sm:$0xff]
        %v1161 = vld [vmem:[#allocation14] sm:$0xf]
        %v1163 = vlaneseq
        %v1164 = vshrl.u32 %v1163, 7
        %v1165 = vsub.s32 0, %v1164
        %v1166 = vrot.slane %v1161, %v1165
        %v1167 = vlaneseq
        %v1168 = vshrl.u32 %v1167, 7
        %v1169 = vsub.s32 1, %v1168
        %v1170 = vrot.slane %v1161, %v1169
        %v1171 = vlaneseq
        %v1172 = vshrl.u32 %v1171, 7
        %v1173 = vsub.s32 2, %v1172
        %v1174 = vrot.slane %v1161, %v1173
        %v1175 = vlaneseq
        %v1176 = vshrl.u32 %v1175, 7
        %v1177 = vsub.s32 3, %v1176
        %v1178 = vrot.slane %v1161, %v1177
        %vm1183 = vcmask 261120
        %v1185 = vsel %vm1183, %v1144, 0
        %1187 = vmatprep.subr.mxu0 %v1146
        %1188 = vmatpush1.msra.mxu0 %v1145
        %1189 = vmatprep.subr.mxu0 %v1150
        %1190 = vmatpush1.msra.mxu0 %v1149
        %1191 = vmatprep.subr.mxu0 %v1154
        %1192 = vmatpush1.msra.mxu0 %v1153
        %1193 = vmatprep.subr.mxu0 %v1158
        %1194 = vmatpush1.msra.mxu0 %v1157
        %1195 = vmatprep.subr.mxu0 0.0
        %1196 = vmatpush1.msra.mxu0 0.0
        %1197 = vmatprep.subr.mxu0 0.0
        %1198 = vmatpush1.msra.mxu0 0.0
        %1199 = vmatprep.subr.mxu0 0.0
        %1200 = vmatpush1.msra.mxu0 0.0
        %1201 = vmatprep.subr.mxu0 0.0
        %1202 = vmatpush1.msra.mxu0 0.0
        %1203 = vmatprep.subr.mxu0 0.0
        %1204 = vmatpush1.msra.mxu0 0.0
        %1205 = vmatprep.subr.mxu0 0.0
        %1206 = vmatpush1.msra.mxu0 0.0
        %1207 = vmatprep.subr.mxu0 0.0
        %1208 = vmatpush1.msra.mxu0 0.0
        %1209 = vmatprep.subr.mxu0 0.0
        %1210 = vmatpush1.msra.mxu0 0.0
        %1211 = vmatprep.subr.mxu0 0.0
        %1212 = vmatpush1.msra.mxu0 0.0
        %1213 = vmatprep.subr.mxu0 0.0
        %1214 = vmatpush1.msra.mxu0 0.0
        %1215 = vmatprep.subr.mxu0 0.0
        %1216 = vmatpush1.msra.mxu0 0.0
        %1217 = vmatprep.subr.mxu0 0.0
        %1218 = vmatpush1.msra.mxu0 0.0
        %1219 = vmatprep.subr.mxu0 0.0
        %1220 = vmatpush1.msra.mxu0 0.0
        %1221 = vmatprep.subr.mxu0 0.0
        %1222 = vmatpush1.msra.mxu0 0.0
        %1223 = vmatprep.subr.mxu0 0.0
        %1224 = vmatpush1.msra.mxu0 0.0
        %1225 = vmatprep.subr.mxu0 0.0
        %1226 = vmatpush1.msra.mxu0 0.0
        %1227 = vmatprep.subr.mxu0 0.0
        %1228 = vmatpush1.msra.mxu0 0.0
        %1229 = vmatprep.subr.mxu0 0.0
        %1230 = vmatpush1.msra.mxu0 0.0
        %1231 = vmatprep.subr.mxu0 0.0
        %1232 = vmatpush1.msra.mxu0 0.0
        %1233 = vmatprep.subr.mxu0 0.0
        %1234 = vmatpush1.msra.mxu0 0.0
        %1235 = vmatprep.subr.mxu0 0.0
        %1236 = vmatpush1.msra.mxu0 0.0
        %1237 = vmatprep.subr.mxu0 0.0
        %1238 = vmatpush1.msra.mxu0 0.0
        %1239 = vmatprep.subr.mxu0 0.0
        %1240 = vmatpush1.msra.mxu0 0.0
        %1241 = vmatprep.subr.mxu0 0.0
        %1242 = vmatpush1.msra.mxu0 0.0
        %1243 = vmatprep.subr.mxu0 0.0
        %1244 = vmatpush1.msra.mxu0 0.0
        %1245 = vmatprep.subr.mxu0 0.0
        %1246 = vmatpush1.msra.mxu0 0.0
        %1247 = vmatprep.subr.mxu0 0.0
        %1248 = vmatpush1.msra.mxu0 0.0
        %1249 = vmatprep.subr.mxu0 0.0
        %1250 = vmatpush1.msra.mxu0 0.0
        %1251 = vmatprep.mubr.f32.mxu0 0.0
        %1252 = vmatmul.mubr.f32.gmra.mrb[0].mxu0 %v1185
        %v1253 = vpop.f32.mrb[0].mxu0
        %v1254 = vadd.f32 %v1166, %v1253
        %v1255 = vpop.f32.mrb[0].mxu0
        %v1256 = vadd.f32 %v1170, %v1255
        %1257 = vdwg.mxu0
        %1258 = vmatprep.subr.mxu0 %v1148
        %1259 = vmatpush1.msra.mxu0 %v1147
        %1260 = vmatprep.subr.mxu0 %v1152
        %1261 = vmatpush1.msra.mxu0 %v1151
        %1262 = vmatprep.subr.mxu0 %v1156
        %1263 = vmatpush1.msra.mxu0 %v1155
        %1264 = vmatprep.subr.mxu0 %v1160
        %1265 = vmatpush1.msra.mxu0 %v1159
        %1266 = vmatprep.subr.mxu0 0.0
        %1267 = vmatpush1.msra.mxu0 0.0
        %1268 = vmatprep.subr.mxu0 0.0
        %1269 = vmatpush1.msra.mxu0 0.0
        %1270 = vmatprep.subr.mxu0 0.0
        %1271 = vmatpush1.msra.mxu0 0.0
        %1272 = vmatprep.subr.mxu0 0.0
        %1273 = vmatpush1.msra.mxu0 0.0
        %1274 = vmatprep.subr.mxu0 0.0
        %1275 = vmatpush1.msra.mxu0 0.0
        %1276 = vmatprep.subr.mxu0 0.0
        %1277 = vmatpush1.msra.mxu0 0.0
        %1278 = vmatprep.subr.mxu0 0.0
        %1279 = vmatpush1.msra.mxu0 0.0
        %1280 = vmatprep.subr.mxu0 0.0
        %1281 = vmatpush1.msra.mxu0 0.0
        %1282 = vmatprep.subr.mxu0 0.0
        %1283 = vmatpush1.msra.mxu0 0.0
        %1284 = vmatprep.subr.mxu0 0.0
        %1285 = vmatpush1.msra.mxu0 0.0
        %1286 = vmatprep.subr.mxu0 0.0
        %1287 = vmatpush1.msra.mxu0 0.0
        %1288 = vmatprep.subr.mxu0 0.0
        %1289 = vmatpush1.msra.mxu0 0.0
        %1290 = vmatprep.subr.mxu0 0.0
        %1291 = vmatpush1.msra.mxu0 0.0
        %1292 = vmatprep.subr.mxu0 0.0
        %1293 = vmatpush1.msra.mxu0 0.0
        %1294 = vmatprep.subr.mxu0 0.0
        %1295 = vmatpush1.msra.mxu0 0.0
        %1296 = vmatprep.subr.mxu0 0.0
        %1297 = vmatpush1.msra.mxu0 0.0
        %1298 = vmatprep.subr.mxu0 0.0
        %1299 = vmatpush1.msra.mxu0 0.0
        %1300 = vmatprep.subr.mxu0 0.0
        %1301 = vmatpush1.msra.mxu0 0.0
        %1302 = vmatprep.subr.mxu0 0.0
        %1303 = vmatpush1.msra.mxu0 0.0
        %1304 = vmatprep.subr.mxu0 0.0
        %1305 = vmatpush1.msra.mxu0 0.0
        %1306 = vmatprep.subr.mxu0 0.0
        %1307 = vmatpush1.msra.mxu0 0.0
        %1308 = vmatprep.subr.mxu0 0.0
        %1309 = vmatpush1.msra.mxu0 0.0
        %1310 = vmatprep.subr.mxu0 0.0
        %1311 = vmatpush1.msra.mxu0 0.0
        %1312 = vmatprep.subr.mxu0 0.0
        %1313 = vmatpush1.msra.mxu0 0.0
        %1314 = vmatprep.subr.mxu0 0.0
        %1315 = vmatpush1.msra.mxu0 0.0
        %1316 = vmatprep.subr.mxu0 0.0
        %1317 = vmatpush1.msra.mxu0 0.0
        %1318 = vmatprep.subr.mxu0 0.0
        %1319 = vmatpush1.msra.mxu0 0.0
        %1320 = vmatprep.subr.mxu0 0.0
        %1321 = vmatpush1.msra.mxu0 0.0
        %1322 = vmatprep.mubr.f32.mxu0 0.0
        %1323 = vmatmul.mubr.f32.gmra.mrb[0].mxu0 %v1185
        %v1324 = vpop.f32.mrb[0].mxu0
        %v1325 = vadd.f32 %v1174, %v1324
        %v1326 = vpop.f32.mrb[0].mxu0
        %v1327 = vadd.f32 %v1178, %v1326
        %1328 = vdwg.mxu0
        %vm1329 = vcmp.ge.f32.partialorder %v1254, 0.0
        %vm1330 = vcmp.ge.f32.partialorder %v1256, 0.0
        %vm1331 = vcmp.ge.f32.partialorder %v1325, 0.0
        %vm1332 = vcmp.ge.f32.partialorder %v1327, 0.0
        %v1333 = vmul.f32 %v1254, 0.1
        %v1334 = vmul.f32 %v1256, 0.1
        %v1335 = vmul.f32 %v1325, 0.1
        %v1336 = vmul.f32 %v1327, 0.1
        %v1337 = vsel %vm1329, %v1254, %v1333
        %v1338 = vsel %vm1330, %v1256, %v1334
        %v1339 = vsel %vm1331, %v1325, %v1335
        %v1340 = vsel %vm1332, %v1327, %v1336
        %v1341 = vld [vmem:[%s948] sm:$0x1]
        %v1342 = vld [vmem:[#allocation16] sm:$0xff]
        %v1343 = vld [vmem:[#allocation16 + $0x8] sm:$0xff]
        %v1344 = vld [vmem:[#allocation16 + $0x10] sm:$0xff]
        %v1345 = vld [vmem:[#allocation16 + $0x18] sm:$0xff]
        %v1346 = vld [vmem:[#allocation16 + $0x20] sm:$0xff]
        %v1347 = vld [vmem:[#allocation16 + $0x28] sm:$0xff]
        %v1348 = vld [vmem:[#allocation16 + $0x30] sm:$0xff]
        %v1349 = vld [vmem:[#allocation16 + $0x38] sm:$0xff]
        %v1350 = vld [vmem:[#allocation16 + $0x40] sm:$0xff]
        %v1351 = vld [vmem:[#allocation16 + $0x48] sm:$0xff]
        %v1352 = vld [vmem:[#allocation16 + $0x50] sm:$0xff]
        %v1353 = vld [vmem:[#allocation16 + $0x58] sm:$0xff]
        %v1354 = vld [vmem:[#allocation16 + $0x60] sm:$0xff]
        %v1355 = vld [vmem:[#allocation16 + $0x68] sm:$0xff]
        %v1356 = vld [vmem:[#allocation16 + $0x70] sm:$0xff]
        %v1357 = vld [vmem:[#allocation16 + $0x78] sm:$0xff]
        %v1358 = vld [vmem:[#allocation17] sm:$0x1]
        %v1360 = vlaneseq
        %v1361 = vshrl.u32 %v1360, 7
        %v1362 = vsub.s32 0, %v1361
        %v1363 = vrot.slane %v1358, %v1362
        %1365 = vmatprep.subr.mxu0 0.0
        %1366 = vmatpush1.msra.mxu0 %v1342
        %1367 = vmatprep.subr.mxu0 0.0
        %1368 = vmatpush1.msra.mxu0 %v1343
        %1369 = vmatprep.subr.mxu0 0.0
        %1370 = vmatpush1.msra.mxu0 %v1344
        %1371 = vmatprep.subr.mxu0 0.0
        %1372 = vmatpush1.msra.mxu0 %v1345
        %1373 = vmatprep.subr.mxu0 0.0
        %1374 = vmatpush1.msra.mxu0 %v1346
        %1375 = vmatprep.subr.mxu0 0.0
        %1376 = vmatpush1.msra.mxu0 %v1347
        %1377 = vmatprep.subr.mxu0 0.0
        %1378 = vmatpush1.msra.mxu0 %v1348
        %1379 = vmatprep.subr.mxu0 0.0
        %1380 = vmatpush1.msra.mxu0 %v1349
        %1381 = vmatprep.subr.mxu0 0.0
        %1382 = vmatpush1.msra.mxu0 %v1350
        %1383 = vmatprep.subr.mxu0 0.0
        %1384 = vmatpush1.msra.mxu0 %v1351
        %1385 = vmatprep.subr.mxu0 0.0
        %1386 = vmatpush1.msra.mxu0 %v1352
        %1387 = vmatprep.subr.mxu0 0.0
        %1388 = vmatpush1.msra.mxu0 %v1353
        %1389 = vmatprep.subr.mxu0 0.0
        %1390 = vmatpush1.msra.mxu0 %v1354
        %1391 = vmatprep.subr.mxu0 0.0
        %1392 = vmatpush1.msra.mxu0 %v1355
        %1393 = vmatprep.subr.mxu0 0.0
        %1394 = vmatpush1.msra.mxu0 %v1356
        %1395 = vmatprep.subr.mxu0 0.0
        %1396 = vmatpush1.msra.mxu0 %v1357
        %1397 = vmatprep.subr.mxu0 0.0
        %1398 = vmatpush1.msra.mxu0 0.0
        %1399 = vmatprep.subr.mxu0 0.0
        %1400 = vmatpush1.msra.mxu0 0.0
        %1401 = vmatprep.subr.mxu0 0.0
        %1402 = vmatpush1.msra.mxu0 0.0
        %1403 = vmatprep.subr.mxu0 0.0
        %1404 = vmatpush1.msra.mxu0 0.0
        %1405 = vmatprep.subr.mxu0 0.0
        %1406 = vmatpush1.msra.mxu0 0.0
        %1407 = vmatprep.subr.mxu0 0.0
        %1408 = vmatpush1.msra.mxu0 0.0
        %1409 = vmatprep.subr.mxu0 0.0
        %1410 = vmatpush1.msra.mxu0 0.0
        %1411 = vmatprep.subr.mxu0 0.0
        %1412 = vmatpush1.msra.mxu0 0.0
        %1413 = vmatprep.subr.mxu0 0.0
        %1414 = vmatpush1.msra.mxu0 0.0
        %1415 = vmatprep.subr.mxu0 0.0
        %1416 = vmatpush1.msra.mxu0 0.0
        %1417 = vmatprep.subr.mxu0 0.0
        %1418 = vmatpush1.msra.mxu0 0.0
        %1419 = vmatprep.subr.mxu0 0.0
        %1420 = vmatpush1.msra.mxu0 0.0
        %1421 = vmatprep.subr.mxu0 0.0
        %1422 = vmatpush1.msra.mxu0 0.0
        %1423 = vmatprep.subr.mxu0 0.0
        %1424 = vmatpush1.msra.mxu0 0.0
        %1425 = vmatprep.subr.mxu0 0.0
        %1426 = vmatpush1.msra.mxu0 0.0
        %1427 = vmatprep.subr.mxu0 0.0
        %1428 = vmatpush1.msra.mxu0 0.0
        %1429 = vmatprep.mubr.f32.mxu0 0.0
        %1430 = vmatmul.mubr.f32.gmra.mrb[0].mxu0 %v1337
        %v1431 = vpop.f32.mrb[0].mxu0
        %v1432 = vadd.f32 %v1363, %v1431
        %v1433 = vpop.f32.mrb[0].mxu0
        %1434 = vdwg.mxu0
        %v1435 = vld [vmem:[%s957] sm:$0xff]
        %1436 = vmatprep.subr.mxu0 0.0
        %1437 = vmatpush1.xpose.msra.mxu0 %v1435
        %1438 = vmatprep.subr.mxu0 0.0
        %1439 = vmatpush1.xpose.msra.mxu0 0.0
        %1440 = vmatprep.subr.mxu0 0.0
        %1441 = vmatpush1.xpose.msra.mxu0 0.0
        %1442 = vmatprep.subr.mxu0 0.0
        %1443 = vmatpush1.xpose.msra.mxu0 0.0
        %1444 = vmatprep.subr.mxu0 0.0
        %1445 = vmatpush1.xpose.msra.mxu0 0.0
        %1446 = vmatprep.subr.mxu0 0.0
        %1447 = vmatpush1.xpose.msra.mxu0 0.0
        %1448 = vmatprep.subr.mxu0 0.0
        %1449 = vmatpush1.xpose.msra.mxu0 0.0
        %1450 = vmatprep.subr.mxu0 0.0
        %1451 = vmatpush1.xpose.msra.mxu0 0.0
        %1452 = vmatprep.subr.mxu0 0.0
        %1453 = vmatpush1.xpose.msra.mxu0 0.0
        %1454 = vmatprep.subr.mxu0 0.0
        %1455 = vmatpush1.xpose.msra.mxu0 0.0
        %1456 = vmatprep.subr.mxu0 0.0
        %1457 = vmatpush1.xpose.msra.mxu0 0.0
        %1458 = vmatprep.subr.mxu0 0.0
        %1459 = vmatpush1.xpose.msra.mxu0 0.0
        %1460 = vmatprep.subr.mxu0 0.0
        %1461 = vmatpush1.xpose.msra.mxu0 0.0
        %1462 = vmatprep.subr.mxu0 0.0
        %1463 = vmatpush1.xpose.msra.mxu0 0.0
        %1464 = vmatprep.subr.mxu0 0.0
        %1465 = vmatpush1.xpose.msra.mxu0 0.0
        %1466 = vmatprep.subr.mxu0 0.0
        %1467 = vmatpush1.xpose.msra.mxu0 0.0
        %1468 = vmatprep.subr.mxu0 0.0
        %1469 = vmatpush1.xpose.msra.mxu0 0.0
        %1470 = vmatprep.subr.mxu0 0.0
        %1471 = vmatpush1.xpose.msra.mxu0 0.0
        %1472 = vmatprep.subr.mxu0 0.0
        %1473 = vmatpush1.xpose.msra.mxu0 0.0
        %1474 = vmatprep.subr.mxu0 0.0
        %1475 = vmatpush1.xpose.msra.mxu0 0.0
        %1476 = vmatprep.subr.mxu0 0.0
        %1477 = vmatpush1.xpose.msra.mxu0 0.0
        %1478 = vmatprep.subr.mxu0 0.0
        %1479 = vmatpush1.xpose.msra.mxu0 0.0
        %1480 = vmatprep.subr.mxu0 0.0
        %1481 = vmatpush1.xpose.msra.mxu0 0.0
        %1482 = vmatprep.subr.mxu0 0.0
        %1483 = vmatpush1.xpose.msra.mxu0 0.0
        %1484 = vmatprep.subr.mxu0 0.0
        %1485 = vmatpush1.xpose.msra.mxu0 0.0
        %1486 = vmatprep.subr.mxu0 0.0
        %1487 = vmatpush1.xpose.msra.mxu0 0.0
        %1488 = vmatprep.subr.mxu0 0.0
        %1489 = vmatpush1.xpose.msra.mxu0 0.0
        %1490 = vmatprep.subr.mxu0 0.0
        %1491 = vmatpush1.xpose.msra.mxu0 0.0
        %1492 = vmatprep.subr.mxu0 0.0
        %1493 = vmatpush1.xpose.msra.mxu0 0.0
        %1494 = vmatprep.subr.mxu0 0.0
        %1495 = vmatpush1.xpose.msra.mxu0 0.0
        %1496 = vmatprep.subr.mxu0 0.0
        %1497 = vmatpush1.xpose.msra.mxu0 0.0
        %1498 = vmatprep.subr.mxu0 0.0
        %1499 = vmatpush1.xpose.msra.mxu0 0.0
        %1500 = vmatprep.mubr.f32.mxu0 0.0
        %1501 = vmatmul.mubr.f32.gmra.mrb[0].mxu0 %v1432
        %v1502 = vpop.f32.mrb[0].mxu0
        %v1503 = vadd.f32 0.0, %v1502
        %v1504 = vpop.f32.mrb[0].mxu0
        %1505 = vdwg.mxu0
        %vm1506 = vcmp.gt.f32.partialorder %v1341, 0.0
        %v1507 = vsel %vm1506, 1, 0
        %v1508 = vlaneseq
        %v1509 = vshrl.u32 %v1508, 7
        %v1510 = vsub.s32 0, %v1509
        %v1511 = vrot.slane %v1507, %v1510
        %vm1512 = vcmp.eq.s32.totalorder %v1511, 1
        %v1513 = vsel %vm1512, %v1503, -inf
        %vm1514 = vcmask 64512
        %1515 = vst.msk [vmem:[%s1120] sm:$0xff] %vm1514, %v1513
        %v1516 = vld [vmem:[#allocation19] sm:$0xff]
        %v1517 = vld [vmem:[#allocation19 + $0x8] sm:$0xff]
        %v1518 = vld [vmem:[#allocation19 + $0x10] sm:$0xff]
        %v1519 = vld [vmem:[#allocation19 + $0x18] sm:$0xff]
        %v1520 = vld [vmem:[#allocation19 + $0x20] sm:$0xff]
        %v1521 = vld [vmem:[#allocation19 + $0x28] sm:$0xff]
        %v1522 = vld [vmem:[#allocation19 + $0x30] sm:$0xff]
        %v1523 = vld [vmem:[#allocation19 + $0x38] sm:$0xff]
        %v1524 = vld [vmem:[#allocation19 + $0x40] sm:$0xff]
        %v1525 = vld [vmem:[#allocation19 + $0x48] sm:$0xff]
        %v1526 = vld [vmem:[#allocation19 + $0x50] sm:$0xff]
        %v1527 = vld [vmem:[#allocation19 + $0x58] sm:$0xff]
        %v1528 = vld [vmem:[#allocation19 + $0x60] sm:$0xff]
        %v1529 = vld [vmem:[#allocation19 + $0x68] sm:$0xff]
        %v1530 = vld [vmem:[#allocation19 + $0x70] sm:$0xff]
        %v1531 = vld [vmem:[#allocation19 + $0x78] sm:$0xff]
        %v1532 = vld [vmem:[#allocation19 + $0x80] sm:$0xff]
        %v1533 = vld [vmem:[#allocation19 + $0x88] sm:$0xff]
        %v1534 = vld [vmem:[#allocation19 + $0x90] sm:$0xff]
        %v1535 = vld [vmem:[#allocation19 + $0x98] sm:$0xff]
        %v1536 = vld [vmem:[#allocation19 + $0xa0] sm:$0xff]
        %v1537 = vld [vmem:[#allocation19 + $0xa8] sm:$0xff]
        %v1538 = vld [vmem:[#allocation19 + $0xb0] sm:$0xff]
        %v1539 = vld [vmem:[#allocation19 + $0xb8] sm:$0xff]
        %v1540 = vld [vmem:[#allocation19 + $0xc0] sm:$0xff]
        %v1541 = vld [vmem:[#allocation19 + $0xc8] sm:$0xff]
        %v1542 = vld [vmem:[#allocation19 + $0xd0] sm:$0xff]
        %v1543 = vld [vmem:[#allocation19 + $0xd8] sm:$0xff]
        %v1544 = vld [vmem:[#allocation19 + $0xe0] sm:$0xff]
        %v1545 = vld [vmem:[#allocation19 + $0xe8] sm:$0xff]
        %v1546 = vld [vmem:[#allocation19 + $0xf0] sm:$0xff]
        %v1547 = vld [vmem:[#allocation19 + $0xf8] sm:$0xff]
        %v1548 = vld [vmem:[#allocation19 + $0x100] sm:$0xff]
        %v1549 = vld [vmem:[#allocation19 + $0x108] sm:$0xff]
        %v1550 = vld [vmem:[#allocation19 + $0x110] sm:$0xff]
        %v1551 = vld [vmem:[#allocation19 + $0x118] sm:$0xff]
        %v1552 = vld [vmem:[#allocation19 + $0x120] sm:$0xff]
        %v1553 = vld [vmem:[#allocation19 + $0x128] sm:$0xff]
        %v1554 = vld [vmem:[#allocation19 + $0x130] sm:$0xff]
        %v1555 = vld [vmem:[#allocation19 + $0x138] sm:$0xff]
        %v1556 = vld [vmem:[#allocation19 + $0x140] sm:$0xff]
        %v1557 = vld [vmem:[#allocation19 + $0x148] sm:$0xff]
        %v1558 = vld [vmem:[#allocation19 + $0x150] sm:$0xff]
        %v1559 = vld [vmem:[#allocation19 + $0x158] sm:$0xff]
        %v1560 = vld [vmem:[#allocation19 + $0x160] sm:$0xff]
        %v1561 = vld [vmem:[#allocation19 + $0x168] sm:$0xff]
        %v1562 = vld [vmem:[#allocation19 + $0x170] sm:$0xff]
        %v1563 = vld [vmem:[#allocation19 + $0x178] sm:$0xff]
        %v1564 = vld [vmem:[#allocation19 + $0x180] sm:$0xff]
        %v1565 = vld [vmem:[#allocation19 + $0x188] sm:$0xff]
        %v1566 = vld [vmem:[#allocation19 + $0x190] sm:$0xff]
        %v1567 = vld [vmem:[#allocation19 + $0x198] sm:$0xff]
        %v1568 = vld [vmem:[#allocation19 + $0x1a0] sm:$0xff]
        %v1569 = vld [vmem:[#allocation19 + $0x1a8] sm:$0xff]
        %v1570 = vld [vmem:[#allocation19 + $0x1b0] sm:$0xff]
        %v1571 = vld [vmem:[#allocation19 + $0x1b8] sm:$0xff]
        %v1572 = vld [vmem:[#allocation19 + $0x1c0] sm:$0xff]
        %v1573 = vld [vmem:[#allocation19 + $0x1c8] sm:$0xff]
        %v1574 = vld [vmem:[#allocation19 + $0x1d0] sm:$0xff]
        %v1575 = vld [vmem:[#allocation19 + $0x1d8] sm:$0xff]
        %v1576 = vld [vmem:[#allocation19 + $0x1e0] sm:$0xff]
        %v1577 = vld [vmem:[#allocation19 + $0x1e8] sm:$0xff]
        %v1578 = vld [vmem:[#allocation19 + $0x1f0] sm:$0xff]
        %v1579 = vld [vmem:[#allocation19 + $0x1f8] sm:$0xff]
        %v1580 = vld [vmem:[#allocation20] sm:$0xf]
        %v1582 = vlaneseq
        %v1583 = vshrl.u32 %v1582, 7
        %v1584 = vsub.s32 0, %v1583
        %v1585 = vrot.slane %v1580, %v1584
        %v1586 = vlaneseq
        %v1587 = vshrl.u32 %v1586, 7
        %v1588 = vsub.s32 1, %v1587
        %v1589 = vrot.slane %v1580, %v1588
        %v1590 = vlaneseq
        %v1591 = vshrl.u32 %v1590, 7
        %v1592 = vsub.s32 2, %v1591
        %v1593 = vrot.slane %v1580, %v1592
        %v1594 = vlaneseq
        %v1595 = vshrl.u32 %v1594, 7
        %v1596 = vsub.s32 3, %v1595
        %v1597 = vrot.slane %v1580, %v1596
        %1602 = vmatprep.subr.mxu0 %v1517
        %1603 = vmatpush1.msra.mxu0 %v1516
        %1604 = vmatprep.subr.mxu0 %v1521
        %1605 = vmatpush1.msra.mxu0 %v1520
        %1606 = vmatprep.subr.mxu0 %v1525
        %1607 = vmatpush1.msra.mxu0 %v1524
        %1608 = vmatprep.subr.mxu0 %v1529
        %1609 = vmatpush1.msra.mxu0 %v1528
        %1610 = vmatprep.subr.mxu0 %v1533
        %1611 = vmatpush1.msra.mxu0 %v1532
        %1612 = vmatprep.subr.mxu0 %v1537
        %1613 = vmatpush1.msra.mxu0 %v1536
        %1614 = vmatprep.subr.mxu0 %v1541
        %1615 = vmatpush1.msra.mxu0 %v1540
        %1616 = vmatprep.subr.mxu0 %v1545
        %1617 = vmatpush1.msra.mxu0 %v1544
        %1618 = vmatprep.subr.mxu0 %v1549
        %1619 = vmatpush1.msra.mxu0 %v1548
        %1620 = vmatprep.subr.mxu0 %v1553
        %1621 = vmatpush1.msra.mxu0 %v1552
        %1622 = vmatprep.subr.mxu0 %v1557
        %1623 = vmatpush1.msra.mxu0 %v1556
        %1624 = vmatprep.subr.mxu0 %v1561
        %1625 = vmatpush1.msra.mxu0 %v1560
        %1626 = vmatprep.subr.mxu0 %v1565
        %1627 = vmatpush1.msra.mxu0 %v1564
        %1628 = vmatprep.subr.mxu0 %v1569
        %1629 = vmatpush1.msra.mxu0 %v1568
        %1630 = vmatprep.subr.mxu0 %v1573
        %1631 = vmatpush1.msra.mxu0 %v1572
        %1632 = vmatprep.subr.mxu0 %v1577
        %1633 = vmatpush1.msra.mxu0 %v1576
        %1634 = vmatprep.subr.mxu0 0.0
        %1635 = vmatpush1.msra.mxu0 0.0
        %1636 = vmatprep.subr.mxu0 0.0
        %1637 = vmatpush1.msra.mxu0 0.0
        %1638 = vmatprep.subr.mxu0 0.0
        %1639 = vmatpush1.msra.mxu0 0.0
        %1640 = vmatprep.subr.mxu0 0.0
        %1641 = vmatpush1.msra.mxu0 0.0
        %1642 = vmatprep.subr.mxu0 0.0
        %1643 = vmatpush1.msra.mxu0 0.0
        %1644 = vmatprep.subr.mxu0 0.0
        %1645 = vmatpush1.msra.mxu0 0.0
        %1646 = vmatprep.subr.mxu0 0.0
        %1647 = vmatpush1.msra.mxu0 0.0
        %1648 = vmatprep.subr.mxu0 0.0
        %1649 = vmatpush1.msra.mxu0 0.0
        %1650 = vmatprep.subr.mxu0 0.0
        %1651 = vmatpush1.msra.mxu0 0.0
        %1652 = vmatprep.subr.mxu0 0.0
        %1653 = vmatpush1.msra.mxu0 0.0
        %1654 = vmatprep.subr.mxu0 0.0
        %1655 = vmatpush1.msra.mxu0 0.0
        %1656 = vmatprep.subr.mxu0 0.0
        %1657 = vmatpush1.msra.mxu0 0.0
        %1658 = vmatprep.subr.mxu0 0.0
        %1659 = vmatpush1.msra.mxu0 0.0
        %1660 = vmatprep.subr.mxu0 0.0
        %1661 = vmatpush1.msra.mxu0 0.0
        %1662 = vmatprep.subr.mxu0 0.0
        %1663 = vmatpush1.msra.mxu0 0.0
        %1664 = vmatprep.subr.mxu0 0.0
        %1665 = vmatpush1.msra.mxu0 0.0
        %1666 = vmatprep.mubr.f32.mxu0 0.0
        %1667 = vmatmul.mubr.f32.gmra.mrb[0].mxu0 %v1338
        %v1668 = vpop.f32.mrb[0].mxu0
        %v1669 = vadd.f32 %v1585, %v1668
        %v1670 = vpop.f32.mrb[0].mxu0
        %v1671 = vadd.f32 %v1589, %v1670
        %1672 = vdwg.mxu0
        %1673 = vmatprep.subr.mxu0 %v1519
        %1674 = vmatpush1.msra.mxu0 %v1518
        %1675 = vmatprep.subr.mxu0 %v1523
        %1676 = vmatpush1.msra.mxu0 %v1522
        %1677 = vmatprep.subr.mxu0 %v1527
        %1678 = vmatpush1.msra.mxu0 %v1526
        %1679 = vmatprep.subr.mxu0 %v1531
        %1680 = vmatpush1.msra.mxu0 %v1530
        %1681 = vmatprep.subr.mxu0 %v1535
        %1682 = vmatpush1.msra.mxu0 %v1534
        %1683 = vmatprep.subr.mxu0 %v1539
        %1684 = vmatpush1.msra.mxu0 %v1538
        %1685 = vmatprep.subr.mxu0 %v1543
        %1686 = vmatpush1.msra.mxu0 %v1542
        %1687 = vmatprep.subr.mxu0 %v1547
        %1688 = vmatpush1.msra.mxu0 %v1546
        %1689 = vmatprep.subr.mxu0 %v1551
        %1690 = vmatpush1.msra.mxu0 %v1550
        %1691 = vmatprep.subr.mxu0 %v1555
        %1692 = vmatpush1.msra.mxu0 %v1554
        %1693 = vmatprep.subr.mxu0 %v1559
        %1694 = vmatpush1.msra.mxu0 %v1558
        %1695 = vmatprep.subr.mxu0 %v1563
        %1696 = vmatpush1.msra.mxu0 %v1562
        %1697 = vmatprep.subr.mxu0 %v1567
        %1698 = vmatpush1.msra.mxu0 %v1566
        %1699 = vmatprep.subr.mxu0 %v1571
        %1700 = vmatpush1.msra.mxu0 %v1570
        %1701 = vmatprep.subr.mxu0 %v1575
        %1702 = vmatpush1.msra.mxu0 %v1574
        %1703 = vmatprep.subr.mxu0 %v1579
        %1704 = vmatpush1.msra.mxu0 %v1578
        %1705 = vmatprep.subr.mxu0 0.0
        %1706 = vmatpush1.msra.mxu0 0.0
        %1707 = vmatprep.subr.mxu0 0.0
        %1708 = vmatpush1.msra.mxu0 0.0
        %1709 = vmatprep.subr.mxu0 0.0
        %1710 = vmatpush1.msra.mxu0 0.0
        %1711 = vmatprep.subr.mxu0 0.0
        %1712 = vmatpush1.msra.mxu0 0.0
        %1713 = vmatprep.subr.mxu0 0.0
        %1714 = vmatpush1.msra.mxu0 0.0
        %1715 = vmatprep.subr.mxu0 0.0
        %1716 = vmatpush1.msra.mxu0 0.0
        %1717 = vmatprep.subr.mxu0 0.0
        %1718 = vmatpush1.msra.mxu0 0.0
        %1719 = vmatprep.subr.mxu0 0.0
        %1720 = vmatpush1.msra.mxu0 0.0
        %1721 = vmatprep.subr.mxu0 0.0
        %1722 = vmatpush1.msra.mxu0 0.0
        %1723 = vmatprep.subr.mxu0 0.0
        %1724 = vmatpush1.msra.mxu0 0.0
        %1725 = vmatprep.subr.mxu0 0.0
        %1726 = vmatpush1.msra.mxu0 0.0
        %1727 = vmatprep.subr.mxu0 0.0
        %1728 = vmatpush1.msra.mxu0 0.0
        %1729 = vmatprep.subr.mxu0 0.0
        %1730 = vmatpush1.msra.mxu0 0.0
        %1731 = vmatprep.subr.mxu0 0.0
        %1732 = vmatpush1.msra.mxu0 0.0
        %1733 = vmatprep.subr.mxu0 0.0
        %1734 = vmatpush1.msra.mxu0 0.0
        %1735 = vmatprep.subr.mxu0 0.0
        %1736 = vmatpush1.msra.mxu0 0.0
        %1737 = vmatprep.mubr.f32.mxu0 0.0
        %1738 = vmatmul.mubr.f32.gmra.mrb[0].mxu0 %v1338
        %v1739 = vpop.f32.mrb[0].mxu0
        %v1740 = vadd.f32 %v1593, %v1739
        %v1741 = vpop.f32.mrb[0].mxu0
        %v1742 = vadd.f32 %v1597, %v1741
        %1743 = vdwg.mxu0
        %v1748 = vcombine.low %v1669, %v1671
        %v1749 = vcombine.high %v1669, %v1671
        %v1750 = vcombine.low %v1740, %v1742
        %v1751 = vcombine.high %v1740, %v1742
        %v1753 = vunpack.c.l.s4 1983009808
        %v1754 = vunpack.c.0.s8 %v1753
        %v1755 = vlaneseq
        %v1756 = vshrl.u32 %v1755, 7
        %v1757 = vsub.s32 %v1754, %v1756
        %v1758 = vrot.slane %v1748, %v1757
        %v1760 = vunpack.c.l.s4 1983009808
        %v1761 = vunpack.c.0.s8 %v1760
        %v1762 = vlaneseq
        %v1763 = vshrl.u32 %v1762, 7
        %v1764 = vsub.s32 %v1761, %v1763
        %v1765 = vrot.slane %v1749, %v1764
        %v1767 = vunpack.c.l.s4 1983009808
        %v1768 = vunpack.c.0.s8 %v1767
        %v1769 = vlaneseq
        %v1770 = vshrl.u32 %v1769, 7
        %v1771 = vsub.s32 %v1768, %v1770
        %v1772 = vrot.slane %v1750, %v1771
        %v1774 = vunpack.c.l.s4 1983009808
        %v1775 = vunpack.c.0.s8 %v1774
        %v1776 = vlaneseq
        %v1777 = vshrl.u32 %v1776, 7
        %v1778 = vsub.s32 %v1775, %v1777
        %v1779 = vrot.slane %v1751, %v1778
        %v1780 = vcombine.low %v1758, %v1772
        %v1781 = vcombine.high %v1758, %v1772
        %v1782 = vcombine.low %v1765, %v1779
        %v1783 = vcombine.high %v1765, %v1779
        %v1789 = vunpack.c.l.s4 1966171168
        %v1790 = vunpack.c.0.s8 %v1789
        %v1791 = vlaneseq
        %v1792 = vshrl.u32 %v1791, 7
        %v1793 = vsub.s32 %v1790, %v1792
        %v1794 = vrot.slane %v1780, %v1793
        %v1796 = vunpack.c.l.s4 1966171168
        %v1797 = vunpack.c.0.s8 %v1796
        %v1798 = vlaneseq
        %v1799 = vshrl.u32 %v1798, 7
        %v1800 = vsub.s32 %v1797, %v1799
        %v1801 = vrot.slane %v1781, %v1800
        %v1803 = vunpack.c.l.s4 1966171168
        %v1804 = vunpack.c.0.s8 %v1803
        %v1805 = vlaneseq
        %v1806 = vshrl.u32 %v1805, 7
        %v1807 = vsub.s32 %v1804, %v1806
        %v1808 = vrot.slane %v1782, %v1807
        %v1810 = vunpack.c.l.s4 1966171168
        %v1811 = vunpack.c.0.s8 %v1810
        %v1812 = vlaneseq
        %v1813 = vshrl.u32 %v1812, 7
        %v1814 = vsub.s32 %v1811, %v1813
        %v1815 = vrot.slane %v1783, %v1814
        %v1816 = vld [vmem:[%s966] sm:$0xff]
        %1817 = vmatprep.subr.mxu0 0.0
        %1818 = vmatpush1.xpose.msra.mxu0 %v1816
        %1819 = vmatprep.subr.mxu0 0.0
        %1820 = vmatpush1.xpose.msra.mxu0 0.0
        %1821 = vmatprep.subr.mxu0 0.0
        %1822 = vmatpush1.xpose.msra.mxu0 0.0
        %1823 = vmatprep.subr.mxu0 0.0
        %1824 = vmatpush1.xpose.msra.mxu0 0.0
        %1825 = vmatprep.subr.mxu0 0.0
        %1826 = vmatpush1.xpose.msra.mxu0 0.0
        %1827 = vmatprep.subr.mxu0 0.0
        %1828 = vmatpush1.xpose.msra.mxu0 0.0
        %1829 = vmatprep.subr.mxu0 0.0
        %1830 = vmatpush1.xpose.msra.mxu0 0.0
        %1831 = vmatprep.subr.mxu0 0.0
        %1832 = vmatpush1.xpose.msra.mxu0 0.0
        %1833 = vmatprep.subr.mxu0 0.0
        %1834 = vmatpush1.xpose.msra.mxu0 0.0
        %1835 = vmatprep.subr.mxu0 0.0
        %1836 = vmatpush1.xpose.msra.mxu0 0.0
        %1837 = vmatprep.subr.mxu0 0.0
        %1838 = vmatpush1.xpose.msra.mxu0 0.0
        %1839 = vmatprep.subr.mxu0 0.0
        %1840 = vmatpush1.xpose.msra.mxu0 0.0
        %1841 = vmatprep.subr.mxu0 0.0
        %1842 = vmatpush1.xpose.msra.mxu0 0.0
        %1843 = vmatprep.subr.mxu0 0.0
        %1844 = vmatpush1.xpose.msra.mxu0 0.0
        %1845 = vmatprep.subr.mxu0 0.0
        %1846 = vmatpush1.xpose.msra.mxu0 0.0
        %1847 = vmatprep.subr.mxu0 0.0
        %1848 = vmatpush1.xpose.msra.mxu0 0.0
        %1849 = vmatprep.subr.mxu0 0.0
        %1850 = vmatpush1.xpose.msra.mxu0 0.0
        %1851 = vmatprep.subr.mxu0 0.0
        %1852 = vmatpush1.xpose.msra.mxu0 0.0
        %1853 = vmatprep.subr.mxu0 0.0
        %1854 = vmatpush1.xpose.msra.mxu0 0.0
        %1855 = vmatprep.subr.mxu0 0.0
        %1856 = vmatpush1.xpose.msra.mxu0 0.0
        %1857 = vmatprep.subr.mxu0 0.0
        %1858 = vmatpush1.xpose.msra.mxu0 0.0
        %1859 = vmatprep.subr.mxu0 0.0
        %1860 = vmatpush1.xpose.msra.mxu0 0.0
        %1861 = vmatprep.subr.mxu0 0.0
        %1862 = vmatpush1.xpose.msra.mxu0 0.0
        %1863 = vmatprep.subr.mxu0 0.0
        %1864 = vmatpush1.xpose.msra.mxu0 0.0
        %1865 = vmatprep.subr.mxu0 0.0
        %1866 = vmatpush1.xpose.msra.mxu0 0.0
        %1867 = vmatprep.subr.mxu0 0.0
        %1868 = vmatpush1.xpose.msra.mxu0 0.0
        %1869 = vmatprep.subr.mxu0 0.0
        %1870 = vmatpush1.xpose.msra.mxu0 0.0
        %1871 = vmatprep.subr.mxu0 0.0
        %1872 = vmatpush1.xpose.msra.mxu0 0.0
        %1873 = vmatprep.subr.mxu0 0.0
        %1874 = vmatpush1.xpose.msra.mxu0 0.0
        %1875 = vmatprep.subr.mxu0 0.0
        %1876 = vmatpush1.xpose.msra.mxu0 0.0
        %1877 = vmatprep.subr.mxu0 0.0
        %1878 = vmatpush1.xpose.msra.mxu0 0.0
        %1879 = vmatprep.subr.mxu0 0.0
        %1880 = vmatpush1.xpose.msra.mxu0 0.0
        %1881 = vmatprep.mubr.f32.mxu0 0.0
        %1882 = vmatmul.mubr.f32.gmra.mrb[0].mxu0 %v1794
        %v1883 = vpop.f32.mrb[0].mxu0
        %v1884 = vadd.f32 0.0, %v1883
        %v1885 = vpop.f32.mrb[0].mxu0
        %1886 = vmatprep.mubr.f32.mxu0 0.0
        %1887 = vmatmul.mubr.f32.gmra.mrb[0].mxu0 %v1801
        %v1888 = vpop.f32.mrb[0].mxu0
        %v1889 = vadd.f32 0.0, %v1888
        %v1890 = vpop.f32.mrb[0].mxu0
        %1891 = vmatprep.mubr.f32.mxu0 0.0
        %1892 = vmatmul.mubr.f32.gmra.mrb[0].mxu0 %v1808
        %v1893 = vpop.f32.mrb[0].mxu0
        %v1894 = vadd.f32 0.0, %v1893
        %v1895 = vpop.f32.mrb[0].mxu0
        %1896 = vmatprep.mubr.f32.mxu0 0.0
        %1897 = vmatmul.mubr.f32.gmra.mrb[0].mxu0 %v1815
        %v1898 = vpop.f32.mrb[0].mxu0
        %v1899 = vadd.f32 0.0, %v1898
        %v1900 = vpop.f32.mrb[0].mxu0
        %1901 = vdwg.mxu0
        %v1902 = vld [vmem:[#allocation22] sm:$0xff]
        %v1903 = vld [vmem:[#allocation22 + $0x8] sm:$0xff]
        %v1904 = vld [vmem:[#allocation22 + $0x10] sm:$0xff]
        %v1905 = vld [vmem:[#allocation22 + $0x18] sm:$0xff]
        %v1906 = vld [vmem:[#allocation22 + $0x20] sm:$0xff]
        %v1907 = vld [vmem:[#allocation22 + $0x28] sm:$0xff]
        %v1908 = vld [vmem:[#allocation22 + $0x30] sm:$0xff]
        %v1909 = vld [vmem:[#allocation22 + $0x38] sm:$0xff]
        %v1910 = vld [vmem:[#allocation22 + $0x40] sm:$0xff]
        %v1911 = vld [vmem:[#allocation22 + $0x48] sm:$0xff]
        %v1912 = vld [vmem:[#allocation22 + $0x50] sm:$0xff]
        %v1913 = vld [vmem:[#allocation22 + $0x58] sm:$0xff]
        %v1914 = vld [vmem:[#allocation22 + $0x60] sm:$0xff]
        %v1915 = vld [vmem:[#allocation22 + $0x68] sm:$0xff]
        %v1916 = vld [vmem:[#allocation22 + $0x70] sm:$0xff]
        %v1917 = vld [vmem:[#allocation22 + $0x78] sm:$0xff]
        %v1918 = vld [vmem:[#allocation23] sm:$0x1]
        %v1920 = vlaneseq
        %v1921 = vshrl.u32 %v1920, 7
        %v1922 = vsub.s32 0, %v1921
        %v1923 = vrot.slane %v1918, %v1922
        %1925 = vmatprep.subr.mxu0 0.0
        %1926 = vmatpush1.msra.mxu0 %v1902
        %1927 = vmatprep.subr.mxu0 0.0
        %1928 = vmatpush1.msra.mxu0 %v1903
        %1929 = vmatprep.subr.mxu0 0.0
        %1930 = vmatpush1.msra.mxu0 %v1904
        %1931 = vmatprep.subr.mxu0 0.0
        %1932 = vmatpush1.msra.mxu0 %v1905
        %1933 = vmatprep.subr.mxu0 0.0
        %1934 = vmatpush1.msra.mxu0 %v1906
        %1935 = vmatprep.subr.mxu0 0.0
        %1936 = vmatpush1.msra.mxu0 %v1907
        %1937 = vmatprep.subr.mxu0 0.0
        %1938 = vmatpush1.msra.mxu0 %v1908
        %1939 = vmatprep.subr.mxu0 0.0
        %1940 = vmatpush1.msra.mxu0 %v1909
        %1941 = vmatprep.subr.mxu0 0.0
        %1942 = vmatpush1.msra.mxu0 %v1910
        %1943 = vmatprep.subr.mxu0 0.0
        %1944 = vmatpush1.msra.mxu0 %v1911
        %1945 = vmatprep.subr.mxu0 0.0
        %1946 = vmatpush1.msra.mxu0 %v1912
        %1947 = vmatprep.subr.mxu0 0.0
        %1948 = vmatpush1.msra.mxu0 %v1913
        %1949 = vmatprep.subr.mxu0 0.0
        %1950 = vmatpush1.msra.mxu0 %v1914
        %1951 = vmatprep.subr.mxu0 0.0
        %1952 = vmatpush1.msra.mxu0 %v1915
        %1953 = vmatprep.subr.mxu0 0.0
        %1954 = vmatpush1.msra.mxu0 %v1916
        %1955 = vmatprep.subr.mxu0 0.0
        %1956 = vmatpush1.msra.mxu0 %v1917
        %1957 = vmatprep.subr.mxu0 0.0
        %1958 = vmatpush1.msra.mxu0 0.0
        %1959 = vmatprep.subr.mxu0 0.0
        %1960 = vmatpush1.msra.mxu0 0.0
        %1961 = vmatprep.subr.mxu0 0.0
        %1962 = vmatpush1.msra.mxu0 0.0
        %1963 = vmatprep.subr.mxu0 0.0
        %1964 = vmatpush1.msra.mxu0 0.0
        %1965 = vmatprep.subr.mxu0 0.0
        %1966 = vmatpush1.msra.mxu0 0.0
        %1967 = vmatprep.subr.mxu0 0.0
        %1968 = vmatpush1.msra.mxu0 0.0
        %1969 = vmatprep.subr.mxu0 0.0
        %1970 = vmatpush1.msra.mxu0 0.0
        %1971 = vmatprep.subr.mxu0 0.0
        %1972 = vmatpush1.msra.mxu0 0.0
        %1973 = vmatprep.subr.mxu0 0.0
        %1974 = vmatpush1.msra.mxu0 0.0
        %1975 = vmatprep.subr.mxu0 0.0
        %1976 = vmatpush1.msra.mxu0 0.0
        %1977 = vmatprep.subr.mxu0 0.0
        %1978 = vmatpush1.msra.mxu0 0.0
        %1979 = vmatprep.subr.mxu0 0.0
        %1980 = vmatpush1.msra.mxu0 0.0
        %1981 = vmatprep.subr.mxu0 0.0
        %1982 = vmatpush1.msra.mxu0 0.0
        %1983 = vmatprep.subr.mxu0 0.0
        %1984 = vmatpush1.msra.mxu0 0.0
        %1985 = vmatprep.subr.mxu0 0.0
        %1986 = vmatpush1.msra.mxu0 0.0
        %1987 = vmatprep.subr.mxu0 0.0
        %1988 = vmatpush1.msra.mxu0 0.0
        %1989 = vmatprep.mubr.f32.mxu0 0.0
        %1990 = vmatmul.mubr.f32.gmra.mrb[0].mxu0 %v1338
        %v1991 = vpop.f32.mrb[0].mxu0
        %v1992 = vadd.f32 %v1923, %v1991
        %v1993 = vpop.f32.mrb[0].mxu0
        %1994 = vdwg.mxu0
        %v1999 = vcombine.high %v1884, %v1884
        %v2000 = vcombine.high %v1889, %v1889
        %v2001 = vcombine.high %v1894, %v1894
        %v2002 = vcombine.high %v1899, %v1899
        %v2007 = vlaneseq
        %v2008 = vshrl.u32 %v2007, 7
        %v2009 = vsub.s32 0, %v2008
        %v2010 = vrot.slane %v1992, %v2009
        %2012 = vbcast.lane.b32.xlu0 %v2010, 256
        %v2013 = vpop.permute.xlu0 %2012
        %v2014 = vlaneseq
        %v2015 = vshrl.u32 %v2014, 7
        %v2016 = vsub.s32 1, %v2015
        %v2017 = vrot.slane %v1992, %v2016
        %2019 = vbcast.lane.b32.xlu0 %v2017, 256
        %v2020 = vpop.permute.xlu0 %2019
        %v2021 = vlaneseq
        %v2022 = vshrl.u32 %v2021, 7
        %v2023 = vsub.s32 2, %v2022
        %v2024 = vrot.slane %v1992, %v2023
        %2026 = vbcast.lane.b32.xlu0 %v2024, 256
        %v2027 = vpop.permute.xlu0 %2026
        %v2028 = vlaneseq
        %v2029 = vshrl.u32 %v2028, 7
        %v2030 = vsub.s32 3, %v2029
        %v2031 = vrot.slane %v1992, %v2030
        %2033 = vbcast.lane.b32.xlu0 %v2031, 256
        %v2034 = vpop.permute.xlu0 %2033
        %v2035 = vlaneseq
        %v2036 = vshrl.u32 %v2035, 7
        %v2037 = vsub.s32 4, %v2036
        %v2038 = vrot.slane %v1992, %v2037
        %2040 = vbcast.lane.b32.xlu0 %v2038, 256
        %v2041 = vpop.permute.xlu0 %2040
        %v2042 = vlaneseq
        %v2043 = vshrl.u32 %v2042, 7
        %v2044 = vsub.s32 5, %v2043
        %v2045 = vrot.slane %v1992, %v2044
        %2047 = vbcast.lane.b32.xlu0 %v2045, 256
        %v2048 = vpop.permute.xlu0 %2047
        %v2049 = vlaneseq
        %v2050 = vshrl.u32 %v2049, 7
        %v2051 = vsub.s32 6, %v2050
        %v2052 = vrot.slane %v1992, %v2051
        %2054 = vbcast.lane.b32.xlu0 %v2052, 256
        %v2055 = vpop.permute.xlu0 %2054
        %v2056 = vlaneseq
        %v2057 = vshrl.u32 %v2056, 7
        %v2058 = vsub.s32 7, %v2057
        %v2059 = vrot.slane %v1992, %v2058
        %2061 = vbcast.lane.b32.xlu0 %v2059, 256
        %v2062 = vpop.permute.xlu0 %2061
        %v2063 = vadd.f32 %v1884, %v2013
        %v2064 = vadd.f32 %v1999, %v2020
        %v2065 = vadd.f32 %v1889, %v2027
        %v2066 = vadd.f32 %v2000, %v2034
        %v2067 = vadd.f32 %v1894, %v2041
        %v2068 = vadd.f32 %v2001, %v2048
        %v2069 = vadd.f32 %v1899, %v2055
        %v2070 = vadd.f32 %v2002, %v2062
        %vm2071 = vcmask 60416
        %2072 = vst.msk [vmem:[%s1134] sm:$0xf] %vm2071, %v2063
        %2073 = vst.msk [vmem:[%s1134 + $0x4] sm:$0xf] %vm2071, %v2064
        %2074 = vst.msk [vmem:[%s1134 + $0x8] sm:$0xf] %vm2071, %v2065
        %2075 = vst.msk [vmem:[%s1134 + $0xc] sm:$0xf] %vm2071, %v2066
        %2076 = vst.msk [vmem:[%s1134 + $0x10] sm:$0xf] %vm2071, %v2067
        %2077 = vst.msk [vmem:[%s1134 + $0x14] sm:$0xf] %vm2071, %v2068
        %2078 = vst.msk [vmem:[%s1134 + $0x18] sm:$0xf] %vm2071, %v2069
        %2079 = vst.msk [vmem:[%s1134 + $0x1c] sm:$0xf] %vm2071, %v2070
        %v2080 = vld [vmem:[#allocation25] sm:$0xff]
        %v2081 = vld [vmem:[#allocation25 + $0x8] sm:$0xff]
        %v2082 = vld [vmem:[#allocation25 + $0x10] sm:$0xff]
        %v2083 = vld [vmem:[#allocation25 + $0x18] sm:$0xff]
        %v2084 = vld [vmem:[#allocation25 + $0x20] sm:$0xff]
        %v2085 = vld [vmem:[#allocation25 + $0x28] sm:$0xff]
        %v2086 = vld [vmem:[#allocation25 + $0x30] sm:$0xff]
        %v2087 = vld [vmem:[#allocation25 + $0x38] sm:$0xff]
        %v2088 = vld [vmem:[#allocation25 + $0x40] sm:$0xff]
        %v2089 = vld [vmem:[#allocation25 + $0x48] sm:$0xff]
        %v2090 = vld [vmem:[#allocation25 + $0x50] sm:$0xff]
        %v2091 = vld [vmem:[#allocation25 + $0x58] sm:$0xff]
        %v2092 = vld [vmem:[#allocation25 + $0x60] sm:$0xff]
        %v2093 = vld [vmem:[#allocation25 + $0x68] sm:$0xff]
        %v2094 = vld [vmem:[#allocation25 + $0x70] sm:$0xff]
        %v2095 = vld [vmem:[#allocation25 + $0x78] sm:$0xff]
        %v2096 = vld [vmem:[#allocation26] sm:$0x1]
        %v2098 = vlaneseq
        %v2099 = vshrl.u32 %v2098, 7
        %v2100 = vsub.s32 0, %v2099
        %v2101 = vrot.slane %v2096, %v2100
        %2103 = vmatprep.subr.mxu0 0.0
        %2104 = vmatpush1.msra.mxu0 %v2080
        %2105 = vmatprep.subr.mxu0 0.0
        %2106 = vmatpush1.msra.mxu0 %v2081
        %2107 = vmatprep.subr.mxu0 0.0
        %2108 = vmatpush1.msra.mxu0 %v2082
        %2109 = vmatprep.subr.mxu0 0.0
        %2110 = vmatpush1.msra.mxu0 %v2083
        %2111 = vmatprep.subr.mxu0 0.0
        %2112 = vmatpush1.msra.mxu0 %v2084
        %2113 = vmatprep.subr.mxu0 0.0
        %2114 = vmatpush1.msra.mxu0 %v2085
        %2115 = vmatprep.subr.mxu0 0.0
        %2116 = vmatpush1.msra.mxu0 %v2086
        %2117 = vmatprep.subr.mxu0 0.0
        %2118 = vmatpush1.msra.mxu0 %v2087
        %2119 = vmatprep.subr.mxu0 0.0
        %2120 = vmatpush1.msra.mxu0 %v2088
        %2121 = vmatprep.subr.mxu0 0.0
        %2122 = vmatpush1.msra.mxu0 %v2089
        %2123 = vmatprep.subr.mxu0 0.0
        %2124 = vmatpush1.msra.mxu0 %v2090
        %2125 = vmatprep.subr.mxu0 0.0
        %2126 = vmatpush1.msra.mxu0 %v2091
        %2127 = vmatprep.subr.mxu0 0.0
        %2128 = vmatpush1.msra.mxu0 %v2092
        %2129 = vmatprep.subr.mxu0 0.0
        %2130 = vmatpush1.msra.mxu0 %v2093
        %2131 = vmatprep.subr.mxu0 0.0
        %2132 = vmatpush1.msra.mxu0 %v2094
        %2133 = vmatprep.subr.mxu0 0.0
        %2134 = vmatpush1.msra.mxu0 %v2095
        %2135 = vmatprep.subr.mxu0 0.0
        %2136 = vmatpush1.msra.mxu0 0.0
        %2137 = vmatprep.subr.mxu0 0.0
        %2138 = vmatpush1.msra.mxu0 0.0
        %2139 = vmatprep.subr.mxu0 0.0
        %2140 = vmatpush1.msra.mxu0 0.0
        %2141 = vmatprep.subr.mxu0 0.0
        %2142 = vmatpush1.msra.mxu0 0.0
        %2143 = vmatprep.subr.mxu0 0.0
        %2144 = vmatpush1.msra.mxu0 0.0
        %2145 = vmatprep.subr.mxu0 0.0
        %2146 = vmatpush1.msra.mxu0 0.0
        %2147 = vmatprep.subr.mxu0 0.0
        %2148 = vmatpush1.msra.mxu0 0.0
        %2149 = vmatprep.subr.mxu0 0.0
        %2150 = vmatpush1.msra.mxu0 0.0
        %2151 = vmatprep.subr.mxu0 0.0
        %2152 = vmatpush1.msra.mxu0 0.0
        %2153 = vmatprep.subr.mxu0 0.0
        %2154 = vmatpush1.msra.mxu0 0.0
        %2155 = vmatprep.subr.mxu0 0.0
        %2156 = vmatpush1.msra.mxu0 0.0
        %2157 = vmatprep.subr.mxu0 0.0
        %2158 = vmatpush1.msra.mxu0 0.0
        %2159 = vmatprep.subr.mxu0 0.0
        %2160 = vmatpush1.msra.mxu0 0.0
        %2161 = vmatprep.subr.mxu0 0.0
        %2162 = vmatpush1.msra.mxu0 0.0
        %2163 = vmatprep.subr.mxu0 0.0
        %2164 = vmatpush1.msra.mxu0 0.0
        %2165 = vmatprep.subr.mxu0 0.0
        %2166 = vmatpush1.msra.mxu0 0.0
        %2167 = vmatprep.mubr.f32.mxu0 0.0
        %2168 = vmatmul.mubr.f32.gmra.mrb[0].mxu0 %v1339
        %v2169 = vpop.f32.mrb[0].mxu0
        %v2170 = vadd.f32 %v2101, %v2169
        %v2171 = vpop.f32.mrb[0].mxu0
        %2172 = vdwg.mxu0
        %v2173 = vld [vmem:[%s975] sm:$0xff]
        %2174 = vmatprep.subr.mxu0 0.0
        %2175 = vmatpush1.xpose.msra.mxu0 %v2173
        %2176 = vmatprep.subr.mxu0 0.0
        %2177 = vmatpush1.xpose.msra.mxu0 0.0
        %2178 = vmatprep.subr.mxu0 0.0
        %2179 = vmatpush1.xpose.msra.mxu0 0.0
        %2180 = vmatprep.subr.mxu0 0.0
        %2181 = vmatpush1.xpose.msra.mxu0 0.0
        %2182 = vmatprep.subr.mxu0 0.0
        %2183 = vmatpush1.xpose.msra.mxu0 0.0
        %2184 = vmatprep.subr.mxu0 0.0
        %2185 = vmatpush1.xpose.msra.mxu0 0.0
        %2186 = vmatprep.subr.mxu0 0.0
        %2187 = vmatpush1.xpose.msra.mxu0 0.0
        %2188 = vmatprep.subr.mxu0 0.0
        %2189 = vmatpush1.xpose.msra.mxu0 0.0
        %2190 = vmatprep.subr.mxu0 0.0
        %2191 = vmatpush1.xpose.msra.mxu0 0.0
        %2192 = vmatprep.subr.mxu0 0.0
        %2193 = vmatpush1.xpose.msra.mxu0 0.0
        %2194 = vmatprep.subr.mxu0 0.0
        %2195 = vmatpush1.xpose.msra.mxu0 0.0
        %2196 = vmatprep.subr.mxu0 0.0
        %2197 = vmatpush1.xpose.msra.mxu0 0.0
        %2198 = vmatprep.subr.mxu0 0.0
        %2199 = vmatpush1.xpose.msra.mxu0 0.0
        %2200 = vmatprep.subr.mxu0 0.0
        %2201 = vmatpush1.xpose.msra.mxu0 0.0
        %2202 = vmatprep.subr.mxu0 0.0
        %2203 = vmatpush1.xpose.msra.mxu0 0.0
        %2204 = vmatprep.subr.mxu0 0.0
        %2205 = vmatpush1.xpose.msra.mxu0 0.0
        %2206 = vmatprep.subr.mxu0 0.0
        %2207 = vmatpush1.xpose.msra.mxu0 0.0
        %2208 = vmatprep.subr.mxu0 0.0
        %2209 = vmatpush1.xpose.msra.mxu0 0.0
        %2210 = vmatprep.subr.mxu0 0.0
        %2211 = vmatpush1.xpose.msra.mxu0 0.0
        %2212 = vmatprep.subr.mxu0 0.0
        %2213 = vmatpush1.xpose.msra.mxu0 0.0
        %2214 = vmatprep.subr.mxu0 0.0
        %2215 = vmatpush1.xpose.msra.mxu0 0.0
        %2216 = vmatprep.subr.mxu0 0.0
        %2217 = vmatpush1.xpose.msra.mxu0 0.0
        %2218 = vmatprep.subr.mxu0 0.0
        %2219 = vmatpush1.xpose.msra.mxu0 0.0
        %2220 = vmatprep.subr.mxu0 0.0
        %2221 = vmatpush1.xpose.msra.mxu0 0.0
        %2222 = vmatprep.subr.mxu0 0.0
        %2223 = vmatpush1.xpose.msra.mxu0 0.0
        %2224 = vmatprep.subr.mxu0 0.0
        %2225 = vmatpush1.xpose.msra.mxu0 0.0
        %2226 = vmatprep.subr.mxu0 0.0
        %2227 = vmatpush1.xpose.msra.mxu0 0.0
        %2228 = vmatprep.subr.mxu0 0.0
        %2229 = vmatpush1.xpose.msra.mxu0 0.0
        %2230 = vmatprep.subr.mxu0 0.0
        %2231 = vmatpush1.xpose.msra.mxu0 0.0
        %2232 = vmatprep.subr.mxu0 0.0
        %2233 = vmatpush1.xpose.msra.mxu0 0.0
        %2234 = vmatprep.subr.mxu0 0.0
        %2235 = vmatpush1.xpose.msra.mxu0 0.0
        %2236 = vmatprep.subr.mxu0 0.0
        %2237 = vmatpush1.xpose.msra.mxu0 0.0
        %2238 = vmatprep.mubr.f32.mxu0 0.0
        %2239 = vmatmul.mubr.f32.gmra.mrb[0].mxu0 %v2170
        %v2240 = vpop.f32.mrb[0].mxu0
        %v2241 = vadd.f32 0.0, %v2240
        %v2242 = vpop.f32.mrb[0].mxu0
        %2243 = vdwg.mxu0
        %v2244 = vsel %vm1512, %v2241, -inf
        %2245 = vst.msk [vmem:[%s1127] sm:$0xff] %vm1514, %v2244
        %v2246 = vld [vmem:[#allocation28] sm:$0xff]
        %v2247 = vld [vmem:[#allocation28 + $0x8] sm:$0xff]
        %v2248 = vld [vmem:[#allocation28 + $0x10] sm:$0xff]
        %v2249 = vld [vmem:[#allocation28 + $0x18] sm:$0xff]
        %v2250 = vld [vmem:[#allocation28 + $0x20] sm:$0xff]
        %v2251 = vld [vmem:[#allocation28 + $0x28] sm:$0xff]
        %v2252 = vld [vmem:[#allocation28 + $0x30] sm:$0xff]
        %v2253 = vld [vmem:[#allocation28 + $0x38] sm:$0xff]
        %v2254 = vld [vmem:[#allocation28 + $0x40] sm:$0xff]
        %v2255 = vld [vmem:[#allocation28 + $0x48] sm:$0xff]
        %v2256 = vld [vmem:[#allocation28 + $0x50] sm:$0xff]
        %v2257 = vld [vmem:[#allocation28 + $0x58] sm:$0xff]
        %v2258 = vld [vmem:[#allocation28 + $0x60] sm:$0xff]
        %v2259 = vld [vmem:[#allocation28 + $0x68] sm:$0xff]
        %v2260 = vld [vmem:[#allocation28 + $0x70] sm:$0xff]
        %v2261 = vld [vmem:[#allocation28 + $0x78] sm:$0xff]
        %v2262 = vld [vmem:[#allocation28 + $0x80] sm:$0xff]
        %v2263 = vld [vmem:[#allocation28 + $0x88] sm:$0xff]
        %v2264 = vld [vmem:[#allocation28 + $0x90] sm:$0xff]
        %v2265 = vld [vmem:[#allocation28 + $0x98] sm:$0xff]
        %v2266 = vld [vmem:[#allocation28 + $0xa0] sm:$0xff]
        %v2267 = vld [vmem:[#allocation28 + $0xa8] sm:$0xff]
        %v2268 = vld [vmem:[#allocation28 + $0xb0] sm:$0xff]
        %v2269 = vld [vmem:[#allocation28 + $0xb8] sm:$0xff]
        %v2270 = vld [vmem:[#allocation28 + $0xc0] sm:$0xff]
        %v2271 = vld [vmem:[#allocation28 + $0xc8] sm:$0xff]
        %v2272 = vld [vmem:[#allocation28 + $0xd0] sm:$0xff]
        %v2273 = vld [vmem:[#allocation28 + $0xd8] sm:$0xff]
        %v2274 = vld [vmem:[#allocation28 + $0xe0] sm:$0xff]
        %v2275 = vld [vmem:[#allocation28 + $0xe8] sm:$0xff]
        %v2276 = vld [vmem:[#allocation28 + $0xf0] sm:$0xff]
        %v2277 = vld [vmem:[#allocation28 + $0xf8] sm:$0xff]
        %v2278 = vld [vmem:[#allocation28 + $0x100] sm:$0xff]
        %v2279 = vld [vmem:[#allocation28 + $0x108] sm:$0xff]
        %v2280 = vld [vmem:[#allocation28 + $0x110] sm:$0xff]
        %v2281 = vld [vmem:[#allocation28 + $0x118] sm:$0xff]
        %v2282 = vld [vmem:[#allocation28 + $0x120] sm:$0xff]
        %v2283 = vld [vmem:[#allocation28 + $0x128] sm:$0xff]
        %v2284 = vld [vmem:[#allocation28 + $0x130] sm:$0xff]
        %v2285 = vld [vmem:[#allocation28 + $0x138] sm:$0xff]
        %v2286 = vld [vmem:[#allocation28 + $0x140] sm:$0xff]
        %v2287 = vld [vmem:[#allocation28 + $0x148] sm:$0xff]
        %v2288 = vld [vmem:[#allocation28 + $0x150] sm:$0xff]
        %v2289 = vld [vmem:[#allocation28 + $0x158] sm:$0xff]
        %v2290 = vld [vmem:[#allocation28 + $0x160] sm:$0xff]
        %v2291 = vld [vmem:[#allocation28 + $0x168] sm:$0xff]
        %v2292 = vld [vmem:[#allocation28 + $0x170] sm:$0xff]
        %v2293 = vld [vmem:[#allocation28 + $0x178] sm:$0xff]
        %v2294 = vld [vmem:[#allocation29] sm:$0x7]
        %v2296 = vlaneseq
        %v2297 = vshrl.u32 %v2296, 7
        %v2298 = vsub.s32 0, %v2297
        %v2299 = vrot.slane %v2294, %v2298
        %v2300 = vlaneseq
        %v2301 = vshrl.u32 %v2300, 7
        %v2302 = vsub.s32 1, %v2301
        %v2303 = vrot.slane %v2294, %v2302
        %v2304 = vlaneseq
        %v2305 = vshrl.u32 %v2304, 7
        %v2306 = vsub.s32 2, %v2305
        %v2307 = vrot.slane %v2294, %v2306
        %2311 = vmatprep.subr.mxu0 %v2247
        %2312 = vmatpush1.msra.mxu0 %v2246
        %2313 = vmatprep.subr.mxu0 %v2250
        %2314 = vmatpush1.msra.mxu0 %v2249
        %2315 = vmatprep.subr.mxu0 %v2253
        %2316 = vmatpush1.msra.mxu0 %v2252
        %2317 = vmatprep.subr.mxu0 %v2256
        %2318 = vmatpush1.msra.mxu0 %v2255
        %2319 = vmatprep.subr.mxu0 %v2259
        %2320 = vmatpush1.msra.mxu0 %v2258
        %2321 = vmatprep.subr.mxu0 %v2262
        %2322 = vmatpush1.msra.mxu0 %v2261
        %2323 = vmatprep.subr.mxu0 %v2265
        %2324 = vmatpush1.msra.mxu0 %v2264
        %2325 = vmatprep.subr.mxu0 %v2268
        %2326 = vmatpush1.msra.mxu0 %v2267
        %2327 = vmatprep.subr.mxu0 %v2271
        %2328 = vmatpush1.msra.mxu0 %v2270
        %2329 = vmatprep.subr.mxu0 %v2274
        %2330 = vmatpush1.msra.mxu0 %v2273
        %2331 = vmatprep.subr.mxu0 %v2277
        %2332 = vmatpush1.msra.mxu0 %v2276
        %2333 = vmatprep.subr.mxu0 %v2280
        %2334 = vmatpush1.msra.mxu0 %v2279
        %2335 = vmatprep.subr.mxu0 %v2283
        %2336 = vmatpush1.msra.mxu0 %v2282
        %2337 = vmatprep.subr.mxu0 %v2286
        %2338 = vmatpush1.msra.mxu0 %v2285
        %2339 = vmatprep.subr.mxu0 %v2289
        %2340 = vmatpush1.msra.mxu0 %v2288
        %2341 = vmatprep.subr.mxu0 %v2292
        %2342 = vmatpush1.msra.mxu0 %v2291
        %2343 = vmatprep.subr.mxu0 0.0
        %2344 = vmatpush1.msra.mxu0 0.0
        %2345 = vmatprep.subr.mxu0 0.0
        %2346 = vmatpush1.msra.mxu0 0.0
        %2347 = vmatprep.subr.mxu0 0.0
        %2348 = vmatpush1.msra.mxu0 0.0
        %2349 = vmatprep.subr.mxu0 0.0
        %2350 = vmatpush1.msra.mxu0 0.0
        %2351 = vmatprep.subr.mxu0 0.0
        %2352 = vmatpush1.msra.mxu0 0.0
        %2353 = vmatprep.subr.mxu0 0.0
        %2354 = vmatpush1.msra.mxu0 0.0
        %2355 = vmatprep.subr.mxu0 0.0
        %2356 = vmatpush1.msra.mxu0 0.0
        %2357 = vmatprep.subr.mxu0 0.0
        %2358 = vmatpush1.msra.mxu0 0.0
        %2359 = vmatprep.subr.mxu0 0.0
        %2360 = vmatpush1.msra.mxu0 0.0
        %2361 = vmatprep.subr.mxu0 0.0
        %2362 = vmatpush1.msra.mxu0 0.0
        %2363 = vmatprep.subr.mxu0 0.0
        %2364 = vmatpush1.msra.mxu0 0.0
        %2365 = vmatprep.subr.mxu0 0.0
        %2366 = vmatpush1.msra.mxu0 0.0
        %2367 = vmatprep.subr.mxu0 0.0
        %2368 = vmatpush1.msra.mxu0 0.0
        %2369 = vmatprep.subr.mxu0 0.0
        %2370 = vmatpush1.msra.mxu0 0.0
        %2371 = vmatprep.subr.mxu0 0.0
        %2372 = vmatpush1.msra.mxu0 0.0
        %2373 = vmatprep.subr.mxu0 0.0
        %2374 = vmatpush1.msra.mxu0 0.0
        %2375 = vmatprep.mubr.f32.mxu0 0.0
        %2376 = vmatmul.mubr.f32.gmra.mrb[0].mxu0 %v1340
        %v2377 = vpop.f32.mrb[0].mxu0
        %v2378 = vadd.f32 %v2299, %v2377
        %v2379 = vpop.f32.mrb[0].mxu0
        %v2380 = vadd.f32 %v2303, %v2379
        %2381 = vdwg.mxu0
        %2382 = vmatprep.subr.mxu0 0.0
        %2383 = vmatpush1.msra.mxu0 %v2248
        %2384 = vmatprep.subr.mxu0 0.0
        %2385 = vmatpush1.msra.mxu0 %v2251
        %2386 = vmatprep.subr.mxu0 0.0
        %2387 = vmatpush1.msra.mxu0 %v2254
        %2388 = vmatprep.subr.mxu0 0.0
        %2389 = vmatpush1.msra.mxu0 %v2257
        %2390 = vmatprep.subr.mxu0 0.0
        %2391 = vmatpush1.msra.mxu0 %v2260
        %2392 = vmatprep.subr.mxu0 0.0
        %2393 = vmatpush1.msra.mxu0 %v2263
        %2394 = vmatprep.subr.mxu0 0.0
        %2395 = vmatpush1.msra.mxu0 %v2266
        %2396 = vmatprep.subr.mxu0 0.0
        %2397 = vmatpush1.msra.mxu0 %v2269
        %2398 = vmatprep.subr.mxu0 0.0
        %2399 = vmatpush1.msra.mxu0 %v2272
        %2400 = vmatprep.subr.mxu0 0.0
        %2401 = vmatpush1.msra.mxu0 %v2275
        %2402 = vmatprep.subr.mxu0 0.0
        %2403 = vmatpush1.msra.mxu0 %v2278
        %2404 = vmatprep.subr.mxu0 0.0
        %2405 = vmatpush1.msra.mxu0 %v2281
        %2406 = vmatprep.subr.mxu0 0.0
        %2407 = vmatpush1.msra.mxu0 %v2284
        %2408 = vmatprep.subr.mxu0 0.0
        %2409 = vmatpush1.msra.mxu0 %v2287
        %2410 = vmatprep.subr.mxu0 0.0
        %2411 = vmatpush1.msra.mxu0 %v2290
        %2412 = vmatprep.subr.mxu0 0.0
        %2413 = vmatpush1.msra.mxu0 %v2293
        %2414 = vmatprep.subr.mxu0 0.0
        %2415 = vmatpush1.msra.mxu0 0.0
        %2416 = vmatprep.subr.mxu0 0.0
        %2417 = vmatpush1.msra.mxu0 0.0
        %2418 = vmatprep.subr.mxu0 0.0
        %2419 = vmatpush1.msra.mxu0 0.0
        %2420 = vmatprep.subr.mxu0 0.0
        %2421 = vmatpush1.msra.mxu0 0.0
        %2422 = vmatprep.subr.mxu0 0.0
        %2423 = vmatpush1.msra.mxu0 0.0
        %2424 = vmatprep.subr.mxu0 0.0
        %2425 = vmatpush1.msra.mxu0 0.0
        %2426 = vmatprep.subr.mxu0 0.0
        %2427 = vmatpush1.msra.mxu0 0.0
        %2428 = vmatprep.subr.mxu0 0.0
        %2429 = vmatpush1.msra.mxu0 0.0
        %2430 = vmatprep.subr.mxu0 0.0
        %2431 = vmatpush1.msra.mxu0 0.0
        %2432 = vmatprep.subr.mxu0 0.0
        %2433 = vmatpush1.msra.mxu0 0.0
        %2434 = vmatprep.subr.mxu0 0.0
        %2435 = vmatpush1.msra.mxu0 0.0
        %2436 = vmatprep.subr.mxu0 0.0
        %2437 = vmatpush1.msra.mxu0 0.0
        %2438 = vmatprep.subr.mxu0 0.0
        %2439 = vmatpush1.msra.mxu0 0.0
        %2440 = vmatprep.subr.mxu0 0.0
        %2441 = vmatpush1.msra.mxu0 0.0
        %2442 = vmatprep.subr.mxu0 0.0
        %2443 = vmatpush1.msra.mxu0 0.0
        %2444 = vmatprep.subr.mxu0 0.0
        %2445 = vmatpush1.msra.mxu0 0.0
        %2446 = vmatprep.mubr.f32.mxu0 0.0
        %2447 = vmatmul.mubr.f32.gmra.mrb[0].mxu0 %v1340
        %v2448 = vpop.f32.mrb[0].mxu0
        %v2449 = vadd.f32 %v2307, %v2448
        %v2450 = vpop.f32.mrb[0].mxu0
        %2451 = vdwg.mxu0
        %vm2452 = vcmask 1040384
        %v2453 = vsel %vm2452, %v2378, 0.0
        %v2454 = vrot.slane %v2380, 7
        %vm2455 = vcmask 1041409
        %v2456 = vsel %vm2455, %v2454, %v2453
        %v2457 = vrot.slane %v2449, 6
        %vm2458 = vcmask 1042434
        %v2459 = vsel %vm2458, %v2457, %v2456
        %v2460 = vrot.slane %v2378, 6
        %vm2461 = vcmask 1043459
        %v2462 = vsel %vm2461, %v2460, %v2459
        %v2463 = vrot.slane %v2380, 5
        %vm2464 = vcmask 1044484
        %v2465 = vsel %vm2464, %v2463, %v2462
        %v2466 = vrot.slane %v2449, 4
        %vm2467 = vcmask 1045509
        %v2468 = vsel %vm2467, %v2466, %v2465
        %v2469 = vrot.slane %v2378, 4
        %vm2470 = vcmask 1046534
        %v2471 = vsel %vm2470, %v2469, %v2468
        %v2472 = vrot.slane %v2380, 3
        %vm2473 = vcmask 1047559
        %v2474 = vsel %vm2473, %v2472, %v2471
        %v2475 = vrot.slane %v2449, 2
        %v2476 = vsel %vm2452, %v2475, 0.0
        %v2477 = vrot.slane %v2378, 2
        %v2478 = vsel %vm2455, %v2477, %v2476
        %v2479 = vrot.slane %v2380, 1
        %v2480 = vsel %vm2458, %v2479, %v2478
        %v2481 = vsel %vm2461, %v2449, %v2480
        %v2482 = vsel %vm2464, %v2378, %v2481
        %v2483 = vsel %vm2467, %v2454, %v2482
        %v2484 = vsel %vm2470, %v2457, %v2483
        %v2485 = vsel %vm2473, %v2460, %v2484
        %v2486 = vsel %vm2452, %v2463, 0.0
        %v2487 = vsel %vm2455, %v2466, %v2486
        %v2488 = vsel %vm2458, %v2469, %v2487
        %v2489 = vsel %vm2461, %v2472, %v2488
        %v2490 = vsel %vm2464, %v2475, %v2489
        %v2491 = vsel %vm2467, %v2477, %v2490
        %v2492 = vsel %vm2470, %v2479, %v2491
        %v2493 = vsel %vm2473, %v2449, %v2492
        %v2494 = vld [vmem:[%s984] sm:$0xff]
        %2495 = vmatprep.subr.mxu0 0.0
        %2496 = vmatpush1.xpose.msra.mxu0 %v2494
        %2497 = vmatprep.subr.mxu0 0.0
        %2498 = vmatpush1.xpose.msra.mxu0 0.0
        %2499 = vmatprep.subr.mxu0 0.0
        %2500 = vmatpush1.xpose.msra.mxu0 0.0
        %2501 = vmatprep.subr.mxu0 0.0
        %2502 = vmatpush1.xpose.msra.mxu0 0.0
        %2503 = vmatprep.subr.mxu0 0.0
        %2504 = vmatpush1.xpose.msra.mxu0 0.0
        %2505 = vmatprep.subr.mxu0 0.0
        %2506 = vmatpush1.xpose.msra.mxu0 0.0
        %2507 = vmatprep.subr.mxu0 0.0
        %2508 = vmatpush1.xpose.msra.mxu0 0.0
        %2509 = vmatprep.subr.mxu0 0.0
        %2510 = vmatpush1.xpose.msra.mxu0 0.0
        %2511 = vmatprep.subr.mxu0 0.0
        %2512 = vmatpush1.xpose.msra.mxu0 0.0
        %2513 = vmatprep.subr.mxu0 0.0
        %2514 = vmatpush1.xpose.msra.mxu0 0.0
        %2515 = vmatprep.subr.mxu0 0.0
        %2516 = vmatpush1.xpose.msra.mxu0 0.0
        %2517 = vmatprep.subr.mxu0 0.0
        %2518 = vmatpush1.xpose.msra.mxu0 0.0
        %2519 = vmatprep.subr.mxu0 0.0
        %2520 = vmatpush1.xpose.msra.mxu0 0.0
        %2521 = vmatprep.subr.mxu0 0.0
        %2522 = vmatpush1.xpose.msra.mxu0 0.0
        %2523 = vmatprep.subr.mxu0 0.0
        %2524 = vmatpush1.xpose.msra.mxu0 0.0
        %2525 = vmatprep.subr.mxu0 0.0
        %2526 = vmatpush1.xpose.msra.mxu0 0.0
        %2527 = vmatprep.subr.mxu0 0.0
        %2528 = vmatpush1.xpose.msra.mxu0 0.0
        %2529 = vmatprep.subr.mxu0 0.0
        %2530 = vmatpush1.xpose.msra.mxu0 0.0
        %2531 = vmatprep.subr.mxu0 0.0
        %2532 = vmatpush1.xpose.msra.mxu0 0.0
        %2533 = vmatprep.subr.mxu0 0.0
        %2534 = vmatpush1.xpose.msra.mxu0 0.0
        %2535 = vmatprep.subr.mxu0 0.0
        %2536 = vmatpush1.xpose.msra.mxu0 0.0
        %2537 = vmatprep.subr.mxu0 0.0
        %2538 = vmatpush1.xpose.msra.mxu0 0.0
        %2539 = vmatprep.subr.mxu0 0.0
        %2540 = vmatpush1.xpose.msra.mxu0 0.0
        %2541 = vmatprep.subr.mxu0 0.0
        %2542 = vmatpush1.xpose.msra.mxu0 0.0
        %2543 = vmatprep.subr.mxu0 0.0
        %2544 = vmatpush1.xpose.msra.mxu0 0.0
        %2545 = vmatprep.subr.mxu0 0.0
        %2546 = vmatpush1.xpose.msra.mxu0 0.0
        %2547 = vmatprep.subr.mxu0 0.0
        %2548 = vmatpush1.xpose.msra.mxu0 0.0
        %2549 = vmatprep.subr.mxu0 0.0
        %2550 = vmatpush1.xpose.msra.mxu0 0.0
        %2551 = vmatprep.subr.mxu0 0.0
        %2552 = vmatpush1.xpose.msra.mxu0 0.0
        %2553 = vmatprep.subr.mxu0 0.0
        %2554 = vmatpush1.xpose.msra.mxu0 0.0
        %2555 = vmatprep.subr.mxu0 0.0
        %2556 = vmatpush1.xpose.msra.mxu0 0.0
        %2557 = vmatprep.subr.mxu0 0.0
        %2558 = vmatpush1.xpose.msra.mxu0 0.0
        %2559 = vmatprep.mubr.f32.mxu0 0.0
        %2560 = vmatmul.mubr.f32.gmra.mrb[0].mxu0 %v2474
        %v2561 = vpop.f32.mrb[0].mxu0
        %v2562 = vadd.f32 0.0, %v2561
        %v2563 = vpop.f32.mrb[0].mxu0
        %2564 = vmatprep.mubr.f32.mxu0 0.0
        %2565 = vmatmul.mubr.f32.gmra.mrb[0].mxu0 %v2485
        %v2566 = vpop.f32.mrb[0].mxu0
        %v2567 = vadd.f32 0.0, %v2566
        %v2568 = vpop.f32.mrb[0].mxu0
        %2569 = vmatprep.mubr.f32.mxu0 0.0
        %2570 = vmatmul.mubr.f32.gmra.mrb[0].mxu0 %v2493
        %v2571 = vpop.f32.mrb[0].mxu0
        %v2572 = vadd.f32 0.0, %v2571
        %v2573 = vpop.f32.mrb[0].mxu0
        %2574 = vdwg.mxu0
        %v2575 = vld [vmem:[#allocation31] sm:$0xff]
        %v2576 = vld [vmem:[#allocation31 + $0x8] sm:$0xff]
        %v2577 = vld [vmem:[#allocation31 + $0x10] sm:$0xff]
        %v2578 = vld [vmem:[#allocation31 + $0x18] sm:$0xff]
        %v2579 = vld [vmem:[#allocation31 + $0x20] sm:$0xff]
        %v2580 = vld [vmem:[#allocation31 + $0x28] sm:$0xff]
        %v2581 = vld [vmem:[#allocation31 + $0x30] sm:$0xff]
        %v2582 = vld [vmem:[#allocation31 + $0x38] sm:$0xff]
        %v2583 = vld [vmem:[#allocation31 + $0x40] sm:$0xff]
        %v2584 = vld [vmem:[#allocation31 + $0x48] sm:$0xff]
        %v2585 = vld [vmem:[#allocation31 + $0x50] sm:$0xff]
        %v2586 = vld [vmem:[#allocation31 + $0x58] sm:$0xff]
        %v2587 = vld [vmem:[#allocation31 + $0x60] sm:$0xff]
        %v2588 = vld [vmem:[#allocation31 + $0x68] sm:$0xff]
        %v2589 = vld [vmem:[#allocation31 + $0x70] sm:$0xff]
        %v2590 = vld [vmem:[#allocation31 + $0x78] sm:$0xff]
        %v2591 = vld [vmem:[#allocation32] sm:$0x1]
        %v2593 = vlaneseq
        %v2594 = vshrl.u32 %v2593, 7
        %v2595 = vsub.s32 0, %v2594
        %v2596 = vrot.slane %v2591, %v2595
        %2598 = vmatprep.subr.mxu0 0.0
        %2599 = vmatpush1.msra.mxu0 %v2575
        %2600 = vmatprep.subr.mxu0 0.0
        %2601 = vmatpush1.msra.mxu0 %v2576
        %2602 = vmatprep.subr.mxu0 0.0
        %2603 = vmatpush1.msra.mxu0 %v2577
        %2604 = vmatprep.subr.mxu0 0.0
        %2605 = vmatpush1.msra.mxu0 %v2578
        %2606 = vmatprep.subr.mxu0 0.0
        %2607 = vmatpush1.msra.mxu0 %v2579
        %2608 = vmatprep.subr.mxu0 0.0
        %2609 = vmatpush1.msra.mxu0 %v2580
        %2610 = vmatprep.subr.mxu0 0.0
        %2611 = vmatpush1.msra.mxu0 %v2581
        %2612 = vmatprep.subr.mxu0 0.0
        %2613 = vmatpush1.msra.mxu0 %v2582
        %2614 = vmatprep.subr.mxu0 0.0
        %2615 = vmatpush1.msra.mxu0 %v2583
        %2616 = vmatprep.subr.mxu0 0.0
        %2617 = vmatpush1.msra.mxu0 %v2584
        %2618 = vmatprep.subr.mxu0 0.0
        %2619 = vmatpush1.msra.mxu0 %v2585
        %2620 = vmatprep.subr.mxu0 0.0
        %2621 = vmatpush1.msra.mxu0 %v2586
        %2622 = vmatprep.subr.mxu0 0.0
        %2623 = vmatpush1.msra.mxu0 %v2587
        %2624 = vmatprep.subr.mxu0 0.0
        %2625 = vmatpush1.msra.mxu0 %v2588
        %2626 = vmatprep.subr.mxu0 0.0
        %2627 = vmatpush1.msra.mxu0 %v2589
        %2628 = vmatprep.subr.mxu0 0.0
        %2629 = vmatpush1.msra.mxu0 %v2590
        %2630 = vmatprep.subr.mxu0 0.0
        %2631 = vmatpush1.msra.mxu0 0.0
        %2632 = vmatprep.subr.mxu0 0.0
        %2633 = vmatpush1.msra.mxu0 0.0
        %2634 = vmatprep.subr.mxu0 0.0
        %2635 = vmatpush1.msra.mxu0 0.0
        %2636 = vmatprep.subr.mxu0 0.0
        %2637 = vmatpush1.msra.mxu0 0.0
        %2638 = vmatprep.subr.mxu0 0.0
        %2639 = vmatpush1.msra.mxu0 0.0
        %2640 = vmatprep.subr.mxu0 0.0
        %2641 = vmatpush1.msra.mxu0 0.0
        %2642 = vmatprep.subr.mxu0 0.0
        %2643 = vmatpush1.msra.mxu0 0.0
        %2644 = vmatprep.subr.mxu0 0.0
        %2645 = vmatpush1.msra.mxu0 0.0
        %2646 = vmatprep.subr.mxu0 0.0
        %2647 = vmatpush1.msra.mxu0 0.0
        %2648 = vmatprep.subr.mxu0 0.0
        %2649 = vmatpush1.msra.mxu0 0.0
        %2650 = vmatprep.subr.mxu0 0.0
        %2651 = vmatpush1.msra.mxu0 0.0
        %2652 = vmatprep.subr.mxu0 0.0
        %2653 = vmatpush1.msra.mxu0 0.0
        %2654 = vmatprep.subr.mxu0 0.0
        %2655 = vmatpush1.msra.mxu0 0.0
        %2656 = vmatprep.subr.mxu0 0.0
        %2657 = vmatpush1.msra.mxu0 0.0
        %2658 = vmatprep.subr.mxu0 0.0
        %2659 = vmatpush1.msra.mxu0 0.0
        %2660 = vmatprep.subr.mxu0 0.0
        %2661 = vmatpush1.msra.mxu0 0.0
        %2662 = vmatprep.mubr.f32.mxu0 0.0
        %2663 = vmatmul.mubr.f32.gmra.mrb[0].mxu0 %v1340
        %v2664 = vpop.f32.mrb[0].mxu0
        %v2665 = vadd.f32 %v2596, %v2664
        %v2666 = vpop.f32.mrb[0].mxu0
        %2667 = vdwg.mxu0
        %v2671 = vcombine.high %v2562, %v2562
        %v2673 = vunpack.c.l.s4 1966171168
        %v2674 = vunpack.c.0.s8 %v2673
        %v2675 = vlaneseq
        %v2676 = vshrl.u32 %v2675, 7
        %v2677 = vsub.s32 %v2674, %v2676
        %v2678 = vrot.slane %v2562, %v2677
        %v2680 = vunpack.c.l.s4 1966171168
        %v2681 = vunpack.c.0.s8 %v2680
        %v2682 = vlaneseq
        %v2683 = vshrl.u32 %v2682, 7
        %v2684 = vsub.s32 %v2681, %v2683
        %v2685 = vrot.slane %v2671, %v2684
        %v2686 = vcombine.high %v2678, %v2678
        %v2687 = vcombine.high %v2685, %v2685
        %v2689 = vunpack.c.l.s4 1966171168
        %v2690 = vunpack.c.0.s8 %v2689
        %v2691 = vlaneseq
        %v2692 = vshrl.u32 %v2691, 7
        %v2693 = vsub.s32 %v2690, %v2692
        %v2694 = vrot.slane %v2678, %v2693
        %v2696 = vunpack.c.l.s4 1966171168
        %v2697 = vunpack.c.0.s8 %v2696
        %v2698 = vlaneseq
        %v2699 = vshrl.u32 %v2698, 7
        %v2700 = vsub.s32 %v2697, %v2699
        %v2701 = vrot.slane %v2685, %v2700
        %v2703 = vunpack.c.l.s4 1966171168
        %v2704 = vunpack.c.0.s8 %v2703
        %v2705 = vlaneseq
        %v2706 = vshrl.u32 %v2705, 7
        %v2707 = vsub.s32 %v2704, %v2706
        %v2708 = vrot.slane %v2686, %v2707
        %v2710 = vunpack.c.l.s4 1966171168
        %v2711 = vunpack.c.0.s8 %v2710
        %v2712 = vlaneseq
        %v2713 = vshrl.u32 %v2712, 7
        %v2714 = vsub.s32 %v2711, %v2713
        %v2715 = vrot.slane %v2687, %v2714
        %v2716 = vcombine.high %v2694, %v2694
        %v2717 = vcombine.high %v2701, %v2701
        %v2718 = vcombine.high %v2708, %v2708
        %v2719 = vcombine.high %v2715, %v2715
        %v2720 = vcombine.high %v2567, %v2567
        %v2722 = vunpack.c.l.s4 1966171168
        %v2723 = vunpack.c.0.s8 %v2722
        %v2724 = vlaneseq
        %v2725 = vshrl.u32 %v2724, 7
        %v2726 = vsub.s32 %v2723, %v2725
        %v2727 = vrot.slane %v2567, %v2726
        %v2729 = vunpack.c.l.s4 1966171168
        %v2730 = vunpack.c.0.s8 %v2729
        %v2731 = vlaneseq
        %v2732 = vshrl.u32 %v2731, 7
        %v2733 = vsub.s32 %v2730, %v2732
        %v2734 = vrot.slane %v2720, %v2733
        %v2735 = vcombine.high %v2727, %v2727
        %v2736 = vcombine.high %v2734, %v2734
        %v2738 = vunpack.c.l.s4 1966171168
        %v2739 = vunpack.c.0.s8 %v2738
        %v2740 = vlaneseq
        %v2741 = vshrl.u32 %v2740, 7
        %v2742 = vsub.s32 %v2739, %v2741
        %v2743 = vrot.slane %v2727, %v2742
        %v2745 = vunpack.c.l.s4 1966171168
        %v2746 = vunpack.c.0.s8 %v2745
        %v2747 = vlaneseq
        %v2748 = vshrl.u32 %v2747, 7
        %v2749 = vsub.s32 %v2746, %v2748
        %v2750 = vrot.slane %v2734, %v2749
        %v2752 = vunpack.c.l.s4 1966171168
        %v2753 = vunpack.c.0.s8 %v2752
        %v2754 = vlaneseq
        %v2755 = vshrl.u32 %v2754, 7
        %v2756 = vsub.s32 %v2753, %v2755
        %v2757 = vrot.slane %v2735, %v2756
        %v2759 = vunpack.c.l.s4 1966171168
        %v2760 = vunpack.c.0.s8 %v2759
        %v2761 = vlaneseq
        %v2762 = vshrl.u32 %v2761, 7
        %v2763 = vsub.s32 %v2760, %v2762
        %v2764 = vrot.slane %v2736, %v2763
        %v2765 = vcombine.high %v2743, %v2743
        %v2766 = vcombine.high %v2750, %v2750
        %v2767 = vcombine.high %v2757, %v2757
        %v2768 = vcombine.high %v2764, %v2764
        %v2769 = vcombine.high %v2572, %v2572
        %v2771 = vunpack.c.l.s4 1966171168
        %v2772 = vunpack.c.0.s8 %v2771
        %v2773 = vlaneseq
        %v2774 = vshrl.u32 %v2773, 7
        %v2775 = vsub.s32 %v2772, %v2774
        %v2776 = vrot.slane %v2572, %v2775
        %v2778 = vunpack.c.l.s4 1966171168
        %v2779 = vunpack.c.0.s8 %v2778
        %v2780 = vlaneseq
        %v2781 = vshrl.u32 %v2780, 7
        %v2782 = vsub.s32 %v2779, %v2781
        %v2783 = vrot.slane %v2769, %v2782
        %v2784 = vcombine.high %v2776, %v2776
        %v2785 = vcombine.high %v2783, %v2783
        %v2787 = vunpack.c.l.s4 1966171168
        %v2788 = vunpack.c.0.s8 %v2787
        %v2789 = vlaneseq
        %v2790 = vshrl.u32 %v2789, 7
        %v2791 = vsub.s32 %v2788, %v2790
        %v2792 = vrot.slane %v2776, %v2791
        %v2794 = vunpack.c.l.s4 1966171168
        %v2795 = vunpack.c.0.s8 %v2794
        %v2796 = vlaneseq
        %v2797 = vshrl.u32 %v2796, 7
        %v2798 = vsub.s32 %v2795, %v2797
        %v2799 = vrot.slane %v2783, %v2798
        %v2801 = vunpack.c.l.s4 1966171168
        %v2802 = vunpack.c.0.s8 %v2801
        %v2803 = vlaneseq
        %v2804 = vshrl.u32 %v2803, 7
        %v2805 = vsub.s32 %v2802, %v2804
        %v2806 = vrot.slane %v2784, %v2805
        %v2808 = vunpack.c.l.s4 1966171168
        %v2809 = vunpack.c.0.s8 %v2808
        %v2810 = vlaneseq
        %v2811 = vshrl.u32 %v2810, 7
        %v2812 = vsub.s32 %v2809, %v2811
        %v2813 = vrot.slane %v2785, %v2812
        %v2814 = vcombine.high %v2792, %v2792
        %v2815 = vcombine.high %v2799, %v2799
        %v2816 = vcombine.high %v2806, %v2806
        %v2817 = vcombine.high %v2813, %v2813
        %v2842 = vlaneseq
        %v2843 = vshrl.u32 %v2842, 7
        %v2844 = vsub.s32 0, %v2843
        %v2845 = vrot.slane %v2665, %v2844
        %2847 = vbcast.lane.b32.xlu0 %v2845, 256
        %v2848 = vpop.permute.xlu0 %2847
        %v2849 = vlaneseq
        %v2850 = vshrl.u32 %v2849, 7
        %v2851 = vsub.s32 1, %v2850
        %v2852 = vrot.slane %v2665, %v2851
        %2854 = vbcast.lane.b32.xlu0 %v2852, 256
        %v2855 = vpop.permute.xlu0 %2854
        %v2856 = vlaneseq
        %v2857 = vshrl.u32 %v2856, 7
        %v2858 = vsub.s32 2, %v2857
        %v2859 = vrot.slane %v2665, %v2858
        %2861 = vbcast.lane.b32.xlu0 %v2859, 256
        %v2862 = vpop.permute.xlu0 %2861
        %v2863 = vlaneseq
        %v2864 = vshrl.u32 %v2863, 7
        %v2865 = vsub.s32 3, %v2864
        %v2866 = vrot.slane %v2665, %v2865
        %2868 = vbcast.lane.b32.xlu0 %v2866, 256
        %v2869 = vpop.permute.xlu0 %2868
        %v2870 = vlaneseq
        %v2871 = vshrl.u32 %v2870, 7
        %v2872 = vsub.s32 4, %v2871
        %v2873 = vrot.slane %v2665, %v2872
        %2875 = vbcast.lane.b32.xlu0 %v2873, 256
        %v2876 = vpop.permute.xlu0 %2875
        %v2877 = vlaneseq
        %v2878 = vshrl.u32 %v2877, 7
        %v2879 = vsub.s32 5, %v2878
        %v2880 = vrot.slane %v2665, %v2879
        %2882 = vbcast.lane.b32.xlu0 %v2880, 256
        %v2883 = vpop.permute.xlu0 %2882
        %v2884 = vlaneseq
        %v2885 = vshrl.u32 %v2884, 7
        %v2886 = vsub.s32 6, %v2885
        %v2887 = vrot.slane %v2665, %v2886
        %2889 = vbcast.lane.b32.xlu0 %v2887, 256
        %v2890 = vpop.permute.xlu0 %2889
        %v2891 = vlaneseq
        %v2892 = vshrl.u32 %v2891, 7
        %v2893 = vsub.s32 7, %v2892
        %v2894 = vrot.slane %v2665, %v2893
        %2896 = vbcast.lane.b32.xlu0 %v2894, 256
        %v2897 = vpop.permute.xlu0 %2896
        %v2906 = vlaneseq
        %v2907 = vshrl.u32 %v2906, 7
        %v2908 = vsub.s32 0, %v2907
        %v2909 = vrot.slane %v2848, %v2908
        %v2910 = vlaneseq
        %v2911 = vshrl.u32 %v2910, 7
        %v2912 = vsub.s32 1, %v2911
        %v2913 = vrot.slane %v2848, %v2912
        %v2914 = vlaneseq
        %v2915 = vshrl.u32 %v2914, 7
        %v2916 = vsub.s32 2, %v2915
        %v2917 = vrot.slane %v2848, %v2916
        %v2918 = vlaneseq
        %v2919 = vshrl.u32 %v2918, 7
        %v2920 = vsub.s32 0, %v2919
        %v2921 = vrot.slane %v2855, %v2920
        %v2922 = vlaneseq
        %v2923 = vshrl.u32 %v2922, 7
        %v2924 = vsub.s32 1, %v2923
        %v2925 = vrot.slane %v2855, %v2924
        %v2926 = vlaneseq
        %v2927 = vshrl.u32 %v2926, 7
        %v2928 = vsub.s32 2, %v2927
        %v2929 = vrot.slane %v2855, %v2928
        %v2930 = vlaneseq
        %v2931 = vshrl.u32 %v2930, 7
        %v2932 = vsub.s32 0, %v2931
        %v2933 = vrot.slane %v2862, %v2932
        %v2934 = vlaneseq
        %v2935 = vshrl.u32 %v2934, 7
        %v2936 = vsub.s32 1, %v2935
        %v2937 = vrot.slane %v2862, %v2936
        %v2938 = vlaneseq
        %v2939 = vshrl.u32 %v2938, 7
        %v2940 = vsub.s32 2, %v2939
        %v2941 = vrot.slane %v2862, %v2940
        %v2942 = vlaneseq
        %v2943 = vshrl.u32 %v2942, 7
        %v2944 = vsub.s32 0, %v2943
        %v2945 = vrot.slane %v2869, %v2944
        %v2946 = vlaneseq
        %v2947 = vshrl.u32 %v2946, 7
        %v2948 = vsub.s32 1, %v2947
        %v2949 = vrot.slane %v2869, %v2948
        %v2950 = vlaneseq
        %v2951 = vshrl.u32 %v2950, 7
        %v2952 = vsub.s32 2, %v2951
        %v2953 = vrot.slane %v2869, %v2952
        %v2954 = vlaneseq
        %v2955 = vshrl.u32 %v2954, 7
        %v2956 = vsub.s32 0, %v2955
        %v2957 = vrot.slane %v2876, %v2956
        %v2958 = vlaneseq
        %v2959 = vshrl.u32 %v2958, 7
        %v2960 = vsub.s32 1, %v2959
        %v2961 = vrot.slane %v2876, %v2960
        %v2962 = vlaneseq
        %v2963 = vshrl.u32 %v2962, 7
        %v2964 = vsub.s32 2, %v2963
        %v2965 = vrot.slane %v2876, %v2964
        %v2966 = vlaneseq
        %v2967 = vshrl.u32 %v2966, 7
        %v2968 = vsub.s32 0, %v2967
        %v2969 = vrot.slane %v2883, %v2968
        %v2970 = vlaneseq
        %v2971 = vshrl.u32 %v2970, 7
        %v2972 = vsub.s32 1, %v2971
        %v2973 = vrot.slane %v2883, %v2972
        %v2974 = vlaneseq
        %v2975 = vshrl.u32 %v2974, 7
        %v2976 = vsub.s32 2, %v2975
        %v2977 = vrot.slane %v2883, %v2976
        %v2978 = vlaneseq
        %v2979 = vshrl.u32 %v2978, 7
        %v2980 = vsub.s32 0, %v2979
        %v2981 = vrot.slane %v2890, %v2980
        %v2982 = vlaneseq
        %v2983 = vshrl.u32 %v2982, 7
        %v2984 = vsub.s32 1, %v2983
        %v2985 = vrot.slane %v2890, %v2984
        %v2986 = vlaneseq
        %v2987 = vshrl.u32 %v2986, 7
        %v2988 = vsub.s32 2, %v2987
        %v2989 = vrot.slane %v2890, %v2988
        %v2990 = vlaneseq
        %v2991 = vshrl.u32 %v2990, 7
        %v2992 = vsub.s32 0, %v2991
        %v2993 = vrot.slane %v2897, %v2992
        %v2994 = vlaneseq
        %v2995 = vshrl.u32 %v2994, 7
        %v2996 = vsub.s32 1, %v2995
        %v2997 = vrot.slane %v2897, %v2996
        %v2998 = vlaneseq
        %v2999 = vshrl.u32 %v2998, 7
        %v3000 = vsub.s32 2, %v2999
        %v3001 = vrot.slane %v2897, %v3000
        %v3026 = vadd.f32 %v2694, %v2909
        %v3027 = vadd.f32 %v2708, %v2913
        %v3028 = vadd.f32 %v2716, %v2917
        %v3029 = vadd.f32 %v2718, %v2921
        %v3030 = vadd.f32 %v2701, %v2925
        %v3031 = vadd.f32 %v2715, %v2929
        %v3032 = vadd.f32 %v2717, %v2933
        %v3033 = vadd.f32 %v2719, %v2937
        %v3034 = vadd.f32 %v2743, %v2941
        %v3035 = vadd.f32 %v2757, %v2945
        %v3036 = vadd.f32 %v2765, %v2949
        %v3037 = vadd.f32 %v2767, %v2953
        %v3038 = vadd.f32 %v2750, %v2957
        %v3039 = vadd.f32 %v2764, %v2961
        %v3040 = vadd.f32 %v2766, %v2965
        %v3041 = vadd.f32 %v2768, %v2969
        %v3042 = vadd.f32 %v2792, %v2973
        %v3043 = vadd.f32 %v2806, %v2977
        %v3044 = vadd.f32 %v2814, %v2981
        %v3045 = vadd.f32 %v2816, %v2985
        %v3046 = vadd.f32 %v2799, %v2989
        %v3047 = vadd.f32 %v2813, %v2993
        %v3048 = vadd.f32 %v2815, %v2997
        %v3049 = vadd.f32 %v2817, %v3001
        %v3074 = vcombine.low %v3026, %v3027
        %v3076 = vunpack.c.l.s4 1966171168
        %v3077 = vunpack.c.0.s8 %v3076
        %v3078 = vlaneseq
        %v3079 = vshrl.u32 %v3078, 7
        %v3080 = vsub.s32 %v3077, %v3079
        %v3081 = vrot.slane %v3074, %v3080
        %v3083 = vunpack.c.l.s4 1966171168
        %v3084 = vunpack.c.0.s8 %v3083
        %v3085 = vlaneseq
        %v3086 = vshrl.u32 %v3085, 7
        %v3087 = vsub.s32 %v3084, %v3086
        %v3088 = vrot.slane %v3028, %v3087
        %v3089 = vcombine.low %v3081, %v3088
        %v3091 = vunpack.c.l.s4 1966171168
        %v3092 = vunpack.c.0.s8 %v3091
        %v3093 = vlaneseq
        %v3094 = vshrl.u32 %v3093, 7
        %v3095 = vsub.s32 %v3092, %v3094
        %v3096 = vrot.slane %v3089, %v3095
        %v3097 = vcombine.low %v3029, %v3030
        %v3099 = vunpack.c.l.s4 1966171168
        %v3100 = vunpack.c.0.s8 %v3099
        %v3101 = vlaneseq
        %v3102 = vshrl.u32 %v3101, 7
        %v3103 = vsub.s32 %v3100, %v3102
        %v3104 = vrot.slane %v3097, %v3103
        %v3106 = vunpack.c.l.s4 1966171168
        %v3107 = vunpack.c.0.s8 %v3106
        %v3108 = vlaneseq
        %v3109 = vshrl.u32 %v3108, 7
        %v3110 = vsub.s32 %v3107, %v3109
        %v3111 = vrot.slane %v3031, %v3110
        %v3112 = vcombine.low %v3104, %v3111
        %v3114 = vunpack.c.l.s4 1966171168
        %v3115 = vunpack.c.0.s8 %v3114
        %v3116 = vlaneseq
        %v3117 = vshrl.u32 %v3116, 7
        %v3118 = vsub.s32 %v3115, %v3117
        %v3119 = vrot.slane %v3112, %v3118
        %v3120 = vcombine.low %v3032, %v3033
        %v3122 = vunpack.c.l.s4 1966171168
        %v3123 = vunpack.c.0.s8 %v3122
        %v3124 = vlaneseq
        %v3125 = vshrl.u32 %v3124, 7
        %v3126 = vsub.s32 %v3123, %v3125
        %v3127 = vrot.slane %v3120, %v3126
        %v3129 = vunpack.c.l.s4 1966171168
        %v3130 = vunpack.c.0.s8 %v3129
        %v3131 = vlaneseq
        %v3132 = vshrl.u32 %v3131, 7
        %v3133 = vsub.s32 %v3130, %v3132
        %v3134 = vrot.slane %v3034, %v3133
        %v3135 = vcombine.low %v3127, %v3134
        %v3137 = vunpack.c.l.s4 1966171168
        %v3138 = vunpack.c.0.s8 %v3137
        %v3139 = vlaneseq
        %v3140 = vshrl.u32 %v3139, 7
        %v3141 = vsub.s32 %v3138, %v3140
        %v3142 = vrot.slane %v3135, %v3141
        %v3143 = vcombine.low %v3035, %v3036
        %v3145 = vunpack.c.l.s4 1966171168
        %v3146 = vunpack.c.0.s8 %v3145
        %v3147 = vlaneseq
        %v3148 = vshrl.u32 %v3147, 7
        %v3149 = vsub.s32 %v3146, %v3148
        %v3150 = vrot.slane %v3143, %v3149
        %v3152 = vunpack.c.l.s4 1966171168
        %v3153 = vunpack.c.0.s8 %v3152
        %v3154 = vlaneseq
        %v3155 = vshrl.u32 %v3154, 7
        %v3156 = vsub.s32 %v3153, %v3155
        %v3157 = vrot.slane %v3037, %v3156
        %v3158 = vcombine.low %v3150, %v3157
        %v3160 = vunpack.c.l.s4 1966171168
        %v3161 = vunpack.c.0.s8 %v3160
        %v3162 = vlaneseq
        %v3163 = vshrl.u32 %v3162, 7
        %v3164 = vsub.s32 %v3161, %v3163
        %v3165 = vrot.slane %v3158, %v3164
        %v3166 = vcombine.low %v3038, %v3039
        %v3168 = vunpack.c.l.s4 1966171168
        %v3169 = vunpack.c.0.s8 %v3168
        %v3170 = vlaneseq
        %v3171 = vshrl.u32 %v3170, 7
        %v3172 = vsub.s32 %v3169, %v3171
        %v3173 = vrot.slane %v3166, %v3172
        %v3175 = vunpack.c.l.s4 1966171168
        %v3176 = vunpack.c.0.s8 %v3175
        %v3177 = vlaneseq
        %v3178 = vshrl.u32 %v3177, 7
        %v3179 = vsub.s32 %v3176, %v3178
        %v3180 = vrot.slane %v3040, %v3179
        %v3181 = vcombine.low %v3173, %v3180
        %v3183 = vunpack.c.l.s4 1966171168
        %v3184 = vunpack.c.0.s8 %v3183
        %v3185 = vlaneseq
        %v3186 = vshrl.u32 %v3185, 7
        %v3187 = vsub.s32 %v3184, %v3186
        %v3188 = vrot.slane %v3181, %v3187
        %v3189 = vcombine.low %v3041, %v3042
        %v3191 = vunpack.c.l.s4 1966171168
        %v3192 = vunpack.c.0.s8 %v3191
        %v3193 = vlaneseq
        %v3194 = vshrl.u32 %v3193, 7
        %v3195 = vsub.s32 %v3192, %v3194
        %v3196 = vrot.slane %v3189, %v3195
        %v3198 = vunpack.c.l.s4 1966171168
        %v3199 = vunpack.c.0.s8 %v3198
        %v3200 = vlaneseq
        %v3201 = vshrl.u32 %v3200, 7
        %v3202 = vsub.s32 %v3199, %v3201
        %v3203 = vrot.slane %v3043, %v3202
        %v3204 = vcombine.low %v3196, %v3203
        %v3206 = vunpack.c.l.s4 1966171168
        %v3207 = vunpack.c.0.s8 %v3206
        %v3208 = vlaneseq
        %v3209 = vshrl.u32 %v3208, 7
        %v3210 = vsub.s32 %v3207, %v3209
        %v3211 = vrot.slane %v3204, %v3210
        %v3212 = vcombine.low %v3044, %v3045
        %v3214 = vunpack.c.l.s4 1966171168
        %v3215 = vunpack.c.0.s8 %v3214
        %v3216 = vlaneseq
        %v3217 = vshrl.u32 %v3216, 7
        %v3218 = vsub.s32 %v3215, %v3217
        %v3219 = vrot.slane %v3212, %v3218
        %v3221 = vunpack.c.l.s4 1966171168
        %v3222 = vunpack.c.0.s8 %v3221
        %v3223 = vlaneseq
        %v3224 = vshrl.u32 %v3223, 7
        %v3225 = vsub.s32 %v3222, %v3224
        %v3226 = vrot.slane %v3046, %v3225
        %v3227 = vcombine.low %v3219, %v3226
        %v3229 = vunpack.c.l.s4 1966171168
        %v3230 = vunpack.c.0.s8 %v3229
        %v3231 = vlaneseq
        %v3232 = vshrl.u32 %v3231, 7
        %v3233 = vsub.s32 %v3230, %v3232
        %v3234 = vrot.slane %v3227, %v3233
        %v3235 = vcombine.low %v3047, %v3048
        %v3237 = vunpack.c.l.s4 1966171168
        %v3238 = vunpack.c.0.s8 %v3237
        %v3239 = vlaneseq
        %v3240 = vshrl.u32 %v3239, 7
        %v3241 = vsub.s32 %v3238, %v3240
        %v3242 = vrot.slane %v3235, %v3241
        %v3244 = vunpack.c.l.s4 1966171168
        %v3245 = vunpack.c.0.s8 %v3244
        %v3246 = vlaneseq
        %v3247 = vshrl.u32 %v3246, 7
        %v3248 = vsub.s32 %v3245, %v3247
        %v3249 = vrot.slane %v3049, %v3248
        %v3250 = vcombine.low %v3242, %v3249
        %v3252 = vunpack.c.l.s4 1966171168
        %v3253 = vunpack.c.0.s8 %v3252
        %v3254 = vlaneseq
        %v3255 = vshrl.u32 %v3254, 7
        %v3256 = vsub.s32 %v3253, %v3255
        %v3257 = vrot.slane %v3250, %v3256
        %vm3266 = vcmask 59392
        %3267 = vst.msk [vmem:[%s1141] sm:$0x7] %vm3266, %v3096
        %3268 = vst.msk [vmem:[%s1141 + $0x4] sm:$0x7] %vm3266, %v3119
        %3269 = vst.msk [vmem:[%s1141 + $0x8] sm:$0x7] %vm3266, %v3142
        %3270 = vst.msk [vmem:[%s1141 + $0xc] sm:$0x7] %vm3266, %v3165
        %3271 = vst.msk [vmem:[%s1141 + $0x10] sm:$0x7] %vm3266, %v3188
        %3272 = vst.msk [vmem:[%s1141 + $0x14] sm:$0x7] %vm3266, %v3211
        %3273 = vst.msk [vmem:[%s1141 + $0x18] sm:$0x7] %vm3266, %v3234
        %3274 = vst.msk [vmem:[%s1141 + $0x1c] sm:$0x7] %vm3266, %v3257
        %s3275 = sand.u32 %s537, 1
        %s3276 = scalar_lea.sflag [#allocation4], %s3275
        %s3277 = sand.u32 %s537, 1
        %s3278 = smul.addr %s3277, 8
        %s3279 = scalar_lea.vmem [#allocation34], %s3278
        %s3280 = sand.u32 %s63, 1
        %s3281 = scalar_lea.sflag [#allocation36], %s3280
        %s3282 = sand.u32 %s565, 1
        %s3283 = smul.addr %s3282, 8
        %s3284 = scalar_lea.vmem [#allocation35], %s3283
        %s3285 = sand.u32 %s63, 1
        %s3286 = scalar_lea.sflag [#allocation36], %s3285
        %s3287 = sand.u32 %s593, 1
        %s3288 = smul.addr %s3287, 32
        %s3289 = scalar_lea.vmem [#allocation37], %s3288
        %s3290 = sand.u32 %s621, 1
        %s3291 = scalar_lea.sflag [#allocation39], %s3290
        %s3292 = sand.u32 %s621, 1
        %s3293 = smul.addr %s3292, 32
        %s3294 = scalar_lea.vmem [#allocation38], %s3293
        // Predicated region
        $region181: #{tpu_custom_call.1} parent=99 // pred_check
          %p3295 = pneg %p547
        $region182: #{tpu_custom_call.1} parent=99 // pred_check_branch
          %3297 = sbr.rel (%p3295) target = $region184
        $region183: #{tpu_custom_call.1} parent=99 // pred_region
          %s3299 = ssub.s32 128, 128
          %3300 = vsyncadd %s3276, %s3299
          %s3301 = sadd.s32 %s68, %s67
          %s3302 = smul.addr %s3301, 128
          %s3303 = scalar_lea.hbm %s20, %s3302
          %s3305 = sshll.u32 %s3279, 4
          %s3306 = int_to_ptr.vmem [resolvable:$true] %s3305
          %3308 = dma.vmem_to_hbm [thread:$0]  %s3306, 128, %s3303, %s3276
        $region184: #{tpu_custom_call.1} parent=99 // pred_fallthru
          _
        // Predicated region
        $region185: #{tpu_custom_call.1} parent=99 // pred_check
          %p3309 = pneg %p575
        $region186: #{tpu_custom_call.1} parent=99 // pred_check_branch
          %3311 = sbr.rel (%p3309) target = $region188
        $region187: #{tpu_custom_call.1} parent=99 // pred_region
          %s3313 = ssub.s32 128, 128
          %3314 = vsyncadd %s3281, %s3313
          %s3315 = sadd.s32 %s68, %s67
          %s3316 = smul.addr %s3315, 128
          %s3317 = scalar_lea.hbm %s21, %s3316
          %s3319 = sshll.u32 %s3284, 4
          %s3320 = int_to_ptr.vmem [resolvable:$true] %s3319
          %3322 = dma.vmem_to_hbm [thread:$0]  %s3320, 128, %s3317, %s3281
        $region188: #{tpu_custom_call.1} parent=99 // pred_fallthru
          _
        // Predicated region
        $region189: #{tpu_custom_call.1} parent=99 // pred_check
          %p3323 = pneg %p603
        $region190: #{tpu_custom_call.1} parent=99 // pred_check_branch
          %3325 = sbr.rel (%p3323) target = $region192
        $region191: #{tpu_custom_call.1} parent=99 // pred_region
          %s3326 = smul.u32 8, %s68
          %s3328 = ssub.s32 512, 512
          %3329 = vsyncadd %s3286, %s3328
          %s3330 = smul.addr %s67, 8
          %s3331 = sadd.s32 %s3326, %s3330
          %s3332 = smul.addr %s3331, 64
          %s3333 = scalar_lea.hbm %s22, %s3332
          %s3334 = sshll.u32 %s3289, 4
          %s3335 = int_to_ptr.vmem [resolvable:$true] %s3334
          %3340 = dma.vmem_to_hbm [thread:$0]  %s3335, 512, %s3333, %s3286, 64, 64, 4
        $region192: #{tpu_custom_call.1} parent=99 // pred_fallthru
          _
        // Predicated region
        $region193: #{tpu_custom_call.1} parent=99 // pred_check
          %p3341 = pneg %p631
        $region194: #{tpu_custom_call.1} parent=99 // pred_check_branch
          %3343 = sbr.rel (%p3341) target = $region196
        $region195: #{tpu_custom_call.1} parent=99 // pred_region
          %s3344 = smul.u32 8, %s68
          %s3346 = ssub.s32 512, 512
          %3347 = vsyncadd %s3291, %s3346
          %s3348 = smul.addr %s67, 8
          %s3349 = sadd.s32 %s3344, %s3348
          %s3350 = smul.addr %s3349, 64
          %s3351 = scalar_lea.hbm %s23, %s3350
          %s3352 = sshll.u32 %s3294, 4
          %s3353 = int_to_ptr.vmem [resolvable:$true] %s3352
          %3358 = dma.vmem_to_hbm [thread:$0]  %s3353, 512, %s3351, %s3291, 64, 64, 4
        $region196: #{tpu_custom_call.1} parent=99 // pred_fallthru
          _
      $region100: #{tpu_custom_call.1} parent=5 // pred_fallthru
        _
      %p3359 = scmp.le.s32.totalorder 2, %s58
      // Predicated region
      $region197: #{tpu_custom_call.1} parent=5 // pred_check
        %p3360 = pneg %p3359
      $region198: #{tpu_custom_call.1} parent=5 // pred_check_branch
        %3362 = sbr.rel (%p3360) target = $region200
      $region199: #{tpu_custom_call.1} parent=5 // pred_region
        %s3363 = ssub.s32 %s58, 2
        // Predicated region
        $region201: #{tpu_custom_call.1} parent=199 // pred_check
          %p3364 = pneg %p553
        $region202: #{tpu_custom_call.1} parent=199 // pred_check_branch
          %3366 = sbr.rel (%p3364) target = $region204
        $region203: #{tpu_custom_call.1} parent=199 // pred_region
          %s3367 = sand.u32 %s538, 1
          %s3368 = scalar_lea.sflag [#allocation4], %s3367
          %s3369 = sand.u32 %s538, 1
          %s3370 = smul.addr %s3369, 8
          %s3371 = scalar_lea.vmem [#allocation34], %s3370
          %3372 = dma.done %s3368, 128
        $region204: #{tpu_custom_call.1} parent=199 // pred_fallthru
          _
        // Predicated region
        $region205: #{tpu_custom_call.1} parent=199 // pred_check
          %p3373 = pneg %p581
        $region206: #{tpu_custom_call.1} parent=199 // pred_check_branch
          %3375 = sbr.rel (%p3373) target = $region208
        $region207: #{tpu_custom_call.1} parent=199 // pred_region
          %s3376 = sand.u32 %s64, 1
          %s3377 = scalar_lea.sflag [#allocation36], %s3376
          %s3378 = sand.u32 %s566, 1
          %s3379 = smul.addr %s3378, 8
          %s3380 = scalar_lea.vmem [#allocation35], %s3379
          %3381 = dma.done %s3377, 128
        $region208: #{tpu_custom_call.1} parent=199 // pred_fallthru
          _
        // Predicated region
        $region209: #{tpu_custom_call.1} parent=199 // pred_check
          %p3382 = pneg %p609
        $region210: #{tpu_custom_call.1} parent=199 // pred_check_branch
          %3384 = sbr.rel (%p3382) target = $region212
        $region211: #{tpu_custom_call.1} parent=199 // pred_region
          %s3385 = sand.u32 %s64, 1
          %s3386 = scalar_lea.sflag [#allocation36], %s3385
          %s3387 = sand.u32 %s594, 1
          %s3388 = smul.addr %s3387, 32
          %s3389 = scalar_lea.vmem [#allocation37], %s3388
          %3390 = dma.done %s3386, 512
        $region212: #{tpu_custom_call.1} parent=199 // pred_fallthru
          _
        // Predicated region
        $region213: #{tpu_custom_call.1} parent=199 // pred_check
          %p3391 = pneg %p637
        $region214: #{tpu_custom_call.1} parent=199 // pred_check_branch
          %3393 = sbr.rel (%p3391) target = $region216
        $region215: #{tpu_custom_call.1} parent=199 // pred_region
          %s3394 = sand.u32 %s622, 1
          %s3395 = scalar_lea.sflag [#allocation39], %s3394
          %s3396 = sand.u32 %s622, 1
          %s3397 = smul.addr %s3396, 32
          %s3398 = scalar_lea.vmem [#allocation38], %s3397
          %3399 = dma.done %s3395, 512
        $region216: #{tpu_custom_call.1} parent=199 // pred_fallthru
          _
      $region200: #{tpu_custom_call.1} parent=5 // pred_fallthru
        _
    $region6: #{tpu_custom_call.1} parent=1 // loop_footer
      %s62 = sadd.s32 1, %s58
    $region7: #{tpu_custom_call.1} parent=1 // loop_footer_branch
      %57 = sbr.rel target = $region3
    $region8: #{tpu_custom_call.1} parent=1 // loop_exit
      _
    %3400 = vsyncpa [#allocation3], 1
    %s3401 = scalar_lea.sflag [#allocation3], 1
    %3402 = vsyncpa %s3401, 1
    %3403 = vsyncpa [#allocation6], 1
    %s3404 = scalar_lea.sflag [#allocation6], 1
    %3405 = vsyncpa %s3404, 1
    %3406 = vsyncpa [#allocation9], 1
    %s3407 = scalar_lea.sflag [#allocation9], 1
    %3408 = vsyncpa %s3407, 1
    %3409 = vsyncpa [#allocation12], 1
    %s3410 = scalar_lea.sflag [#allocation12], 1
    %3411 = vsyncpa %s3410, 1
    %3412 = vsyncpa [#allocation15], 1
    %3413 = vsyncpa [#allocation18], 1
    %3414 = vsyncpa [#allocation21], 1
    %3415 = vsyncpa [#allocation24], 1
    %3416 = vsyncpa [#allocation27], 1
    %3417 = vsyncpa [#allocation30], 1
    %3418 = vsyncpa [#allocation33], 1
    %3419 = vsyncpa [#allocation4], 1
    %s3420 = scalar_lea.sflag [#allocation4], 1
    %3421 = vsyncpa %s3420, 1
    %3422 = vsyncpa [#allocation36], 1
    %s3423 = scalar_lea.sflag [#allocation36], 1
    %3424 = vsyncpa %s3423, 1
    %3425 = vsyncpa [#allocation39], 1
    %s3426 = scalar_lea.sflag [#allocation39], 1
    %3427 = vsyncpa %s3426, 1

</llo_original>
